<compile_context>
chip_gen: v7x
topology: tpu7x:2x2x1
jax: 0.10.0
libtpu: 0.0.40
codegen_flags: <defaults>
</compile_context>

<pallas_src>
import functools

import jax
import jax.numpy as jnp
from jax.experimental import pallas as pl
from jax.experimental.pallas import tpu as pltpu


# --------------------------- helpers -----------------------------------------

def _round_up(n, m):
    return ((n + m - 1) // m) * m


def _pad2(a, rows, cols):
    r, c = a.shape
    if r == rows and c == cols:
        return a
    return jnp.pad(a, ((0, rows - r), (0, cols - c)))


# --------------------------- tiled matmul (+bias, +residual) -----------------

def _matmul_kernel(*refs, has_bias, has_residual):
    x_ref, w_ref = refs[0], refs[1]
    idx = 2
    b_ref = r_ref = None
    if has_bias:
        b_ref = refs[idx]; idx += 1
    if has_residual:
        r_ref = refs[idx]; idx += 1
    o_ref, acc_ref = refs[idx], refs[idx + 1]

    k = pl.program_id(2)

    @pl.when(k == 0)
    def _():
        acc_ref[...] = jnp.zeros_like(acc_ref)

    acc_ref[...] += jnp.dot(x_ref[...].astype(jnp.bfloat16), w_ref[...],
                            preferred_element_type=jnp.float32)

    @pl.when(k == pl.num_programs(2) - 1)
    def _():
        y = acc_ref[...]
        if has_bias:
            y = y + b_ref[...]
        if has_residual:
            y = y + r_ref[...].astype(jnp.float32)
        o_ref[...] = y.astype(o_ref.dtype)


def linear(x, w, b=None, residual=None, out_dtype=None):
    """y = x @ w (+ b) (+ residual).  Tiled (M,N,K) grid, bf16 MXU, f32 accumulate."""
    M, K = x.shape
    N = w.shape[1]
    out_dtype = out_dtype or x.dtype

    tm = min(256, _round_up(M, 8))
    tn = min(256, _round_up(N, 128))
    tk = min(512, _round_up(K, 128))
    Mp, Np, Kp = _round_up(M, tm), _round_up(N, tn), _round_up(K, tk)

    args = [_pad2(x, Mp, Kp), _pad2(w.astype(jnp.bfloat16), Kp, Np)]
    in_specs = [pl.BlockSpec((tm, tk), lambda i, j, k: (i, k)),
                pl.BlockSpec((tk, tn), lambda i, j, k: (k, j))]
    if b is not None:
        args.append(_pad2(b.reshape(1, N).astype(jnp.float32), 1, Np))
        in_specs.append(pl.BlockSpec((1, tn), lambda i, j, k: (0, j)))
    if residual is not None:
        args.append(_pad2(residual, Mp, Np))
        in_specs.append(pl.BlockSpec((tm, tn), lambda i, j, k: (i, j)))

    out = pl.pallas_call(
        functools.partial(_matmul_kernel, has_bias=b is not None,
                          has_residual=residual is not None),
        out_shape=jax.ShapeDtypeStruct((Mp, Np), out_dtype),
        grid=(Mp // tm, Np // tn, Kp // tk),
        in_specs=in_specs,
        out_specs=pl.BlockSpec((tm, tn), lambda i, j, k: (i, j)),
        scratch_shapes=[pltpu.VMEM((tm, tn), jnp.float32)],
        compiler_params=pltpu.CompilerParams(
            dimension_semantics=("parallel", "parallel", "arbitrary")),
    )(*args)
    return out[:M, :N]


# --------------------------- fused LayerNorm + Linear -------------------------

def _ln_linear_kernel(*refs, eps, has_bias):
    if has_bias:
        x_ref, g_ref, b_ref, w_ref, bias_ref, o_ref = refs
    else:
        x_ref, g_ref, b_ref, w_ref, o_ref = refs
        bias_ref = None
    x = x_ref[...].astype(jnp.float32)
    mean = jnp.mean(x, axis=-1, keepdims=True)
    var = jnp.mean(jnp.square(x - mean), axis=-1, keepdims=True)
    xn = (x - mean) * jax.lax.rsqrt(var + eps) * g_ref[...] + b_ref[...]
    y = jnp.dot(xn.astype(jnp.bfloat16), w_ref[...],
                preferred_element_type=jnp.float32)
    if has_bias:
        y = y + bias_ref[...]
    o_ref[...] = y.astype(o_ref.dtype)


def ln_linear(x, g, b, w, bias=None, out_dtype=None, eps=1e-5):
    """(LayerNorm(x) @ w + bias) fused in one kernel (LN stats f32, MXU bf16)."""
    M, D = x.shape
    N = w.shape[1]
    out_dtype = out_dtype or x.dtype
    tm = min(256, _round_up(M, 8))
    tn = min(512, _round_up(N, 128))
    Mp, Np = _round_up(M, tm), _round_up(N, tn)

    args = [_pad2(x, Mp, D),
            g.reshape(1, D).astype(jnp.float32),
            b.reshape(1, D).astype(jnp.float32),
            _pad2(w.astype(jnp.bfloat16), D, Np)]
    in_specs = [pl.BlockSpec((tm, D), lambda i, j: (i, 0)),
                pl.BlockSpec((1, D), lambda i, j: (0, 0)),
                pl.BlockSpec((1, D), lambda i, j: (0, 0)),
                pl.BlockSpec((D, tn), lambda i, j: (0, j))]
    if bias is not None:
        args.append(_pad2(bias.reshape(1, N).astype(jnp.float32), 1, Np))
        in_specs.append(pl.BlockSpec((1, tn), lambda i, j: (0, j)))

    out = pl.pallas_call(
        functools.partial(_ln_linear_kernel, eps=eps, has_bias=bias is not None),
        out_shape=jax.ShapeDtypeStruct((Mp, Np), out_dtype),
        grid=(Mp // tm, Np // tn),
        in_specs=in_specs,
        out_specs=pl.BlockSpec((tm, tn), lambda i, j: (i, j)),
        compiler_params=pltpu.CompilerParams(
            dimension_semantics=("parallel", "parallel")),
    )(*args)
    return out[:M, :N]


# --------------------------- fused MLP (LN -> fc1 -> GELU -> fc2 -> +res) ----

def _mlp_kernel(x_ref, g_ref, b_ref, w1_ref, b1_ref, w2_ref, b2_ref, o_ref,
                acc_ref, xn_ref, *, eps):
    j = pl.program_id(1)

    @pl.when(j == 0)
    def _():
        x = x_ref[...].astype(jnp.float32)
        mean = jnp.mean(x, axis=-1, keepdims=True)
        var = jnp.mean(jnp.square(x - mean), axis=-1, keepdims=True)
        xn = (x - mean) * jax.lax.rsqrt(var + eps) * g_ref[...] + b_ref[...]
        xn_ref[...] = xn.astype(xn_ref.dtype)
        acc_ref[...] = jnp.zeros_like(acc_ref)

    h = jnp.dot(xn_ref[...], w1_ref[...],
                preferred_element_type=jnp.float32) + b1_ref[...]
    # TODO(synk): PyTorch nn.GELU() is erf-exact; tanh approximation used here
    # (EUP-friendly), max abs deviation ~3e-4.
    h = jax.nn.gelu(h, approximate=True)
    acc_ref[...] += jnp.dot(h.astype(jnp.bfloat16), w2_ref[...],
                            preferred_element_type=jnp.float32)

    @pl.when(j == pl.num_programs(1) - 1)
    def _():
        o_ref[...] = (acc_ref[...] + b2_ref[...]
                      + x_ref[...].astype(jnp.float32)).astype(o_ref.dtype)


def fused_mlp(x, g, b, w1, b1, w2, b2, eps=1e-5):
    """x + fc2(gelu(fc1(LayerNorm(x)))): hidden activations never leave VMEM."""
    M, D = x.shape
    Hd = w1.shape[1]
    tm = min(256, _round_up(M, 8))
    th = min(512, _round_up(Hd, 128))
    Mp, Hp = _round_up(M, tm), _round_up(Hd, th)

    out = pl.pallas_call(
        functools.partial(_mlp_kernel, eps=eps),
        out_shape=jax.ShapeDtypeStruct((Mp, D), x.dtype),
        grid=(Mp // tm, Hp // th),
        in_specs=[pl.BlockSpec((tm, D), lambda i, j: (i, 0)),
                  pl.BlockSpec((1, D), lambda i, j: (0, 0)),
                  pl.BlockSpec((1, D), lambda i, j: (0, 0)),
                  pl.BlockSpec((D, th), lambda i, j: (0, j)),
                  pl.BlockSpec((1, th), lambda i, j: (0, j)),
                  pl.BlockSpec((th, D), lambda i, j: (j, 0)),
                  pl.BlockSpec((1, D), lambda i, j: (0, 0))],
        out_specs=pl.BlockSpec((tm, D), lambda i, j: (i, 0)),
        scratch_shapes=[pltpu.VMEM((tm, D), jnp.float32),
                        pltpu.VMEM((tm, D), jnp.bfloat16)],
        compiler_params=pltpu.CompilerParams(
            dimension_semantics=("parallel", "arbitrary")),
    )(_pad2(x, Mp, D),
      g.reshape(1, D).astype(jnp.float32), b.reshape(1, D).astype(jnp.float32),
      _pad2(w1.astype(jnp.bfloat16), D, Hp),
      _pad2(b1.reshape(1, Hd).astype(jnp.float32), 1, Hp),
      _pad2(w2.astype(jnp.bfloat16), Hp, D),
      b2.reshape(1, D).astype(jnp.float32))
    return out[:M]


# --------------------------- multi-head attention core -----------------------

def _attention_kernel(qkv_ref, o_ref, *, num_heads, scale):
    qkv = qkv_ref[0]                              # (S, 3C), packed [q | k | v]
    C = qkv.shape[-1] // 3
    hd = C // num_heads
    outs = []
    for h in range(num_heads):                    # static loop; all heads per grid step
        q = qkv[:, h * hd:(h + 1) * hd]           # bf16 straight into the MXU
        k = qkv[:, C + h * hd:C + (h + 1) * hd]
        v = qkv[:, 2 * C + h * hd:2 * C + (h + 1) * hd]
        s = jax.lax.dot_general(q, k, (((1,), (1,)), ((), ())),
                                preferred_element_type=jnp.float32) * scale
        s = s - jnp.max(s, axis=-1, keepdims=True)
        p = jnp.exp(s)
        p = p * pl.reciprocal(jnp.sum(p, axis=-1, keepdims=True), approx=True)
        outs.append(jnp.dot(p.astype(v.dtype), v,
                            preferred_element_type=jnp.float32))
    # single lane-dense (S, C) store instead of per-head masked stores
    o_ref[0] = jnp.concatenate(outs, axis=-1).astype(o_ref.dtype)


def mha_core(qkv, num_heads, scale):
    """softmax(q k^T * scale) v for all heads of one batch item per grid step."""
    B, S, C3 = qkv.shape
    C = C3 // 3
    return pl.pallas_call(
        functools.partial(_attention_kernel, num_heads=num_heads, scale=scale),
        out_shape=jax.ShapeDtypeStruct((B, S, C), qkv.dtype),
        grid=(B,),
        in_specs=[pl.BlockSpec((1, S, C3), lambda b: (b, 0, 0))],
        out_specs=pl.BlockSpec((1, S, C), lambda b: (b, 0, 0)),
        compiler_params=pltpu.CompilerParams(dimension_semantics=("parallel",)),
    )(qkv)


# --------------------------- model glue (plain JAX) --------------------------

def attention_module(x, p, num_heads):
    """Attention.forward (with_qkv=True, qkv_bias=False) with norm1 fused into
    the qkv projection and the residual add fused into the output projection."""
    B, S, C = x.shape
    hd = C // num_heads
    scale = hd ** (-0.5)
    qkv = ln_linear(x.reshape(B * S, C), p["norm1_g"], p["norm1_b"], p["qkv_w"])
    attn = mha_core(qkv.reshape(B, S, 3 * C), num_heads, scale)
    out = linear(attn.reshape(B * S, C), p["proj_w"], p["proj_b"],
                 residual=x.reshape(B * S, C))           # drop_path/proj_drop: identity
    return out.reshape(B, S, C)


def block_forward(x, p, num_heads):
    """Block.forward, joint_space_time branch.
    TODO(synk): the reference 'divided_space_time' branch needs a 5-D input with
    consistent reshapes which forward_features never produces; the coherent
    joint space-time branch of the same module is implemented."""
    x = attention_module(x, p, num_heads)
    B, S, C = x.shape
    x = fused_mlp(x.reshape(B * S, C), p["norm2_g"], p["norm2_b"],
                  p["fc1_w"], p["fc1_b"], p["fc2_w"], p["fc2_b"]).reshape(B, S, C)
    return x


def vit_forward(x, params, *, patch_size, num_heads):
    B, N, C, H, W = x.shape
    D = params["cls_token"].shape[-1]
    Hp_, Wp_ = H // patch_size, W // patch_size
    P = Hp_ * Wp_

    # patch_embed: Conv2d(k=s=patch_size) == non-overlapping im2col + matmul
    xp = x.reshape(B * N, C, Hp_, patch_size, Wp_, patch_size)
    xp = xp.transpose(0, 2, 4, 1, 3, 5).reshape(B * N * P, C * patch_size * patch_size)
    xp = xp.astype(jnp.bfloat16)
    tok = linear(xp, params["patch_w"], params["patch_b"]).reshape(B, N * P, D)

    # TODO(synk): reference cats a 3-D cls_token with 4-D tokens and adds a
    # pos_embed with no cls slot (ill-formed); here pos_embed covers the N*P
    # spatiotemporal tokens, time_embed is added per frame, cls is prepended.
    tok = tok + params["pos_embed"]                                   # pos_drop: identity
    tok = (tok.reshape(B, N, P, D) + params["time_embed"][:, :, None, :]).reshape(B, N * P, D)
    cls = jnp.broadcast_to(params["cls_token"], (B, 1, D)).astype(tok.dtype)
    h = jnp.concatenate([cls, tok], axis=1)                           # (B, 1 + N*P, D)

    for bp in params["blocks"]:
        h = block_forward(h, bp, num_heads)

    # final LayerNorm is row-wise -> only the cls row matters for the output;
    # fuse it with the classification head.
    cls_out = h[:, 0]                                                 # (B, D)
    return ln_linear(cls_out, params["norm_g"], params["norm_b"],
                     params["head_w"], params["head_b"], out_dtype=jnp.float32)


# --------------------------- deterministic init -------------------------------

def init_params(key, *, in_chans, patch_size, embed_dim, depth, mlp_ratio,
                num_frames, num_patches, num_classes):
    D = embed_dim
    hidden = int(D * mlp_ratio)
    keys = iter(jax.random.split(key, 8 + 8 * depth))

    def tn(shape, std=0.02, dtype=jnp.bfloat16):
        w = std * jax.random.truncated_normal(next(keys), -2.0, 2.0, shape, jnp.float32)
        return w.astype(dtype)

    params = dict(
        patch_w=tn((in_chans * patch_size * patch_size, D)),   # Conv2d weight, reshaped/transposed
        patch_b=jnp.zeros((D,), jnp.float32),
        pos_embed=tn((1, num_frames * num_patches, D)),
        cls_token=tn((1, 1, D)),
        time_embed=tn((1, num_frames, D)),
        norm_g=jnp.ones((D,), jnp.float32),
        norm_b=jnp.zeros((D,), jnp.float32),
        head_w=tn((D, num_classes)),
        head_b=jnp.zeros((num_classes,), jnp.float32),
        blocks=[],
    )
    for _ in range(depth):
        params["blocks"].append(dict(
            norm1_g=jnp.ones((D,), jnp.float32), norm1_b=jnp.zeros((D,), jnp.float32),
            qkv_w=tn((D, 3 * D)),                                # qkv_bias=False
            proj_w=tn((D, D)), proj_b=jnp.zeros((D,), jnp.float32),
            norm2_g=jnp.ones((D,), jnp.float32), norm2_b=jnp.zeros((D,), jnp.float32),
            fc1_w=tn((D, hidden)), fc1_b=jnp.zeros((hidden,), jnp.float32),
            fc2_w=tn((hidden, D)), fc2_b=jnp.zeros((D,), jnp.float32),
        ))
    return params


# --------------------------- main ---------------------------------------------

if __name__ == "__main__":
    # Small, shape-consistent config: img 16x16, patch 8 -> 4 patches/frame,
    # 2 frames, embed_dim 128 (lane-dense), 4 heads, depth 2, 10 classes.
    B, N_frames, C_in = 2, 2, 3
    H = W = 16
    patch_size = 8
    embed_dim = 128
    depth = 2
    num_heads = 4
    mlp_ratio = 4.0
    num_classes = 10
    num_patches = (H // patch_size) * (W // patch_size)

    root = jax.random.PRNGKey(0)
    k_x, k_p = jax.random.split(root)
    x = jax.random.normal(k_x, (B, N_frames, C_in, H, W), jnp.float32)
    params = init_params(
        k_p, in_chans=C_in, patch_size=patch_size, embed_dim=embed_dim,
        depth=depth, mlp_ratio=mlp_ratio, num_frames=N_frames,
        num_patches=num_patches, num_classes=num_classes)

    fwd = jax.jit(functools.partial(vit_forward, patch_size=patch_size, num_heads=num_heads))
    out = fwd(x, params)
    jax.block_until_ready(out)
    assert out.shape == (B, num_classes), out.shape
    assert bool(jnp.all(jnp.isfinite(out)))
    print("KERNEL_OK")
</pallas_src>

<mosaic_0001>
module attributes {stable_mosaic.version = 11 : i64} {
  func.func @_matmul_kernel(%arg0: i32, %arg1: i32, %arg2: i32, %arg3: memref<16x256xbf16, #tpu.memory_space<vmem>>, %arg4: memref<256x128xbf16, #tpu.memory_space<vmem>>, %arg5: memref<1x128xf32, #tpu.memory_space<vmem>>, %arg6: memref<16x128xbf16, #tpu.memory_space<vmem>>, %arg7: memref<16x128xf32, #tpu.memory_space<vmem>>) attributes {dimension_semantics = [#tpu.dimension_semantics<parallel>, #tpu.dimension_semantics<parallel>, #tpu.dimension_semantics<arbitrary>], iteration_bounds = array<i64: 1, 1, 1>, scalar_prefetch = 0 : i64, scratch_operands = 1 : i64, tpu.core_type = #tpu.core_type<tc>, window_params = [{transform_indices = @transform_0, window_bounds = array<i64: 16, 256>}, {transform_indices = @transform_1, window_bounds = array<i64: 256, 128>}, {transform_indices = @transform_2, window_bounds = array<i64: 1, 128>}, {transform_indices = @transform_3, window_bounds = array<i64: 16, 128>}]} {
    %c0_i32 = arith.constant 0 : i32
    %0 = arith.cmpi eq, %arg2, %c0_i32 : i32
    %1 = arith.extui %0 : i1 to i32
    %c0_i32_0 = arith.constant 0 : i32
    %2 = arith.cmpi ne, %1, %c0_i32_0 : i32
    scf.if %2 {
      %cst_10 = arith.constant 0.000000e+00 : f32
      %12 = vector.broadcast %cst_10 : f32 to vector<16x128xf32>
      %c0_11 = arith.constant 0 : index
      %c0_12 = arith.constant 0 : index
      %13 = vector.load %arg7[%c0_11, %c0_12] : memref<16x128xf32, #tpu.memory_space<vmem>>, vector<16x128xf32>
      tpu.vector_store %arg7[%c0_11, %c0_12], %12 {strides = array<i32>} : memref<16x128xf32, #tpu.memory_space<vmem>>, vector<16x128xf32>,
    } else {
    }
    %c0 = arith.constant 0 : index
    %c0_1 = arith.constant 0 : index
    %3 = vector.load %arg7[%c0, %c0_1] : memref<16x128xf32, #tpu.memory_space<vmem>>, vector<16x128xf32>
    %c0_2 = arith.constant 0 : index
    %c0_3 = arith.constant 0 : index
    %4 = vector.load %arg3[%c0_2, %c0_3] : memref<16x256xbf16, #tpu.memory_space<vmem>>, vector<16x256xbf16>
    %c0_4 = arith.constant 0 : index
    %c0_5 = arith.constant 0 : index
    %5 = vector.load %arg4[%c0_4, %c0_5] : memref<256x128xbf16, #tpu.memory_space<vmem>>, vector<256x128xbf16>
    %cst = arith.constant dense<0.000000e+00> : vector<16x128xf32>
    %6 = tpu.matmul %4, %5, %cst {dimension_numbers = #tpu.dot_dimension_numbers<[1], [0], [0], [1], [0, 0, 1, 1], [], []>} : vector<16x256xbf16>, vector<256x128xbf16>, vector<16x128xf32> -> vector<16x128xf32>
    %7 = arith.addf %3, %6 : vector<16x128xf32>
    %c0_6 = arith.constant 0 : index
    %c0_7 = arith.constant 0 : index
    %8 = vector.load %arg7[%c0_6, %c0_7] : memref<16x128xf32, #tpu.memory_space<vmem>>, vector<16x128xf32>
    tpu.vector_store %arg7[%c0_6, %c0_7], %7 {strides = array<i32>} : memref<16x128xf32, #tpu.memory_space<vmem>>, vector<16x128xf32>,
    %c0_i32_8 = arith.constant 0 : i32
    %9 = arith.cmpi eq, %arg2, %c0_i32_8 : i32
    %10 = arith.extui %9 : i1 to i32
    %c0_i32_9 = arith.constant 0 : i32
    %11 = arith.cmpi ne, %10, %c0_i32_9 : i32
    scf.if %11 {
      %c0_10 = arith.constant 0 : index
      %c0_11 = arith.constant 0 : index
      %12 = vector.load %arg7[%c0_10, %c0_11] : memref<16x128xf32, #tpu.memory_space<vmem>>, vector<16x128xf32>
      %c0_12 = arith.constant 0 : index
      %c0_13 = arith.constant 0 : index
      %13 = vector.load %arg5[%c0_12, %c0_13] : memref<1x128xf32, #tpu.memory_space<vmem>>, vector<1x128xf32>
      %14 = vector.broadcast %13 : vector<1x128xf32> to vector<16x128xf32>
      %15 = arith.addf %12, %14 : vector<16x128xf32>
      %16 = arith.truncf %15 : vector<16x128xf32> to vector<16x128xbf16>
      %c0_14 = arith.constant 0 : index
      %c0_15 = arith.constant 0 : index
      %17 = vector.load %arg6[%c0_14, %c0_15] : memref<16x128xbf16, #tpu.memory_space<vmem>>, vector<16x128xbf16>
      tpu.vector_store %arg6[%c0_14, %c0_15], %16 {strides = array<i32>} : memref<16x128xbf16, #tpu.memory_space<vmem>>, vector<16x128xbf16>,
    } else {
    }
    return
  }
  func.func @transform_0(%arg0: i32, %arg1: i32, %arg2: i32) -> (i32, i32) {
    %c0_i32 = arith.constant 0 : i32
    return %arg0, %arg2 : i32, i32
  }
  func.func @transform_1(%arg0: i32, %arg1: i32, %arg2: i32) -> (i32, i32) {
    %c0_i32 = arith.constant 0 : i32
    return %arg2, %arg1 : i32, i32
  }
  func.func @transform_2(%arg0: i32, %arg1: i32, %arg2: i32) -> (i32, i32) {
    %c0_i32 = arith.constant 0 : i32
    %c0_i32_0 = arith.constant 0 : i32
    return %c0_i32, %arg1 : i32, i32
  }
  func.func @transform_3(%arg0: i32, %arg1: i32, %arg2: i32) -> (i32, i32) {
    %c0_i32 = arith.constant 0 : i32
    return %arg0, %arg1 : i32, i32
  }
}

module attributes {stable_mosaic.version = 11 : i64} {
  func.func @_ln_linear_kernel(%arg0: i32, %arg1: i32, %arg2: memref<24x128xbf16, #tpu.memory_space<vmem>>, %arg3: memref<1x128xf32, #tpu.memory_space<vmem>>, %arg4: memref<1x128xf32, #tpu.memory_space<vmem>>, %arg5: memref<128x384xbf16, #tpu.memory_space<vmem>>, %arg6: memref<24x384xbf16, #tpu.memory_space<vmem>>) attributes {dimension_semantics = [#tpu.dimension_semantics<parallel>, #tpu.dimension_semantics<parallel>], iteration_bounds = array<i64: 1, 1>, scalar_prefetch = 0 : i64, scratch_operands = 0 : i64, tpu.core_type = #tpu.core_type<tc>, window_params = [{transform_indices = @transform_0, window_bounds = array<i64: 24, 128>}, {pipeline_mode = #tpu.pipeline_mode<synchronous>, transform_indices = @transform_1, window_bounds = array<i64: 1, 128>}, {pipeline_mode = #tpu.pipeline_mode<synchronous>, transform_indices = @transform_2, window_bounds = array<i64: 1, 128>}, {transform_indices = @transform_3, window_bounds = array<i64: 128, 384>}, {transform_indices = @transform_4, window_bounds = array<i64: 24, 384>}]} {
    %c0 = arith.constant 0 : index
    %c0_0 = arith.constant 0 : index
    %0 = vector.load %arg2[%c0, %c0_0] : memref<24x128xbf16, #tpu.memory_space<vmem>>, vector<24x128xbf16>
    %1 = arith.extf %0 : vector<24x128xbf16> to vector<24x128xf32>
    %cst = arith.constant dense<0.000000e+00> : vector<24xf32>
    %2 = vector.multi_reduction <add>, %1, %cst [1] : vector<24x128xf32> to vector<24xf32>
    %3 = vector.shape_cast %2 : vector<24xf32> to vector<24x1xf32>
    %cst_1 = arith.constant 1.280000e+02 : f32
    %4 = vector.broadcast %cst_1 : f32 to vector<24x1xf32>
    %5 = arith.divf %3, %4 : vector<24x1xf32>
    %6 = vector.broadcast %5 : vector<24x1xf32> to vector<24x128xf32>
    %7 = arith.subf %1, %6 : vector<24x128xf32>
    %8 = arith.mulf %7, %7 : vector<24x128xf32>
    %cst_2 = arith.constant dense<0.000000e+00> : vector<24xf32>
    %9 = vector.multi_reduction <add>, %8, %cst_2 [1] : vector<24x128xf32> to vector<24xf32>
    %10 = vector.shape_cast %9 : vector<24xf32> to vector<24x1xf32>
    %cst_3 = arith.constant 1.280000e+02 : f32
    %11 = vector.broadcast %cst_3 : f32 to vector<24x1xf32>
    %12 = arith.divf %10, %11 : vector<24x1xf32>
    %13 = vector.broadcast %5 : vector<24x1xf32> to vector<24x128xf32>
    %14 = arith.subf %1, %13 : vector<24x128xf32>
    %cst_4 = arith.constant 9.99999974E-6 : f32
    %15 = vector.broadcast %cst_4 : f32 to vector<24x1xf32>
    %16 = arith.addf %12, %15 : vector<24x1xf32>
    %17 = math.rsqrt %16 : vector<24x1xf32>
    %18 = vector.broadcast %17 : vector<24x1xf32> to vector<24x128xf32>
    %19 = arith.mulf %14, %18 : vector<24x128xf32>
    %c0_5 = arith.constant 0 : index
    %c0_6 = arith.constant 0 : index
    %20 = vector.load %arg3[%c0_5, %c0_6] : memref<1x128xf32, #tpu.memory_space<vmem>>, vector<1x128xf32>
    %21 = vector.broadcast %20 : vector<1x128xf32> to vector<24x128xf32>
    %22 = arith.mulf %19, %21 : vector<24x128xf32>
    %c0_7 = arith.constant 0 : index
    %c0_8 = arith.constant 0 : index
    %23 = vector.load %arg4[%c0_7, %c0_8] : memref<1x128xf32, #tpu.memory_space<vmem>>, vector<1x128xf32>
    %24 = vector.broadcast %23 : vector<1x128xf32> to vector<24x128xf32>
    %25 = arith.addf %22, %24 : vector<24x128xf32>
    %26 = arith.truncf %25 : vector<24x128xf32> to vector<24x128xbf16>
    %c0_9 = arith.constant 0 : index
    %c0_10 = arith.constant 0 : index
    %27 = vector.load %arg5[%c0_9, %c0_10] : memref<128x384xbf16, #tpu.memory_space<vmem>>, vector<128x384xbf16>
    %cst_11 = arith.constant dense<0.000000e+00> : vector<24x384xf32>
    %28 = tpu.matmul %26, %27, %cst_11 {dimension_numbers = #tpu.dot_dimension_numbers<[1], [0], [0], [1], [0, 0, 1, 1], [], []>} : vector<24x128xbf16>, vector<128x384xbf16>, vector<24x384xf32> -> vector<24x384xf32>
    %29 = arith.truncf %28 : vector<24x384xf32> to vector<24x384xbf16>
    %c0_12 = arith.constant 0 : index
    %c0_13 = arith.constant 0 : index
    %30 = vector.load %arg6[%c0_12, %c0_13] : memref<24x384xbf16, #tpu.memory_space<vmem>>, vector<24x384xbf16>
    tpu.vector_store %arg6[%c0_12, %c0_13], %29 {strides = array<i32>} : memref<24x384xbf16, #tpu.memory_space<vmem>>, vector<24x384xbf16>,
    return
  }
  func.func @transform_0(%arg0: i32, %arg1: i32) -> (i32, i32) {
    %c0_i32 = arith.constant 0 : i32
    %c0_i32_0 = arith.constant 0 : i32
    return %arg0, %c0_i32 : i32, i32
  }
  func.func @transform_1(%arg0: i32, %arg1: i32) -> (i32, i32) {
    %c0_i32 = arith.constant 0 : i32
    %c0_i32_0 = arith.constant 0 : i32
    %c0_i32_1 = arith.constant 0 : i32
    return %c0_i32, %c0_i32_0 : i32, i32
  }
  func.func @transform_2(%arg0: i32, %arg1: i32) -> (i32, i32) {
    %c0_i32 = arith.constant 0 : i32
    %c0_i32_0 = arith.constant 0 : i32
    %c0_i32_1 = arith.constant 0 : i32
    return %c0_i32, %c0_i32_0 : i32, i32
  }
  func.func @transform_3(%arg0: i32, %arg1: i32) -> (i32, i32) {
    %c0_i32 = arith.constant 0 : i32
    %c0_i32_0 = arith.constant 0 : i32
    return %c0_i32, %arg1 : i32, i32
  }
  func.func @transform_4(%arg0: i32, %arg1: i32) -> (i32, i32) {
    %c0_i32 = arith.constant 0 : i32
    return %arg0, %arg1 : i32, i32
  }
}

module attributes {stable_mosaic.version = 11 : i64} {
  func.func @_attention_kernel(%arg0: i32, %arg1: memref<1x9x384xbf16, #tpu.memory_space<vmem>>, %arg2: memref<1x9x128xbf16, #tpu.memory_space<vmem>>) attributes {dimension_semantics = [#tpu.dimension_semantics<parallel>], iteration_bounds = array<i64: 2>, scalar_prefetch = 0 : i64, scratch_operands = 0 : i64, tpu.core_type = #tpu.core_type<tc>, window_params = [{transform_indices = @transform_0, window_bounds = array<i64: 1, 9, 384>}, {transform_indices = @transform_1, window_bounds = array<i64: 1, 9, 128>}]} {
    %c0 = arith.constant 0 : index
    %c0_0 = arith.constant 0 : index
    %c0_1 = arith.constant 0 : index
    %0 = vector.load %arg1[%c0, %c0_0, %c0_1] : memref<1x9x384xbf16, #tpu.memory_space<vmem>>, vector<1x9x384xbf16>
    %1 = vector.shape_cast %0 : vector<1x9x384xbf16> to vector<9x384xbf16>
    %2 = vector.extract_strided_slice %1 {offsets = [0, 0], sizes = [9, 32], strides = [1, 1]} : vector<9x384xbf16> to vector<9x32xbf16>
    %3 = vector.extract_strided_slice %1 {offsets = [0, 128], sizes = [9, 32], strides = [1, 1]} : vector<9x384xbf16> to vector<9x32xbf16>
    %4 = vector.extract_strided_slice %1 {offsets = [0, 256], sizes = [9, 32], strides = [1, 1]} : vector<9x384xbf16> to vector<9x32xbf16>
    %cst = arith.constant dense<0.000000e+00> : vector<9x9xf32>
    %5 = tpu.matmul %2, %3, %cst {dimension_numbers = #tpu.dot_dimension_numbers<[1], [1], [0], [0], [0, 0, 1, 0], [], []>} : vector<9x32xbf16>, vector<9x32xbf16>, vector<9x9xf32> -> vector<9x9xf32>
    %cst_2 = arith.constant 0.176776692 : f32
    %6 = vector.broadcast %cst_2 : f32 to vector<9x9xf32>
    %7 = arith.mulf %5, %6 : vector<9x9xf32>
    %cst_3 = arith.constant dense<0xFF800000> : vector<9xf32>
    %8 = vector.multi_reduction <maximumf>, %7, %cst_3 [1] : vector<9x9xf32> to vector<9xf32>
    %9 = vector.shape_cast %8 : vector<9xf32> to vector<9x1xf32>
    %10 = vector.broadcast %9 : vector<9x1xf32> to vector<9x9xf32>
    %11 = arith.subf %7, %10 : vector<9x9xf32>
    %12 = math.exp %11 : vector<9x9xf32>
    %cst_4 = arith.constant dense<0.000000e+00> : vector<9xf32>
    %13 = vector.multi_reduction <add>, %12, %cst_4 [1] : vector<9x9xf32> to vector<9xf32>
    %14 = vector.shape_cast %13 : vector<9xf32> to vector<9x1xf32>
    %15 = tpu.reciprocal %14 {approx = true} : vector<9x1xf32> -> vector<9x1xf32>
    %16 = vector.broadcast %15 : vector<9x1xf32> to vector<9x9xf32>
    %17 = arith.mulf %12, %16 : vector<9x9xf32>
    %18 = arith.truncf %17 : vector<9x9xf32> to vector<9x9xbf16>
    %cst_5 = arith.constant dense<0.000000e+00> : vector<9x32xf32>
    %19 = tpu.matmul %18, %4, %cst_5 {dimension_numbers = #tpu.dot_dimension_numbers<[1], [0], [0], [1], [0, 0, 1, 1], [], []>} : vector<9x9xbf16>, vector<9x32xbf16>, vector<9x32xf32> -> vector<9x32xf32>
    %20 = vector.extract_strided_slice %1 {offsets = [0, 32], sizes = [9, 32], strides = [1, 1]} : vector<9x384xbf16> to vector<9x32xbf16>
    %21 = vector.extract_strided_slice %1 {offsets = [0, 160], sizes = [9, 32], strides = [1, 1]} : vector<9x384xbf16> to vector<9x32xbf16>
    %22 = vector.extract_strided_slice %1 {offsets = [0, 288], sizes = [9, 32], strides = [1, 1]} : vector<9x384xbf16> to vector<9x32xbf16>
    %cst_6 = arith.constant dense<0.000000e+00> : vector<9x9xf32>
    %23 = tpu.matmul %20, %21, %cst_6 {dimension_numbers = #tpu.dot_dimension_numbers<[1], [1], [0], [0], [0, 0, 1, 0], [], []>} : vector<9x32xbf16>, vector<9x32xbf16>, vector<9x9xf32> -> vector<9x9xf32>
    %cst_7 = arith.constant 0.176776692 : f32
    %24 = vector.broadcast %cst_7 : f32 to vector<9x9xf32>
    %25 = arith.mulf %23, %24 : vector<9x9xf32>
    %cst_8 = arith.constant dense<0xFF800000> : vector<9xf32>
    %26 = vector.multi_reduction <maximumf>, %25, %cst_8 [1] : vector<9x9xf32> to vector<9xf32>
    %27 = vector.shape_cast %26 : vector<9xf32> to vector<9x1xf32>
    %28 = vector.broadcast %27 : vector<9x1xf32> to vector<9x9xf32>
    %29 = arith.subf %25, %28 : vector<9x9xf32>
    %30 = math.exp %29 : vector<9x9xf32>
    %cst_9 = arith.constant dense<0.000000e+00> : vector<9xf32>
    %31 = vector.multi_reduction <add>, %30, %cst_9 [1] : vector<9x9xf32> to vector<9xf32>
    %32 = vector.shape_cast %31 : vector<9xf32> to vector<9x1xf32>
    %33 = tpu.reciprocal %32 {approx = true} : vector<9x1xf32> -> vector<9x1xf32>
    %34 = vector.broadcast %33 : vector<9x1xf32> to vector<9x9xf32>
    %35 = arith.mulf %30, %34 : vector<9x9xf32>
    %36 = arith.truncf %35 : vector<9x9xf32> to vector<9x9xbf16>
    %cst_10 = arith.constant dense<0.000000e+00> : vector<9x32xf32>
    %37 = tpu.matmul %36, %22, %cst_10 {dimension_numbers = #tpu.dot_dimension_numbers<[1], [0], [0], [1], [0, 0, 1, 1], [], []>} : vector<9x9xbf16>, vector<9x32xbf16>, vector<9x32xf32> -> vector<9x32xf32>
    %38 = vector.extract_strided_slice %1 {offsets = [0, 64], sizes = [9, 32], strides = [1, 1]} : vector<9x384xbf16> to vector<9x32xbf16>
    %39 = vector.extract_strided_slice %1 {offsets = [0, 192], sizes = [9, 32], strides = [1, 1]} : vector<9x384xbf16> to vector<9x32xbf16>
    %40 = vector.extract_strided_slice %1 {offsets = [0, 320], sizes = [9, 32], strides = [1, 1]} : vector<9x384xbf16> to vector<9x32xbf16>
    %cst_11 = arith.constant dense<0.000000e+00> : vector<9x9xf32>
    %41 = tpu.matmul %38, %39, %cst_11 {dimension_numbers = #tpu.dot_dimension_numbers<[1], [1], [0], [0], [0, 0, 1, 0], [], []>} : vector<9x32xbf16>, vector<9x32xbf16>, vector<9x9xf32> -> vector<9x9xf32>
    %cst_12 = arith.constant 0.176776692 : f32
    %42 = vector.broadcast %cst_12 : f32 to vector<9x9xf32>
    %43 = arith.mulf %41, %42 : vector<9x9xf32>
    %cst_13 = arith.constant dense<0xFF800000> : vector<9xf32>
    %44 = vector.multi_reduction <maximumf>, %43, %cst_13 [1] : vector<9x9xf32> to vector<9xf32>
    %45 = vector.shape_cast %44 : vector<9xf32> to vector<9x1xf32>
    %46 = vector.broadcast %45 : vector<9x1xf32> to vector<9x9xf32>
    %47 = arith.subf %43, %46 : vector<9x9xf32>
    %48 = math.exp %47 : vector<9x9xf32>
    %cst_14 = arith.constant dense<0.000000e+00> : vector<9xf32>
    %49 = vector.multi_reduction <add>, %48, %cst_14 [1] : vector<9x9xf32> to vector<9xf32>
    %50 = vector.shape_cast %49 : vector<9xf32> to vector<9x1xf32>
    %51 = tpu.reciprocal %50 {approx = true} : vector<9x1xf32> -> vector<9x1xf32>
    %52 = vector.broadcast %51 : vector<9x1xf32> to vector<9x9xf32>
    %53 = arith.mulf %48, %52 : vector<9x9xf32>
    %54 = arith.truncf %53 : vector<9x9xf32> to vector<9x9xbf16>
    %cst_15 = arith.constant dense<0.000000e+00> : vector<9x32xf32>
    %55 = tpu.matmul %54, %40, %cst_15 {dimension_numbers = #tpu.dot_dimension_numbers<[1], [0], [0], [1], [0, 0, 1, 1], [], []>} : vector<9x9xbf16>, vector<9x32xbf16>, vector<9x32xf32> -> vector<9x32xf32>
    %56 = vector.extract_strided_slice %1 {offsets = [0, 96], sizes = [9, 32], strides = [1, 1]} : vector<9x384xbf16> to vector<9x32xbf16>
    %57 = vector.extract_strided_slice %1 {offsets = [0, 224], sizes = [9, 32], strides = [1, 1]} : vector<9x384xbf16> to vector<9x32xbf16>
    %58 = vector.extract_strided_slice %1 {offsets = [0, 352], sizes = [9, 32], strides = [1, 1]} : vector<9x384xbf16> to vector<9x32xbf16>
    %cst_16 = arith.constant dense<0.000000e+00> : vector<9x9xf32>
    %59 = tpu.matmul %56, %57, %cst_16 {dimension_numbers = #tpu.dot_dimension_numbers<[1], [1], [0], [0], [0, 0, 1, 0], [], []>} : vector<9x32xbf16>, vector<9x32xbf16>, vector<9x9xf32> -> vector<9x9xf32>
    %cst_17 = arith.constant 0.176776692 : f32
    %60 = vector.broadcast %cst_17 : f32 to vector<9x9xf32>
    %61 = arith.mulf %59, %60 : vector<9x9xf32>
    %cst_18 = arith.constant dense<0xFF800000> : vector<9xf32>
    %62 = vector.multi_reduction <maximumf>, %61, %cst_18 [1] : vector<9x9xf32> to vector<9xf32>
    %63 = vector.shape_cast %62 : vector<9xf32> to vector<9x1xf32>
    %64 = vector.broadcast %63 : vector<9x1xf32> to vector<9x9xf32>
    %65 = arith.subf %61, %64 : vector<9x9xf32>
    %66 = math.exp %65 : vector<9x9xf32>
    %cst_19 = arith.constant dense<0.000000e+00> : vector<9xf32>
    %67 = vector.multi_reduction <add>, %66, %cst_19 [1] : vector<9x9xf32> to vector<9xf32>
    %68 = vector.shape_cast %67 : vector<9xf32> to vector<9x1xf32>
    %69 = tpu.reciprocal %68 {approx = true} : vector<9x1xf32> -> vector<9x1xf32>
    %70 = vector.broadcast %69 : vector<9x1xf32> to vector<9x9xf32>
    %71 = arith.mulf %66, %70 : vector<9x9xf32>
    %72 = arith.truncf %71 : vector<9x9xf32> to vector<9x9xbf16>
    %cst_20 = arith.constant dense<0.000000e+00> : vector<9x32xf32>
    %73 = tpu.matmul %72, %58, %cst_20 {dimension_numbers = #tpu.dot_dimension_numbers<[1], [0], [0], [1], [0, 0, 1, 1], [], []>} : vector<9x9xbf16>, vector<9x32xbf16>, vector<9x32xf32> -> vector<9x32xf32>
    %74 = tpu.concatenate %19, %37, %55, %73 in 1 : vector<9x32xf32>, vector<9x32xf32>, vector<9x32xf32>, vector<9x32xf32> -> vector<9x128xf32>
    %75 = arith.truncf %74 : vector<9x128xf32> to vector<9x128xbf16>
    %c0_21 = arith.constant 0 : index
    %c0_22 = arith.constant 0 : index
    %c0_23 = arith.constant 0 : index
    %76 = vector.load %arg2[%c0_21, %c0_22, %c0_23] : memref<1x9x128xbf16, #tpu.memory_space<vmem>>, vector<1x9x128xbf16>
    %77 = vector.shape_cast %76 : vector<1x9x128xbf16> to vector<9x128xbf16>
    %78 = vector.shape_cast %75 : vector<9x128xbf16> to vector<1x9x128xbf16>
    tpu.vector_store %arg2[%c0_21, %c0_22, %c0_23], %78 {strides = array<i32>} : memref<1x9x128xbf16, #tpu.memory_space<vmem>>, vector<1x9x128xbf16>,
    return
  }
  func.func @transform_0(%arg0: i32) -> (i32, i32, i32) {
    %c0_i32 = arith.constant 0 : i32
    %c0_i32_0 = arith.constant 0 : i32
    %c0_i32_1 = arith.constant 0 : i32
    return %arg0, %c0_i32, %c0_i32_0 : i32, i32, i32
  }
  func.func @transform_1(%arg0: i32) -> (i32, i32, i32) {
    %c0_i32 = arith.constant 0 : i32
    %c0_i32_0 = arith.constant 0 : i32
    %c0_i32_1 = arith.constant 0 : i32
    return %arg0, %c0_i32, %c0_i32_0 : i32, i32, i32
  }
}

module attributes {stable_mosaic.version = 11 : i64} {
  func.func @_matmul_kernel(%arg0: i32, %arg1: i32, %arg2: i32, %arg3: memref<24x128xbf16, #tpu.memory_space<vmem>>, %arg4: memref<128x128xbf16, #tpu.memory_space<vmem>>, %arg5: memref<1x128xf32, #tpu.memory_space<vmem>>, %arg6: memref<24x128xbf16, #tpu.memory_space<vmem>>, %arg7: memref<24x128xbf16, #tpu.memory_space<vmem>>, %arg8: memref<24x128xf32, #tpu.memory_space<vmem>>) attributes {dimension_semantics = [#tpu.dimension_semantics<parallel>, #tpu.dimension_semantics<parallel>, #tpu.dimension_semantics<arbitrary>], iteration_bounds = array<i64: 1, 1, 1>, scalar_prefetch = 0 : i64, scratch_operands = 1 : i64, tpu.core_type = #tpu.core_type<tc>, window_params = [{transform_indices = @transform_0, window_bounds = array<i64: 24, 128>}, {transform_indices = @transform_1, window_bounds = array<i64: 128, 128>}, {transform_indices = @transform_2, window_bounds = array<i64: 1, 128>}, {transform_indices = @transform_3, window_bounds = array<i64: 24, 128>}, {transform_indices = @transform_4, window_bounds = array<i64: 24, 128>}]} {
    %c0_i32 = arith.constant 0 : i32
    %0 = arith.cmpi eq, %arg2, %c0_i32 : i32
    %1 = arith.extui %0 : i1 to i32
    %c0_i32_0 = arith.constant 0 : i32
    %2 = arith.cmpi ne, %1, %c0_i32_0 : i32
    scf.if %2 {
      %cst_10 = arith.constant 0.000000e+00 : f32
      %12 = vector.broadcast %cst_10 : f32 to vector<24x128xf32>
      %c0_11 = arith.constant 0 : index
      %c0_12 = arith.constant 0 : index
      %13 = vector.load %arg8[%c0_11, %c0_12] : memref<24x128xf32, #tpu.memory_space<vmem>>, vector<24x128xf32>
      tpu.vector_store %arg8[%c0_11, %c0_12], %12 {strides = array<i32>} : memref<24x128xf32, #tpu.memory_space<vmem>>, vector<24x128xf32>,
    } else {
    }
    %c0 = arith.constant 0 : index
    %c0_1 = arith.constant 0 : index
    %3 = vector.load %arg8[%c0, %c0_1] : memref<24x128xf32, #tpu.memory_space<vmem>>, vector<24x128xf32>
    %c0_2 = arith.constant 0 : index
    %c0_3 = arith.constant 0 : index
    %4 = vector.load %arg3[%c0_2, %c0_3] : memref<24x128xbf16, #tpu.memory_space<vmem>>, vector<24x128xbf16>
    %c0_4 = arith.constant 0 : index
    %c0_5 = arith.constant 0 : index
    %5 = vector.load %arg4[%c0_4, %c0_5] : memref<128x128xbf16, #tpu.memory_space<vmem>>, vector<128x128xbf16>
    %cst = arith.constant dense<0.000000e+00> : vector<24x128xf32>
    %6 = tpu.matmul %4, %5, %cst {dimension_numbers = #tpu.dot_dimension_numbers<[1], [0], [0], [1], [0, 0, 1, 1], [], []>} : vector<24x128xbf16>, vector<128x128xbf16>, vector<24x128xf32> -> vector<24x128xf32>
    %7 = arith.addf %3, %6 : vector<24x128xf32>
    %c0_6 = arith.constant 0 : index
    %c0_7 = arith.constant 0 : index
    %8 = vector.load %arg8[%c0_6, %c0_7] : memref<24x128xf32, #tpu.memory_space<vmem>>, vector<24x128xf32>
    tpu.vector_store %arg8[%c0_6, %c0_7], %7 {strides = array<i32>} : memref<24x128xf32, #tpu.memory_space<vmem>>, vector<24x128xf32>,
    %c0_i32_8 = arith.constant 0 : i32
    %9 = arith.cmpi eq, %arg2, %c0_i32_8 : i32
    %10 = arith.extui %9 : i1 to i32
    %c0_i32_9 = arith.constant 0 : i32
    %11 = arith.cmpi ne, %10, %c0_i32_9 : i32
    scf.if %11 {
      %c0_10 = arith.constant 0 : index
      %c0_11 = arith.constant 0 : index
      %12 = vector.load %arg8[%c0_10, %c0_11] : memref<24x128xf32, #tpu.memory_space<vmem>>, vector<24x128xf32>
      %c0_12 = arith.constant 0 : index
      %c0_13 = arith.constant 0 : index
      %13 = vector.load %arg5[%c0_12, %c0_13] : memref<1x128xf32, #tpu.memory_space<vmem>>, vector<1x128xf32>
      %14 = vector.broadcast %13 : vector<1x128xf32> to vector<24x128xf32>
      %15 = arith.addf %12, %14 : vector<24x128xf32>
      %c0_14 = arith.constant 0 : index
      %c0_15 = arith.constant 0 : index
      %16 = vector.load %arg6[%c0_14, %c0_15] : memref<24x128xbf16, #tpu.memory_space<vmem>>, vector<24x128xbf16>
      %17 = arith.extf %16 : vector<24x128xbf16> to vector<24x128xf32>
      %18 = arith.addf %15, %17 : vector<24x128xf32>
      %19 = arith.truncf %18 : vector<24x128xf32> to vector<24x128xbf16>
      %c0_16 = arith.constant 0 : index
      %c0_17 = arith.constant 0 : index
      %20 = vector.load %arg7[%c0_16, %c0_17] : memref<24x128xbf16, #tpu.memory_space<vmem>>, vector<24x128xbf16>
      tpu.vector_store %arg7[%c0_16, %c0_17], %19 {strides = array<i32>} : memref<24x128xbf16, #tpu.memory_space<vmem>>, vector<24x128xbf16>,
    } else {
    }
    return
  }
  func.func @transform_0(%arg0: i32, %arg1: i32, %arg2: i32) -> (i32, i32) {
    %c0_i32 = arith.constant 0 : i32
    return %arg0, %arg2 : i32, i32
  }
  func.func @transform_1(%arg0: i32, %arg1: i32, %arg2: i32) -> (i32, i32) {
    %c0_i32 = arith.constant 0 : i32
    return %arg2, %arg1 : i32, i32
  }
  func.func @transform_2(%arg0: i32, %arg1: i32, %arg2: i32) -> (i32, i32) {
    %c0_i32 = arith.constant 0 : i32
    %c0_i32_0 = arith.constant 0 : i32
    return %c0_i32, %arg1 : i32, i32
  }
  func.func @transform_3(%arg0: i32, %arg1: i32, %arg2: i32) -> (i32, i32) {
    %c0_i32 = arith.constant 0 : i32
    return %arg0, %arg1 : i32, i32
  }
  func.func @transform_4(%arg0: i32, %arg1: i32, %arg2: i32) -> (i32, i32) {
    %c0_i32 = arith.constant 0 : i32
    return %arg0, %arg1 : i32, i32
  }
}

module attributes {stable_mosaic.version = 11 : i64} {
  func.func @_mlp_kernel(%arg0: i32, %arg1: i32, %arg2: memref<24x128xbf16, #tpu.memory_space<vmem>>, %arg3: memref<1x128xf32, #tpu.memory_space<vmem>>, %arg4: memref<1x128xf32, #tpu.memory_space<vmem>>, %arg5: memref<128x512xbf16, #tpu.memory_space<vmem>>, %arg6: memref<1x512xf32, #tpu.memory_space<vmem>>, %arg7: memref<512x128xbf16, #tpu.memory_space<vmem>>, %arg8: memref<1x128xf32, #tpu.memory_space<vmem>>, %arg9: memref<24x128xbf16, #tpu.memory_space<vmem>>, %arg10: memref<24x128xf32, #tpu.memory_space<vmem>>, %arg11: memref<24x128xbf16, #tpu.memory_space<vmem>>) attributes {dimension_semantics = [#tpu.dimension_semantics<parallel>, #tpu.dimension_semantics<arbitrary>], iteration_bounds = array<i64: 1, 1>, scalar_prefetch = 0 : i64, scratch_operands = 2 : i64, tpu.core_type = #tpu.core_type<tc>, window_params = [{transform_indices = @transform_0, window_bounds = array<i64: 24, 128>}, {pipeline_mode = #tpu.pipeline_mode<synchronous>, transform_indices = @transform_1, window_bounds = array<i64: 1, 128>}, {pipeline_mode = #tpu.pipeline_mode<synchronous>, transform_indices = @transform_2, window_bounds = array<i64: 1, 128>}, {transform_indices = @transform_3, window_bounds = array<i64: 128, 512>}, {transform_indices = @transform_4, window_bounds = array<i64: 1, 512>}, {transform_indices = @transform_5, window_bounds = array<i64: 512, 128>}, {pipeline_mode = #tpu.pipeline_mode<synchronous>, transform_indices = @transform_6, window_bounds = array<i64: 1, 128>}, {transform_indices = @transform_7, window_bounds = array<i64: 24, 128>}]} {
    %c0_i32 = arith.constant 0 : i32
    %0 = arith.cmpi eq, %arg1, %c0_i32 : i32
    %1 = arith.extui %0 : i1 to i32
    %c0_i32_0 = arith.constant 0 : i32
    %2 = arith.cmpi ne, %1, %c0_i32_0 : i32
    scf.if %2 {
      %c0_19 = arith.constant 0 : index
      %c0_20 = arith.constant 0 : index
      %31 = vector.load %arg2[%c0_19, %c0_20] : memref<24x128xbf16, #tpu.memory_space<vmem>>, vector<24x128xbf16>
      %32 = arith.extf %31 : vector<24x128xbf16> to vector<24x128xf32>
      %cst_21 = arith.constant dense<0.000000e+00> : vector<24xf32>
      %33 = vector.multi_reduction <add>, %32, %cst_21 [1] : vector<24x128xf32> to vector<24xf32>
      %34 = vector.shape_cast %33 : vector<24xf32> to vector<24x1xf32>
      %cst_22 = arith.constant 1.280000e+02 : f32
      %35 = vector.broadcast %cst_22 : f32 to vector<24x1xf32>
      %36 = arith.divf %34, %35 : vector<24x1xf32>
      %37 = vector.broadcast %36 : vector<24x1xf32> to vector<24x128xf32>
      %38 = arith.subf %32, %37 : vector<24x128xf32>
      %39 = arith.mulf %38, %38 : vector<24x128xf32>
      %cst_23 = arith.constant dense<0.000000e+00> : vector<24xf32>
      %40 = vector.multi_reduction <add>, %39, %cst_23 [1] : vector<24x128xf32> to vector<24xf32>
      %41 = vector.shape_cast %40 : vector<24xf32> to vector<24x1xf32>
      %cst_24 = arith.constant 1.280000e+02 : f32
      %42 = vector.broadcast %cst_24 : f32 to vector<24x1xf32>
      %43 = arith.divf %41, %42 : vector<24x1xf32>
      %44 = vector.broadcast %36 : vector<24x1xf32> to vector<24x128xf32>
      %45 = arith.subf %32, %44 : vector<24x128xf32>
      %cst_25 = arith.constant 9.99999974E-6 : f32
      %46 = vector.broadcast %cst_25 : f32 to vector<24x1xf32>
      %47 = arith.addf %43, %46 : vector<24x1xf32>
      %48 = math.rsqrt %47 : vector<24x1xf32>
      %49 = vector.broadcast %48 : vector<24x1xf32> to vector<24x128xf32>
      %50 = arith.mulf %45, %49 : vector<24x128xf32>
      %c0_26 = arith.constant 0 : index
      %c0_27 = arith.constant 0 : index
      %51 = vector.load %arg3[%c0_26, %c0_27] : memref<1x128xf32, #tpu.memory_space<vmem>>, vector<1x128xf32>
      %52 = vector.broadcast %51 : vector<1x128xf32> to vector<24x128xf32>
      %53 = arith.mulf %50, %52 : vector<24x128xf32>
      %c0_28 = arith.constant 0 : index
      %c0_29 = arith.constant 0 : index
      %54 = vector.load %arg4[%c0_28, %c0_29] : memref<1x128xf32, #tpu.memory_space<vmem>>, vector<1x128xf32>
      %55 = vector.broadcast %54 : vector<1x128xf32> to vector<24x128xf32>
      %56 = arith.addf %53, %55 : vector<24x128xf32>
      %57 = arith.truncf %56 : vector<24x128xf32> to vector<24x128xbf16>
      %c0_30 = arith.constant 0 : index
      %c0_31 = arith.constant 0 : index
      %58 = vector.load %arg11[%c0_30, %c0_31] : memref<24x128xbf16, #tpu.memory_space<vmem>>, vector<24x128xbf16>
      tpu.vector_store %arg11[%c0_30, %c0_31], %57 {strides = array<i32>} : memref<24x128xbf16, #tpu.memory_space<vmem>>, vector<24x128xbf16>,
      %cst_32 = arith.constant 0.000000e+00 : f32
      %59 = vector.broadcast %cst_32 : f32 to vector<24x128xf32>
      %c0_33 = arith.constant 0 : index
      %c0_34 = arith.constant 0 : index
      %60 = vector.load %arg10[%c0_33, %c0_34] : memref<24x128xf32, #tpu.memory_space<vmem>>, vector<24x128xf32>
      tpu.vector_store %arg10[%c0_33, %c0_34], %59 {strides = array<i32>} : memref<24x128xf32, #tpu.memory_space<vmem>>, vector<24x128xf32>,
    } else {
    }
    %c0 = arith.constant 0 : index
    %c0_1 = arith.constant 0 : index
    %3 = vector.load %arg11[%c0, %c0_1] : memref<24x128xbf16, #tpu.memory_space<vmem>>, vector<24x128xbf16>
    %c0_2 = arith.constant 0 : index
    %c0_3 = arith.constant 0 : index
    %4 = vector.load %arg5[%c0_2, %c0_3] : memref<128x512xbf16, #tpu.memory_space<vmem>>, vector<128x512xbf16>
    %cst = arith.constant dense<0.000000e+00> : vector<24x512xf32>
    %5 = tpu.matmul %3, %4, %cst {dimension_numbers = #tpu.dot_dimension_numbers<[1], [0], [0], [1], [0, 0, 1, 1], [], []>} : vector<24x128xbf16>, vector<128x512xbf16>, vector<24x512xf32> -> vector<24x512xf32>
    %c0_4 = arith.constant 0 : index
    %c0_5 = arith.constant 0 : index
    %6 = vector.load %arg6[%c0_4, %c0_5] : memref<1x512xf32, #tpu.memory_space<vmem>>, vector<1x512xf32>
    %7 = vector.broadcast %6 : vector<1x512xf32> to vector<24x512xf32>
    %8 = arith.addf %5, %7 : vector<24x512xf32>
    %9 = arith.mulf %8, %8 : vector<24x512xf32>
    %10 = arith.mulf %8, %9 : vector<24x512xf32>
    %cst_6 = arith.constant 4.471500e-02 : f32
    %11 = vector.broadcast %cst_6 : f32 to vector<24x512xf32>
    %12 = arith.mulf %11, %10 : vector<24x512xf32>
    %13 = arith.addf %8, %12 : vector<24x512xf32>
    %cst_7 = arith.constant 0.797884583 : f32
    %14 = vector.broadcast %cst_7 : f32 to vector<24x512xf32>
    %15 = arith.mulf %14, %13 : vector<24x512xf32>
    %16 = math.tanh %15 : vector<24x512xf32>
    %cst_8 = arith.constant 1.000000e+00 : f32
    %17 = vector.broadcast %cst_8 : f32 to vector<24x512xf32>
    %18 = arith.addf %17, %16 : vector<24x512xf32>
    %cst_9 = arith.constant 5.000000e-01 : f32
    %19 = vector.broadcast %cst_9 : f32 to vector<24x512xf32>
    %20 = arith.mulf %19, %18 : vector<24x512xf32>
    %21 = arith.mulf %8, %20 : vector<24x512xf32>
    %c0_10 = arith.constant 0 : index
    %c0_11 = arith.constant 0 : index
    %22 = vector.load %arg10[%c0_10, %c0_11] : memref<24x128xf32, #tpu.memory_space<vmem>>, vector<24x128xf32>
    %23 = arith.truncf %21 : vector<24x512xf32> to vector<24x512xbf16>
    %c0_12 = arith.constant 0 : index
    %c0_13 = arith.constant 0 : index
    %24 = vector.load %arg7[%c0_12, %c0_13] : memref<512x128xbf16, #tpu.memory_space<vmem>>, vector<512x128xbf16>
    %cst_14 = arith.constant dense<0.000000e+00> : vector<24x128xf32>
    %25 = tpu.matmul %23, %24, %cst_14 {dimension_numbers = #tpu.dot_dimension_numbers<[1], [0], [0], [1], [0, 0, 1, 1], [], []>} : vector<24x512xbf16>, vector<512x128xbf16>, vector<24x128xf32> -> vector<24x128xf32>
    %26 = arith.addf %22, %25 : vector<24x128xf32>
    %c0_15 = arith.constant 0 : index
    %c0_16 = arith.constant 0 : index
    %27 = vector.load %arg10[%c0_15, %c0_16] : memref<24x128xf32, #tpu.memory_space<vmem>>, vector<24x128xf32>
    tpu.vector_store %arg10[%c0_15, %c0_16], %26 {strides = array<i32>} : memref<24x128xf32, #tpu.memory_space<vmem>>, vector<24x128xf32>,
    %c0_i32_17 = arith.constant 0 : i32
    %28 = arith.cmpi eq, %arg1, %c0_i32_17 : i32
    %29 = arith.extui %28 : i1 to i32
    %c0_i32_18 = arith.constant 0 : i32
    %30 = arith.cmpi ne, %29, %c0_i32_18 : i32
    scf.if %30 {
      %c0_19 = arith.constant 0 : index
      %c0_20 = arith.constant 0 : index
      %31 = vector.load %arg10[%c0_19, %c0_20] : memref<24x128xf32, #tpu.memory_space<vmem>>, vector<24x128xf32>
      %c0_21 = arith.constant 0 : index
      %c0_22 = arith.constant 0 : index
      %32 = vector.load %arg8[%c0_21, %c0_22] : memref<1x128xf32, #tpu.memory_space<vmem>>, vector<1x128xf32>
      %33 = vector.broadcast %32 : vector<1x128xf32> to vector<24x128xf32>
      %34 = arith.addf %31, %33 : vector<24x128xf32>
      %c0_23 = arith.constant 0 : index
      %c0_24 = arith.constant 0 : index
      %35 = vector.load %arg2[%c0_23, %c0_24] : memref<24x128xbf16, #tpu.memory_space<vmem>>, vector<24x128xbf16>
      %36 = arith.extf %35 : vector<24x128xbf16> to vector<24x128xf32>
      %37 = arith.addf %34, %36 : vector<24x128xf32>
      %38 = arith.truncf %37 : vector<24x128xf32> to vector<24x128xbf16>
      %c0_25 = arith.constant 0 : index
      %c0_26 = arith.constant 0 : index
      %39 = vector.load %arg9[%c0_25, %c0_26] : memref<24x128xbf16, #tpu.memory_space<vmem>>, vector<24x128xbf16>
      tpu.vector_store %arg9[%c0_25, %c0_26], %38 {strides = array<i32>} : memref<24x128xbf16, #tpu.memory_space<vmem>>, vector<24x128xbf16>,
    } else {
    }
    return
  }
  func.func @transform_0(%arg0: i32, %arg1: i32) -> (i32, i32) {
    %c0_i32 = arith.constant 0 : i32
    %c0_i32_0 = arith.constant 0 : i32
    return %arg0, %c0_i32 : i32, i32
  }
  func.func @transform_1(%arg0: i32, %arg1: i32) -> (i32, i32) {
    %c0_i32 = arith.constant 0 : i32
    %c0_i32_0 = arith.constant 0 : i32
    %c0_i32_1 = arith.constant 0 : i32
    return %c0_i32, %c0_i32_0 : i32, i32
  }
  func.func @transform_2(%arg0: i32, %arg1: i32) -> (i32, i32) {
    %c0_i32 = arith.constant 0 : i32
    %c0_i32_0 = arith.constant 0 : i32
    %c0_i32_1 = arith.constant 0 : i32
    return %c0_i32, %c0_i32_0 : i32, i32
  }
  func.func @transform_3(%arg0: i32, %arg1: i32) -> (i32, i32) {
    %c0_i32 = arith.constant 0 : i32
    %c0_i32_0 = arith.constant 0 : i32
    return %c0_i32, %arg1 : i32, i32
  }
  func.func @transform_4(%arg0: i32, %arg1: i32) -> (i32, i32) {
    %c0_i32 = arith.constant 0 : i32
    %c0_i32_0 = arith.constant 0 : i32
    return %c0_i32, %arg1 : i32, i32
  }
  func.func @transform_5(%arg0: i32, %arg1: i32) -> (i32, i32) {
    %c0_i32 = arith.constant 0 : i32
    %c0_i32_0 = arith.constant 0 : i32
    return %arg1, %c0_i32 : i32, i32
  }
  func.func @transform_6(%arg0: i32, %arg1: i32) -> (i32, i32) {
    %c0_i32 = arith.constant 0 : i32
    %c0_i32_0 = arith.constant 0 : i32
    %c0_i32_1 = arith.constant 0 : i32
    return %c0_i32, %c0_i32_0 : i32, i32
  }
  func.func @transform_7(%arg0: i32, %arg1: i32) -> (i32, i32) {
    %c0_i32 = arith.constant 0 : i32
    %c0_i32_0 = arith.constant 0 : i32
    return %arg0, %c0_i32 : i32, i32
  }
}

module attributes {stable_mosaic.version = 11 : i64} {
  func.func @_ln_linear_kernel(%arg0: i32, %arg1: i32, %arg2: memref<8x128xbf16, #tpu.memory_space<vmem>>, %arg3: memref<1x128xf32, #tpu.memory_space<vmem>>, %arg4: memref<1x128xf32, #tpu.memory_space<vmem>>, %arg5: memref<128x128xbf16, #tpu.memory_space<vmem>>, %arg6: memref<1x128xf32, #tpu.memory_space<vmem>>, %arg7: memref<8x128xf32, #tpu.memory_space<vmem>>) attributes {dimension_semantics = [#tpu.dimension_semantics<parallel>, #tpu.dimension_semantics<parallel>], iteration_bounds = array<i64: 1, 1>, scalar_prefetch = 0 : i64, scratch_operands = 0 : i64, tpu.core_type = #tpu.core_type<tc>, window_params = [{transform_indices = @transform_0, window_bounds = array<i64: 8, 128>}, {pipeline_mode = #tpu.pipeline_mode<synchronous>, transform_indices = @transform_1, window_bounds = array<i64: 1, 128>}, {pipeline_mode = #tpu.pipeline_mode<synchronous>, transform_indices = @transform_2, window_bounds = array<i64: 1, 128>}, {transform_indices = @transform_3, window_bounds = array<i64: 128, 128>}, {transform_indices = @transform_4, window_bounds = array<i64: 1, 128>}, {transform_indices = @transform_5, window_bounds = array<i64: 8, 128>}]} {
    %c0 = arith.constant 0 : index
    %c0_0 = arith.constant 0 : index
    %0 = vector.load %arg2[%c0, %c0_0] : memref<8x128xbf16, #tpu.memory_space<vmem>>, vector<8x128xbf16>
    %1 = arith.extf %0 : vector<8x128xbf16> to vector<8x128xf32>
    %cst = arith.constant dense<0.000000e+00> : vector<8xf32>
    %2 = vector.multi_reduction <add>, %1, %cst [1] : vector<8x128xf32> to vector<8xf32>
    %3 = vector.shape_cast %2 : vector<8xf32> to vector<8x1xf32>
    %cst_1 = arith.constant 1.280000e+02 : f32
    %4 = vector.broadcast %cst_1 : f32 to vector<8x1xf32>
    %5 = arith.divf %3, %4 : vector<8x1xf32>
    %6 = vector.broadcast %5 : vector<8x1xf32> to vector<8x128xf32>
    %7 = arith.subf %1, %6 : vector<8x128xf32>
    %8 = arith.mulf %7, %7 : vector<8x128xf32>
    %cst_2 = arith.constant dense<0.000000e+00> : vector<8xf32>
    %9 = vector.multi_reduction <add>, %8, %cst_2 [1] : vector<8x128xf32> to vector<8xf32>
    %10 = vector.shape_cast %9 : vector<8xf32> to vector<8x1xf32>
    %cst_3 = arith.constant 1.280000e+02 : f32
    %11 = vector.broadcast %cst_3 : f32 to vector<8x1xf32>
    %12 = arith.divf %10, %11 : vector<8x1xf32>
    %13 = vector.broadcast %5 : vector<8x1xf32> to vector<8x128xf32>
    %14 = arith.subf %1, %13 : vector<8x128xf32>
    %cst_4 = arith.constant 9.99999974E-6 : f32
    %15 = vector.broadcast %cst_4 : f32 to vector<8x1xf32>
    %16 = arith.addf %12, %15 : vector<8x1xf32>
    %17 = math.rsqrt %16 : vector<8x1xf32>
    %18 = vector.broadcast %17 : vector<8x1xf32> to vector<8x128xf32>
    %19 = arith.mulf %14, %18 : vector<8x128xf32>
    %c0_5 = arith.constant 0 : index
    %c0_6 = arith.constant 0 : index
    %20 = vector.load %arg3[%c0_5, %c0_6] : memref<1x128xf32, #tpu.memory_space<vmem>>, vector<1x128xf32>
    %21 = vector.broadcast %20 : vector<1x128xf32> to vector<8x128xf32>
    %22 = arith.mulf %19, %21 : vector<8x128xf32>
    %c0_7 = arith.constant 0 : index
    %c0_8 = arith.constant 0 : index
    %23 = vector.load %arg4[%c0_7, %c0_8] : memref<1x128xf32, #tpu.memory_space<vmem>>, vector<1x128xf32>
    %24 = vector.broadcast %23 : vector<1x128xf32> to vector<8x128xf32>
    %25 = arith.addf %22, %24 : vector<8x128xf32>
    %26 = arith.truncf %25 : vector<8x128xf32> to vector<8x128xbf16>
    %c0_9 = arith.constant 0 : index
    %c0_10 = arith.constant 0 : index
    %27 = vector.load %arg5[%c0_9, %c0_10] : memref<128x128xbf16, #tpu.memory_space<vmem>>, vector<128x128xbf16>
    %cst_11 = arith.constant dense<0.000000e+00> : vector<8x128xf32>
    %28 = tpu.matmul %26, %27, %cst_11 {dimension_numbers = #tpu.dot_dimension_numbers<[1], [0], [0], [1], [0, 0, 1, 1], [], []>} : vector<8x128xbf16>, vector<128x128xbf16>, vector<8x128xf32> -> vector<8x128xf32>
    %c0_12 = arith.constant 0 : index
    %c0_13 = arith.constant 0 : index
    %29 = vector.load %arg6[%c0_12, %c0_13] : memref<1x128xf32, #tpu.memory_space<vmem>>, vector<1x128xf32>
    %30 = vector.broadcast %29 : vector<1x128xf32> to vector<8x128xf32>
    %31 = arith.addf %28, %30 : vector<8x128xf32>
    %c0_14 = arith.constant 0 : index
    %c0_15 = arith.constant 0 : index
    %32 = vector.load %arg7[%c0_14, %c0_15] : memref<8x128xf32, #tpu.memory_space<vmem>>, vector<8x128xf32>
    tpu.vector_store %arg7[%c0_14, %c0_15], %31 {strides = array<i32>} : memref<8x128xf32, #tpu.memory_space<vmem>>, vector<8x128xf32>,
    return
  }
  func.func @transform_0(%arg0: i32, %arg1: i32) -> (i32, i32) {
    %c0_i32 = arith.constant 0 : i32
    %c0_i32_0 = arith.constant 0 : i32
    return %arg0, %c0_i32 : i32, i32
  }
  func.func @transform_1(%arg0: i32, %arg1: i32) -> (i32, i32) {
    %c0_i32 = arith.constant 0 : i32
    %c0_i32_0 = arith.constant 0 : i32
    %c0_i32_1 = arith.constant 0 : i32
    return %c0_i32, %c0_i32_0 : i32, i32
  }
  func.func @transform_2(%arg0: i32, %arg1: i32) -> (i32, i32) {
    %c0_i32 = arith.constant 0 : i32
    %c0_i32_0 = arith.constant 0 : i32
    %c0_i32_1 = arith.constant 0 : i32
    return %c0_i32, %c0_i32_0 : i32, i32
  }
  func.func @transform_3(%arg0: i32, %arg1: i32) -> (i32, i32) {
    %c0_i32 = arith.constant 0 : i32
    %c0_i32_0 = arith.constant 0 : i32
    return %c0_i32, %arg1 : i32, i32
  }
  func.func @transform_4(%arg0: i32, %arg1: i32) -> (i32, i32) {
    %c0_i32 = arith.constant 0 : i32
    %c0_i32_0 = arith.constant 0 : i32
    return %c0_i32, %arg1 : i32, i32
  }
  func.func @transform_5(%arg0: i32, %arg1: i32) -> (i32, i32) {
    %c0_i32 = arith.constant 0 : i32
    return %arg0, %arg1 : i32, i32
  }
}

</mosaic_0001>

<llo_original>
// kernel: vit_forward.10
$region0: #{vit_forward.10}
  #allocation0 [shape = 'u32[]', space=smem, size = 0x4, offset = 0x4, fixed_abs, tag = 'smem constant byte address 0x4 - core index']
  #allocation1 [shape = 'u32[144,128]{1,0:T(1,128)}', space=vmem, size = 0x12000, scoped, tag = 'internal scratch']
  #allocation2 [shape = 'f32[16,128]{1,0:T(8,128)}', space=vmem, size = 0x2000, scoped, tag = 'scratch operand']
  %s0 = inlined_call_operand.vmem [shape: bf16[16,256], index: 0, kind: input, shape index: {}]
  %s1 = inlined_call_operand.vmem [shape: bf16[256,128], index: 1, kind: input, shape index: {}]
  %s2 = inlined_call_operand.vmem [shape: f32[1,128], index: 2, kind: input, shape index: {}]
  %s3 = inlined_call_operand.vmem [shape: bf16[16,128], index: 3, kind: output, shape index: {}]
  %s4 = sld [smem:[#allocation0]]
  $region30: #{vit_forward.10} parent=0
    _
  %s6 = ssub.s32 1, %s4
  %s7 = scalar_select 0, %s6, %s4
  // Predicated region
  $region2: #{vit_forward.10} parent=0 // pred_check
    _
  $region3: #{vit_forward.10} parent=0 // pred_check_branch
    %9 = sbr.rel (0) target = $region5
  $region4: #{vit_forward.10} parent=0 // pred_region
    _
  $region5: #{vit_forward.10} parent=0 // pred_fallthru
    _
  // Predicated region
  $region6: #{vit_forward.10} parent=0 // pred_check
    _
  $region7: #{vit_forward.10} parent=0 // pred_check_branch
    %11 = sbr.rel (0) target = $region9
  $region8: #{vit_forward.10} parent=0 // pred_region
    _
  $region9: #{vit_forward.10} parent=0 // pred_fallthru
    _
  // Predicated region
  $region10: #{vit_forward.10} parent=0 // pred_check
    _
  $region11: #{vit_forward.10} parent=0 // pred_check_branch
    %13 = sbr.rel (0) target = $region13
  $region12: #{vit_forward.10} parent=0 // pred_region
    _
  $region13: #{vit_forward.10} parent=0 // pred_fallthru
    _
  %p15 = scmp.eq.s32.totalorder 0, 0
  // Predicated region
  $region14: #{vit_forward.10} parent=0 // pred_check
    %p16 = pneg %p15
  $region15: #{vit_forward.10} parent=0 // pred_check_branch
    %18 = sbr.rel (%p16) target = $region17
  $region16: #{vit_forward.10} parent=0 // pred_region
    %19 = vst [vmem:[#allocation2] sm:$0xff] 0.0
    %20 = vst [vmem:[#allocation2 + $0x8] sm:$0xff] 0.0
  $region17: #{vit_forward.10} parent=0 // pred_fallthru
    _
  %v21 = vld [vmem:[#allocation2] sm:$0xff]
  %v22 = vld [vmem:[#allocation2 + $0x8] sm:$0xff]
  %v23 = vld [vmem:[%s0] sm:$0xff]
  %v24 = vld [vmem:[%s0 + $0x8] sm:$0xff]
  %v25 = vld [vmem:[%s1] sm:$0xf]
  %v26 = vld [vmem:[%s1 + $0x4] sm:$0xf]
  %v27 = vld [vmem:[%s1 + $0x8] sm:$0xf]
  %v28 = vld [vmem:[%s1 + $0xc] sm:$0xf]
  %v29 = vld [vmem:[%s1 + $0x10] sm:$0xf]
  %v30 = vld [vmem:[%s1 + $0x14] sm:$0xf]
  %v31 = vld [vmem:[%s1 + $0x18] sm:$0xf]
  %v32 = vld [vmem:[%s1 + $0x1c] sm:$0xf]
  %v33 = vld [vmem:[%s1 + $0x20] sm:$0xf]
  %v34 = vld [vmem:[%s1 + $0x24] sm:$0xf]
  %v35 = vld [vmem:[%s1 + $0x28] sm:$0xf]
  %v36 = vld [vmem:[%s1 + $0x2c] sm:$0xf]
  %v37 = vld [vmem:[%s1 + $0x30] sm:$0xf]
  %v38 = vld [vmem:[%s1 + $0x34] sm:$0xf]
  %v39 = vld [vmem:[%s1 + $0x38] sm:$0xf]
  %v40 = vld [vmem:[%s1 + $0x3c] sm:$0xf]
  %v41 = vld [vmem:[%s1 + $0x40] sm:$0xf]
  %v42 = vld [vmem:[%s1 + $0x44] sm:$0xf]
  %v43 = vld [vmem:[%s1 + $0x48] sm:$0xf]
  %v44 = vld [vmem:[%s1 + $0x4c] sm:$0xf]
  %v45 = vld [vmem:[%s1 + $0x50] sm:$0xf]
  %v46 = vld [vmem:[%s1 + $0x54] sm:$0xf]
  %v47 = vld [vmem:[%s1 + $0x58] sm:$0xf]
  %v48 = vld [vmem:[%s1 + $0x5c] sm:$0xf]
  %v49 = vld [vmem:[%s1 + $0x60] sm:$0xf]
  %v50 = vld [vmem:[%s1 + $0x64] sm:$0xf]
  %v51 = vld [vmem:[%s1 + $0x68] sm:$0xf]
  %v52 = vld [vmem:[%s1 + $0x6c] sm:$0xf]
  %v53 = vld [vmem:[%s1 + $0x70] sm:$0xf]
  %v54 = vld [vmem:[%s1 + $0x74] sm:$0xf]
  %v55 = vld [vmem:[%s1 + $0x78] sm:$0xf]
  %v56 = vld [vmem:[%s1 + $0x7c] sm:$0xf]
  %v59 = vunpack.c.l.b16 %v23
  %v60 = vunpack.c.h.b16 %v23
  %v61 = vunpack.c.l.b16 %v24
  %v62 = vunpack.c.h.b16 %v24
  %v63 = vpack.c.b16 %v61, %v59
  %v64 = vpack.c.b16 %v62, %v60
  %v99 = vunpack.c.l.b16 %v25
  %v100 = vunpack.c.l.b16 %v26
  %v101 = vunpack.c.l.b16 %v27
  %v102 = vunpack.c.l.b16 %v28
  %v103 = vunpack.c.l.b16 %v29
  %v104 = vunpack.c.l.b16 %v30
  %v105 = vunpack.c.l.b16 %v31
  %v106 = vunpack.c.l.b16 %v32
  %v107 = vunpack.c.l.b16 %v33
  %v108 = vunpack.c.l.b16 %v34
  %v109 = vunpack.c.l.b16 %v35
  %v110 = vunpack.c.l.b16 %v36
  %v111 = vunpack.c.l.b16 %v37
  %v112 = vunpack.c.l.b16 %v38
  %v113 = vunpack.c.l.b16 %v39
  %v114 = vunpack.c.l.b16 %v40
  %v115 = vunpack.c.l.b16 %v41
  %v116 = vunpack.c.l.b16 %v42
  %v117 = vunpack.c.l.b16 %v43
  %v118 = vunpack.c.l.b16 %v44
  %v119 = vunpack.c.l.b16 %v45
  %v120 = vunpack.c.l.b16 %v46
  %v121 = vunpack.c.l.b16 %v47
  %v122 = vunpack.c.l.b16 %v48
  %v123 = vunpack.c.l.b16 %v49
  %v124 = vunpack.c.l.b16 %v50
  %v125 = vunpack.c.l.b16 %v51
  %v126 = vunpack.c.l.b16 %v52
  %v127 = vunpack.c.l.b16 %v53
  %v128 = vunpack.c.l.b16 %v54
  %v129 = vunpack.c.l.b16 %v55
  %v130 = vunpack.c.l.b16 %v56
  %v131 = vpack.c.b16 %v100, %v99
  %v132 = vpack.c.b16 %v102, %v101
  %v133 = vpack.c.b16 %v104, %v103
  %v134 = vpack.c.b16 %v106, %v105
  %v135 = vpack.c.b16 %v108, %v107
  %v136 = vpack.c.b16 %v110, %v109
  %v137 = vpack.c.b16 %v112, %v111
  %v138 = vpack.c.b16 %v114, %v113
  %v139 = vpack.c.b16 %v116, %v115
  %v140 = vpack.c.b16 %v118, %v117
  %v141 = vpack.c.b16 %v120, %v119
  %v142 = vpack.c.b16 %v122, %v121
  %v143 = vpack.c.b16 %v124, %v123
  %v144 = vpack.c.b16 %v126, %v125
  %v145 = vpack.c.b16 %v128, %v127
  %v146 = vpack.c.b16 %v130, %v129
  %163 = vmatprep.subr.bf16.mxu0 0
  %164 = vmatpush1.bf16.msra.mxu0 %v131
  %165 = vmatprep.subr.bf16.mxu0 0
  %166 = vmatpush1.bf16.msra.mxu0 %v132
  %167 = vmatprep.subr.bf16.mxu0 0
  %168 = vmatpush1.bf16.msra.mxu0 %v133
  %169 = vmatprep.subr.bf16.mxu0 0
  %170 = vmatpush1.bf16.msra.mxu0 %v134
  %171 = vmatprep.subr.bf16.mxu0 0
  %172 = vmatpush1.bf16.msra.mxu0 %v135
  %173 = vmatprep.subr.bf16.mxu0 0
  %174 = vmatpush1.bf16.msra.mxu0 %v136
  %175 = vmatprep.subr.bf16.mxu0 0
  %176 = vmatpush1.bf16.msra.mxu0 %v137
  %177 = vmatprep.subr.bf16.mxu0 0
  %178 = vmatpush1.bf16.msra.mxu0 %v138
  %179 = vmatprep.subr.bf16.mxu0 0
  %180 = vmatpush1.bf16.msra.mxu0 %v139
  %181 = vmatprep.subr.bf16.mxu0 0
  %182 = vmatpush1.bf16.msra.mxu0 %v140
  %183 = vmatprep.subr.bf16.mxu0 0
  %184 = vmatpush1.bf16.msra.mxu0 %v141
  %185 = vmatprep.subr.bf16.mxu0 0
  %186 = vmatpush1.bf16.msra.mxu0 %v142
  %187 = vmatprep.subr.bf16.mxu0 0
  %188 = vmatpush1.bf16.msra.mxu0 %v143
  %189 = vmatprep.subr.bf16.mxu0 0
  %190 = vmatpush1.bf16.msra.mxu0 %v144
  %191 = vmatprep.subr.bf16.mxu0 0
  %192 = vmatpush1.bf16.msra.mxu0 %v145
  %193 = vmatprep.subr.bf16.mxu0 0
  %194 = vmatpush1.bf16.msra.mxu0 %v146
  %195 = vmatprep.mubr.bf16.mxu0 %v64
  %196 = vmatmul.mubr.bf16.gmra.mrb[0].mxu0 %v63
  %v197 = vpop.f32.mrb[0].mxu0
  %v198 = vadd.f32 0.0, %v197
  %v199 = vpop.f32.mrb[0].mxu0
  %v200 = vpop.f32.mrb[0].mxu0
  %v201 = vadd.f32 0.0, %v200
  %v202 = vpop.f32.mrb[0].mxu0
  %203 = vdwg.mxu0
  %v204 = vadd.f32 %v21, %v198
  %v205 = vadd.f32 %v22, %v201
  %206 = vst [vmem:[#allocation2] sm:$0xff] %v204
  %207 = vst [vmem:[#allocation2 + $0x8] sm:$0xff] %v205
  // Predicated region
  $region18: #{vit_forward.10} parent=0 // pred_check
    %p208 = pneg %p15
  $region19: #{vit_forward.10} parent=0 // pred_check_branch
    %210 = sbr.rel (%p208) target = $region21
  $region20: #{vit_forward.10} parent=0 // pred_region
    %v211 = vld [vmem:[#allocation2] sm:$0xff]
    %v212 = vld [vmem:[#allocation2 + $0x8] sm:$0xff]
    %v213 = vld [vmem:[%s2] sm:$0x1]
    %v215 = vlaneseq
    %v216 = vshrl.u32 %v215, 7
    %v217 = vsub.s32 0, %v216
    %v218 = vrot.slane %v213, %v217
    %v220 = vadd.f32 %v211, %v218
    %v221 = vadd.f32 %v212, %v218
    %v222 = vpack.c.bf16 %v221, %v220
    %v224 = vunpack.c.l.b16 %v222
    %v225 = vunpack.c.h.b16 %v222
    %v226 = vpack.c.b16 %v224, %v224
    %v227 = vpack.c.b16 %v225, %v225
    %230 = vst [vmem:[%s3] sm:$0xf] %v226
    %231 = vst [vmem:[%s3 + $0x4] sm:$0xf] %v227
  $region21: #{vit_forward.10} parent=0 // pred_fallthru
    _
  // Predicated region
  $region22: #{vit_forward.10} parent=0 // pred_check
    _
  $region23: #{vit_forward.10} parent=0 // pred_check_branch
    %233 = sbr.rel (0) target = $region25
  $region24: #{vit_forward.10} parent=0 // pred_region
    _
  $region25: #{vit_forward.10} parent=0 // pred_fallthru
    _
  // Predicated region
  $region26: #{vit_forward.10} parent=0 // pred_check
    _
  $region27: #{vit_forward.10} parent=0 // pred_check_branch
    %235 = sbr.rel (0) target = $region29
  $region28: #{vit_forward.10} parent=0 // pred_region
    _
  $region29: #{vit_forward.10} parent=0 // pred_fallthru
    _

// kernel: vit_forward.11
$region0: #{vit_forward.11}
  #allocation0 [shape = 'u32[]', space=smem, size = 0x4, offset = 0x4, fixed_abs, tag = 'smem constant byte address 0x4 - core index']
  #allocation1 [shape = 'u32[144,128]{1,0:T(1,128)}', space=vmem, size = 0x12000, scoped, tag = 'internal scratch']
  %s0 = inlined_call_operand.vmem [shape: bf16[24,128], index: 0, kind: input, shape index: {}]
  %s1 = inlined_call_operand.vmem [shape: f32[1,128], index: 1, kind: input, shape index: {}]
  %s2 = inlined_call_operand.vmem [shape: f32[1,128], index: 2, kind: input, shape index: {}]
  %s3 = inlined_call_operand.vmem [shape: bf16[128,384], index: 3, kind: input, shape index: {}]
  %s4 = inlined_call_operand.vmem [shape: bf16[24,384], index: 4, kind: output, shape index: {}]
  %s5 = sld [smem:[#allocation0]]
  $region26: #{vit_forward.11} parent=0
    _
  %s7 = ssub.s32 1, %s5
  %s8 = scalar_select 0, %s7, %s5
  // Predicated region
  $region2: #{vit_forward.11} parent=0 // pred_check
    _
  $region3: #{vit_forward.11} parent=0 // pred_check_branch
    %10 = sbr.rel (0) target = $region5
  $region4: #{vit_forward.11} parent=0 // pred_region
    _
  $region5: #{vit_forward.11} parent=0 // pred_fallthru
    _
  // Predicated region
  $region6: #{vit_forward.11} parent=0 // pred_check
    _
  $region7: #{vit_forward.11} parent=0 // pred_check_branch
    %12 = sbr.rel (0) target = $region9
  $region8: #{vit_forward.11} parent=0 // pred_region
    _
  $region9: #{vit_forward.11} parent=0 // pred_fallthru
    _
  // Predicated region
  $region10: #{vit_forward.11} parent=0 // pred_check
    _
  $region11: #{vit_forward.11} parent=0 // pred_check_branch
    %14 = sbr.rel (0) target = $region13
  $region12: #{vit_forward.11} parent=0 // pred_region
    _
  $region13: #{vit_forward.11} parent=0 // pred_fallthru
    _
  // Predicated region
  $region14: #{vit_forward.11} parent=0 // pred_check
    _
  $region15: #{vit_forward.11} parent=0 // pred_check_branch
    %16 = sbr.rel (0) target = $region17
  $region16: #{vit_forward.11} parent=0 // pred_region
    _
  $region17: #{vit_forward.11} parent=0 // pred_fallthru
    _
  %v18 = vld [vmem:[%s0] sm:$0xf]
  %v19 = vld [vmem:[%s0 + $0x4] sm:$0xf]
  %v20 = vld [vmem:[%s0 + $0x8] sm:$0xf]
  %v21 = vunpack.c.l.bf16 %v18
  %v22 = vunpack.c.l.bf16 %v19
  %v23 = vunpack.c.l.bf16 %v20
  %24 = vadd.xlane.f32.xlu0 %v21
  %v25 = vpop.xlane.xlu0 %24
  %26 = vadd.xlane.f32.xlu0 %v22
  %v27 = vpop.xlane.xlu0 %26
  %28 = vadd.xlane.f32.xlu0 %v23
  %v29 = vpop.xlane.xlu0 %28
  %v30 = vrcp.pop 128.0
  %v31 = vmul.f32 %v25, %v30
  %v32 = vmul.f32 %v27, %v30
  %v33 = vmul.f32 %v29, %v30
  %v34 = vsub.f32 %v21, %v31
  %v35 = vsub.f32 %v22, %v32
  %v36 = vsub.f32 %v23, %v33
  %v37 = vmul.f32 %v34, %v34
  %v38 = vmul.f32 %v35, %v35
  %v39 = vmul.f32 %v36, %v36
  %40 = vadd.xlane.f32.xlu0 %v37
  %v41 = vpop.xlane.xlu0 %40
  %42 = vadd.xlane.f32.xlu0 %v38
  %v43 = vpop.xlane.xlu0 %42
  %44 = vadd.xlane.f32.xlu0 %v39
  %v45 = vpop.xlane.xlu0 %44
  %v46 = vmul.f32 %v41, %v30
  %v47 = vmul.f32 %v43, %v30
  %v48 = vmul.f32 %v45, %v30
  %v49 = vadd.f32 %v46, 1e-05
  %v50 = vadd.f32 %v47, 1e-05
  %v51 = vadd.f32 %v48, 1e-05
  %v52 = vrsqrt.pop %v49
  %v53 = vrsqrt.pop %v50
  %v54 = vrsqrt.pop %v51
  %v55 = vmul.f32 %v34, %v52
  %v56 = vmul.f32 %v35, %v53
  %v57 = vmul.f32 %v36, %v54
  %v58 = vld [vmem:[%s1] sm:$0x1]
  %v60 = vlaneseq
  %v61 = vshrl.u32 %v60, 7
  %v62 = vsub.s32 0, %v61
  %v63 = vrot.slane %v58, %v62
  %v65 = vmul.f32 %v55, %v63
  %v66 = vmul.f32 %v56, %v63
  %v67 = vmul.f32 %v57, %v63
  %v68 = vld [vmem:[%s2] sm:$0x1]
  %v70 = vlaneseq
  %v71 = vshrl.u32 %v70, 7
  %v72 = vsub.s32 0, %v71
  %v73 = vrot.slane %v68, %v72
  %v75 = vadd.f32 %v65, %v73
  %v76 = vadd.f32 %v66, %v73
  %v77 = vadd.f32 %v67, %v73
  %v78 = vpack.c.bf16 %v76, %v75
  %v79 = vpack.c.bf16 %v77, %v77
  %v80 = vld [vmem:[%s3] sm:$0xff]
  %v81 = vld [vmem:[%s3 + $0x8] sm:$0xf]
  %v82 = vld [vmem:[%s3 + $0xc] sm:$0xff]
  %v83 = vld [vmem:[%s3 + $0x14] sm:$0xf]
  %v84 = vld [vmem:[%s3 + $0x18] sm:$0xff]
  %v85 = vld [vmem:[%s3 + $0x20] sm:$0xf]
  %v86 = vld [vmem:[%s3 + $0x24] sm:$0xff]
  %v87 = vld [vmem:[%s3 + $0x2c] sm:$0xf]
  %v88 = vld [vmem:[%s3 + $0x30] sm:$0xff]
  %v89 = vld [vmem:[%s3 + $0x38] sm:$0xf]
  %v90 = vld [vmem:[%s3 + $0x3c] sm:$0xff]
  %v91 = vld [vmem:[%s3 + $0x44] sm:$0xf]
  %v92 = vld [vmem:[%s3 + $0x48] sm:$0xff]
  %v93 = vld [vmem:[%s3 + $0x50] sm:$0xf]
  %v94 = vld [vmem:[%s3 + $0x54] sm:$0xff]
  %v95 = vld [vmem:[%s3 + $0x5c] sm:$0xf]
  %v96 = vld [vmem:[%s3 + $0x60] sm:$0xff]
  %v97 = vld [vmem:[%s3 + $0x68] sm:$0xf]
  %v98 = vld [vmem:[%s3 + $0x6c] sm:$0xff]
  %v99 = vld [vmem:[%s3 + $0x74] sm:$0xf]
  %v100 = vld [vmem:[%s3 + $0x78] sm:$0xff]
  %v101 = vld [vmem:[%s3 + $0x80] sm:$0xf]
  %v102 = vld [vmem:[%s3 + $0x84] sm:$0xff]
  %v103 = vld [vmem:[%s3 + $0x8c] sm:$0xf]
  %v104 = vld [vmem:[%s3 + $0x90] sm:$0xff]
  %v105 = vld [vmem:[%s3 + $0x98] sm:$0xf]
  %v106 = vld [vmem:[%s3 + $0x9c] sm:$0xff]
  %v107 = vld [vmem:[%s3 + $0xa4] sm:$0xf]
  %v108 = vld [vmem:[%s3 + $0xa8] sm:$0xff]
  %v109 = vld [vmem:[%s3 + $0xb0] sm:$0xf]
  %v110 = vld [vmem:[%s3 + $0xb4] sm:$0xff]
  %v111 = vld [vmem:[%s3 + $0xbc] sm:$0xf]
  %v144 = vunpack.c.l.b16 %v80
  %v145 = vunpack.c.h.b16 %v80
  %v146 = vunpack.c.l.b16 %v81
  %v147 = vunpack.c.l.b16 %v82
  %v148 = vunpack.c.h.b16 %v82
  %v149 = vunpack.c.l.b16 %v83
  %v150 = vunpack.c.l.b16 %v84
  %v151 = vunpack.c.h.b16 %v84
  %v152 = vunpack.c.l.b16 %v85
  %v153 = vunpack.c.l.b16 %v86
  %v154 = vunpack.c.h.b16 %v86
  %v155 = vunpack.c.l.b16 %v87
  %v156 = vunpack.c.l.b16 %v88
  %v157 = vunpack.c.h.b16 %v88
  %v158 = vunpack.c.l.b16 %v89
  %v159 = vunpack.c.l.b16 %v90
  %v160 = vunpack.c.h.b16 %v90
  %v161 = vunpack.c.l.b16 %v91
  %v162 = vunpack.c.l.b16 %v92
  %v163 = vunpack.c.h.b16 %v92
  %v164 = vunpack.c.l.b16 %v93
  %v165 = vunpack.c.l.b16 %v94
  %v166 = vunpack.c.h.b16 %v94
  %v167 = vunpack.c.l.b16 %v95
  %v168 = vunpack.c.l.b16 %v96
  %v169 = vunpack.c.h.b16 %v96
  %v170 = vunpack.c.l.b16 %v97
  %v171 = vunpack.c.l.b16 %v98
  %v172 = vunpack.c.h.b16 %v98
  %v173 = vunpack.c.l.b16 %v99
  %v174 = vunpack.c.l.b16 %v100
  %v175 = vunpack.c.h.b16 %v100
  %v176 = vunpack.c.l.b16 %v101
  %v177 = vunpack.c.l.b16 %v102
  %v178 = vunpack.c.h.b16 %v102
  %v179 = vunpack.c.l.b16 %v103
  %v180 = vunpack.c.l.b16 %v104
  %v181 = vunpack.c.h.b16 %v104
  %v182 = vunpack.c.l.b16 %v105
  %v183 = vunpack.c.l.b16 %v106
  %v184 = vunpack.c.h.b16 %v106
  %v185 = vunpack.c.l.b16 %v107
  %v186 = vunpack.c.l.b16 %v108
  %v187 = vunpack.c.h.b16 %v108
  %v188 = vunpack.c.l.b16 %v109
  %v189 = vunpack.c.l.b16 %v110
  %v190 = vunpack.c.h.b16 %v110
  %v191 = vunpack.c.l.b16 %v111
  %v192 = vpack.c.b16 %v147, %v144
  %v193 = vpack.c.b16 %v148, %v145
  %v194 = vpack.c.b16 %v149, %v146
  %v195 = vpack.c.b16 %v153, %v150
  %v196 = vpack.c.b16 %v154, %v151
  %v197 = vpack.c.b16 %v155, %v152
  %v198 = vpack.c.b16 %v159, %v156
  %v199 = vpack.c.b16 %v160, %v157
  %v200 = vpack.c.b16 %v161, %v158
  %v201 = vpack.c.b16 %v165, %v162
  %v202 = vpack.c.b16 %v166, %v163
  %v203 = vpack.c.b16 %v167, %v164
  %v204 = vpack.c.b16 %v171, %v168
  %v205 = vpack.c.b16 %v172, %v169
  %v206 = vpack.c.b16 %v173, %v170
  %v207 = vpack.c.b16 %v177, %v174
  %v208 = vpack.c.b16 %v178, %v175
  %v209 = vpack.c.b16 %v179, %v176
  %v210 = vpack.c.b16 %v183, %v180
  %v211 = vpack.c.b16 %v184, %v181
  %v212 = vpack.c.b16 %v185, %v182
  %v213 = vpack.c.b16 %v189, %v186
  %v214 = vpack.c.b16 %v190, %v187
  %v215 = vpack.c.b16 %v191, %v188
  %240 = vmatprep.subr.bf16.mxu0 %v193
  %241 = vmatpush1.bf16.msra.mxu0 %v192
  %242 = vmatprep.subr.bf16.mxu0 %v196
  %243 = vmatpush1.bf16.msra.mxu0 %v195
  %244 = vmatprep.subr.bf16.mxu0 %v199
  %245 = vmatpush1.bf16.msra.mxu0 %v198
  %246 = vmatprep.subr.bf16.mxu0 %v202
  %247 = vmatpush1.bf16.msra.mxu0 %v201
  %248 = vmatprep.subr.bf16.mxu0 %v205
  %249 = vmatpush1.bf16.msra.mxu0 %v204
  %250 = vmatprep.subr.bf16.mxu0 %v208
  %251 = vmatpush1.bf16.msra.mxu0 %v207
  %252 = vmatprep.subr.bf16.mxu0 %v211
  %253 = vmatpush1.bf16.msra.mxu0 %v210
  %254 = vmatprep.subr.bf16.mxu0 %v214
  %255 = vmatpush1.bf16.msra.mxu0 %v213
  %256 = vmatprep.subr.bf16.mxu0 0
  %257 = vmatpush1.bf16.msra.mxu0 0
  %258 = vmatprep.subr.bf16.mxu0 0
  %259 = vmatpush1.bf16.msra.mxu0 0
  %260 = vmatprep.subr.bf16.mxu0 0
  %261 = vmatpush1.bf16.msra.mxu0 0
  %262 = vmatprep.subr.bf16.mxu0 0
  %263 = vmatpush1.bf16.msra.mxu0 0
  %264 = vmatprep.subr.bf16.mxu0 0
  %265 = vmatpush1.bf16.msra.mxu0 0
  %266 = vmatprep.subr.bf16.mxu0 0
  %267 = vmatpush1.bf16.msra.mxu0 0
  %268 = vmatprep.subr.bf16.mxu0 0
  %269 = vmatpush1.bf16.msra.mxu0 0
  %270 = vmatprep.subr.bf16.mxu0 0
  %271 = vmatpush1.bf16.msra.mxu0 0
  %272 = vmatprep.mubr.bf16.mxu0 0
  %273 = vmatmul.mubr.bf16.gmra.mrb[0].mxu0 %v78
  %v274 = vpop.f32.mrb[0].mxu0
  %v275 = vadd.f32 0.0, %v274
  %v276 = vpop.f32.mrb[0].mxu0
  %v277 = vadd.f32 0.0, %v276
  %v278 = vpop.f32.mrb[0].mxu0
  %v279 = vadd.f32 0.0, %v278
  %v280 = vpop.f32.mrb[0].mxu0
  %v281 = vadd.f32 0.0, %v280
  %282 = vmatprep.mubr.bf16.mxu0 0
  %283 = vmatmul.mubr.bf16.gmra.mrb[0].mxu0 %v79
  %v284 = vpop.f32.mrb[0].mxu0
  %v285 = vadd.f32 0.0, %v284
  %v286 = vpop.f32.mrb[0].mxu0
  %v287 = vadd.f32 0.0, %v286
  %v288 = vpop.f32.mrb[0].mxu0
  %v289 = vpop.f32.mrb[0].mxu0
  %290 = vdwg.mxu0
  %291 = vmatprep.subr.bf16.mxu0 0
  %292 = vmatpush1.bf16.msra.mxu0 %v194
  %293 = vmatprep.subr.bf16.mxu0 0
  %294 = vmatpush1.bf16.msra.mxu0 %v197
  %295 = vmatprep.subr.bf16.mxu0 0
  %296 = vmatpush1.bf16.msra.mxu0 %v200
  %297 = vmatprep.subr.bf16.mxu0 0
  %298 = vmatpush1.bf16.msra.mxu0 %v203
  %299 = vmatprep.subr.bf16.mxu0 0
  %300 = vmatpush1.bf16.msra.mxu0 %v206
  %301 = vmatprep.subr.bf16.mxu0 0
  %302 = vmatpush1.bf16.msra.mxu0 %v209
  %303 = vmatprep.subr.bf16.mxu0 0
  %304 = vmatpush1.bf16.msra.mxu0 %v212
  %305 = vmatprep.subr.bf16.mxu0 0
  %306 = vmatpush1.bf16.msra.mxu0 %v215
  %307 = vmatprep.subr.bf16.mxu0 0
  %308 = vmatpush1.bf16.msra.mxu0 0
  %309 = vmatprep.subr.bf16.mxu0 0
  %310 = vmatpush1.bf16.msra.mxu0 0
  %311 = vmatprep.subr.bf16.mxu0 0
  %312 = vmatpush1.bf16.msra.mxu0 0
  %313 = vmatprep.subr.bf16.mxu0 0
  %314 = vmatpush1.bf16.msra.mxu0 0
  %315 = vmatprep.subr.bf16.mxu0 0
  %316 = vmatpush1.bf16.msra.mxu0 0
  %317 = vmatprep.subr.bf16.mxu0 0
  %318 = vmatpush1.bf16.msra.mxu0 0
  %319 = vmatprep.subr.bf16.mxu0 0
  %320 = vmatpush1.bf16.msra.mxu0 0
  %321 = vmatprep.subr.bf16.mxu0 0
  %322 = vmatpush1.bf16.msra.mxu0 0
  %323 = vmatprep.mubr.bf16.mxu0 0
  %324 = vmatmul.mubr.bf16.gmra.mrb[0].mxu0 %v78
  %v325 = vpop.f32.mrb[0].mxu0
  %v326 = vadd.f32 0.0, %v325
  %v327 = vpop.f32.mrb[0].mxu0
  %v328 = vpop.f32.mrb[0].mxu0
  %v329 = vadd.f32 0.0, %v328
  %v330 = vpop.f32.mrb[0].mxu0
  %331 = vmatprep.mubr.bf16.mxu0 0
  %332 = vmatmul.mubr.bf16.gmra.mrb[0].mxu0 %v79
  %v333 = vpop.f32.mrb[0].mxu0
  %v334 = vadd.f32 0.0, %v333
  %v335 = vpop.f32.mrb[0].mxu0
  %v336 = vpop.f32.mrb[0].mxu0
  %v337 = vpop.f32.mrb[0].mxu0
  %338 = vdwg.mxu0
  %v339 = vpack.c.bf16 %v279, %v275
  %v340 = vpack.c.bf16 %v281, %v277
  %v341 = vpack.c.bf16 %v329, %v326
  %v342 = vpack.c.bf16 %v285, %v285
  %v343 = vpack.c.bf16 %v287, %v287
  %v344 = vpack.c.bf16 %v334, %v334
  %v351 = vunpack.c.l.b16 %v339
  %v352 = vunpack.c.l.b16 %v340
  %v353 = vunpack.c.l.b16 %v341
  %v354 = vunpack.c.h.b16 %v339
  %v355 = vunpack.c.h.b16 %v340
  %v356 = vunpack.c.h.b16 %v341
  %v357 = vunpack.c.l.b16 %v342
  %v358 = vunpack.c.l.b16 %v343
  %v359 = vunpack.c.l.b16 %v344
  %v360 = vpack.c.b16 %v352, %v351
  %v361 = vpack.c.b16 %v353, %v353
  %v362 = vpack.c.b16 %v355, %v354
  %v363 = vpack.c.b16 %v356, %v356
  %v364 = vpack.c.b16 %v358, %v357
  %v365 = vpack.c.b16 %v359, %v359
  %372 = vst [vmem:[%s4] sm:$0xff] %v360
  %373 = vst [vmem:[%s4 + $0x8] sm:$0xf] %v361
  %374 = vst [vmem:[%s4 + $0xc] sm:$0xff] %v362
  %375 = vst [vmem:[%s4 + $0x14] sm:$0xf] %v363
  %376 = vst [vmem:[%s4 + $0x18] sm:$0xff] %v364
  %377 = vst [vmem:[%s4 + $0x20] sm:$0xf] %v365
  // Predicated region
  $region18: #{vit_forward.11} parent=0 // pred_check
    _
  $region19: #{vit_forward.11} parent=0 // pred_check_branch
    %379 = sbr.rel (0) target = $region21
  $region20: #{vit_forward.11} parent=0 // pred_region
    _
  $region21: #{vit_forward.11} parent=0 // pred_fallthru
    _
  // Predicated region
  $region22: #{vit_forward.11} parent=0 // pred_check
    _
  $region23: #{vit_forward.11} parent=0 // pred_check_branch
    %381 = sbr.rel (0) target = $region25
  $region24: #{vit_forward.11} parent=0 // pred_region
    _
  $region25: #{vit_forward.11} parent=0 // pred_fallthru
    _

// kernel: vit_forward.12
$region0: #{vit_forward.12}
  #allocation0 [shape = 'u32[]', space=smem, size = 0x4, offset = 0x4, fixed_abs, tag = 'smem constant byte address 0x4 - core index']
  #allocation1 [shape = 'u32[144,128]{1,0:T(1,128)}', space=vmem, size = 0x12000, scoped, tag = 'internal scratch']
  %s0 = inlined_call_operand.vmem [shape: bf16[2,9,384], index: 0, kind: input, shape index: {}]
  %s1 = inlined_call_operand.vmem [shape: bf16[2,9,128], index: 1, kind: output, shape index: {}]
  %s2 = sld [smem:[#allocation0]]
  $region37: #{vit_forward.12} parent=0
    _
  %s4 = ssub.s32 1, %s2
  %s5 = scalar_select 0, %s4, %s2
  loop: start=0, step=1, limit=4
  $region2: #{vit_forward.12} parent=0 // loop_pre_header
    _
  $region3: #{vit_forward.12} parent=0 // loop_header
    %s7 = sphi 0, %s11
    %p8 = scmp.ge.s32.totalorder %s7, 4
    %s17 = sphi 0, %s19
    %s20 = sphi 0, %s17
    %s21 = sphi 0, %s20
    %s37 = sphi 0, %s21
    %s43 = sphi 0, %s45
    %s46 = sphi 0, %s43
    %s47 = sphi 0, %s46
    %s63 = sphi 0, %s47
  $region4: #{vit_forward.12} parent=0 // loop_header_branch
    %10 = sbr.rel (%p8) target = $region8
  $region5: #{vit_forward.12} parent=0 // loop_body
    %s12 = ssub.s32 %s7, 1
    %s13 = ssub.s32 %s7, 2
    %s14 = sadd.s32 %s7, 1
    %s15 = ssub.s32 %s7, %s14
    %p16 = scmp.eq.s32.totalorder %s15, 0
    %s18 = sadd.s32 %s17, 1
    %s19 = scalar_select %p16, %s17, %s18
    %p22 = pneg %p16
    %p23 = scmp.eq.s32.totalorder %s7, 1
    %p24 = por %p22, %p23
    %p25 = scmp.ne.s32.totalorder %s17, %s20
    %p26 = scmp.eq.s32.totalorder %s7, 0
    %p27 = por %p25, %p26
    %p28 = scmp.ne.s32.totalorder %s17, %s20
    %p29 = scmp.eq.s32.totalorder %s12, 1
    %p30 = por %p28, %p29
    %p31 = scmp.ne.s32.totalorder %s20, %s21
    %p32 = scmp.eq.s32.totalorder %s12, 0
    %p33 = por %p31, %p32
    %p34 = scmp.ne.s32.totalorder %s20, %s21
    %p35 = scmp.eq.s32.totalorder %s13, 1
    %p36 = por %p34, %p35
    %p38 = scmp.ne.s32.totalorder %s21, %s37
    %p39 = scmp.eq.s32.totalorder %s13, 0
    %p40 = por %p38, %p39
    %s41 = ssub.s32 %s7, %s14
    %p42 = scmp.eq.s32.totalorder %s41, 0
    %s44 = sadd.s32 %s43, 1
    %s45 = scalar_select %p42, %s43, %s44
    %p48 = pneg %p42
    %p49 = scmp.eq.s32.totalorder %s7, 1
    %p50 = por %p48, %p49
    %p51 = scmp.ne.s32.totalorder %s43, %s46
    %p52 = scmp.eq.s32.totalorder %s7, 0
    %p53 = por %p51, %p52
    %p54 = scmp.ne.s32.totalorder %s43, %s46
    %p55 = scmp.eq.s32.totalorder %s12, 1
    %p56 = por %p54, %p55
    %p57 = scmp.ne.s32.totalorder %s46, %s47
    %p58 = scmp.eq.s32.totalorder %s12, 0
    %p59 = por %p57, %p58
    %p60 = scmp.ne.s32.totalorder %s46, %s47
    %p61 = scmp.eq.s32.totalorder %s13, 1
    %p62 = por %p60, %p61
    %p64 = scmp.ne.s32.totalorder %s47, %s63
    %p65 = scmp.eq.s32.totalorder %s13, 0
    %p66 = por %p64, %p65
    %p67 = scmp.le.s32.totalorder 1, %s7
    %p68 = scmp.lt.s32.totalorder %s7, 3
    %p69 = pnand %p67, %p68
    %p70 = pneg %p69
    // Predicated region
    $region9: #{vit_forward.12} parent=5 // pred_check
      _
    $region10: #{vit_forward.12} parent=5 // pred_check_branch
      %72 = sbr.rel (%p69) target = $region12
    $region11: #{vit_forward.12} parent=5 // pred_region
      %s73 = ssub.s32 %s7, 1
    $region12: #{vit_forward.12} parent=5 // pred_fallthru
      _
    %p74 = scmp.lt.s32.totalorder %s7, 2
    // Predicated region
    $region13: #{vit_forward.12} parent=5 // pred_check
      %p75 = pneg %p74
    $region14: #{vit_forward.12} parent=5 // pred_check_branch
      %77 = sbr.rel (%p75) target = $region16
    $region15: #{vit_forward.12} parent=5 // pred_region
      // Predicated region
      $region17: #{vit_forward.12} parent=15 // pred_check
        %p78 = pneg %p27
      $region18: #{vit_forward.12} parent=15 // pred_check_branch
        %80 = sbr.rel (%p78) target = $region20
      $region19: #{vit_forward.12} parent=15 // pred_region
        %p81 = scmp.lt.s32.totalorder %s7, 1
        %s82 = scalar_select %p81, %s7, 1
        %s83 = smul.addr %s82, 6
        %s84 = smul.addr %s83, 4
        %s85 = scalar_lea.vmem %s0, %s84
      $region20: #{vit_forward.12} parent=15 // pred_fallthru
        _
    $region16: #{vit_forward.12} parent=5 // pred_fallthru
      _
    %p86 = scmp.le.s32.totalorder 1, %s7
    %p87 = scmp.lt.s32.totalorder %s7, 3
    %p88 = pnand %p86, %p87
    %p89 = pneg %p88
    // Predicated region
    $region21: #{vit_forward.12} parent=5 // pred_check
      _
    $region22: #{vit_forward.12} parent=5 // pred_check_branch
      %91 = sbr.rel (%p88) target = $region24
    $region23: #{vit_forward.12} parent=5 // pred_region
      %s92 = ssub.s32 %s7, 1
      %p93 = scmp.lt.s32.totalorder %s12, 1
      %s94 = scalar_select %p93, %s12, 1
      %s95 = smul.addr %s94, 6
      %s96 = smul.addr %s95, 4
      %s97 = scalar_lea.vmem %s0, %s96
      %p98 = pneg %p33
      %p99 = pneg %p30
      %p100 = pneg %p59
      %p101 = pneg %p56
      %p102 = scmp.lt.s32.totalorder %s12, 1
      %s103 = scalar_select %p102, %s12, 1
      %s104 = smul.addr %s103, 2
      %s105 = smul.addr %s104, 4
      %s106 = scalar_lea.vmem %s1, %s105
      %p107 = scmp.lt.s32.totalorder %s12, 1
      %s108 = scalar_select %p107, %s12, 1
      %s109 = smul.addr %s108, 6
      %s110 = smul.addr %s109, 4
      %s111 = scalar_lea.vmem %s0, %s110
      %p112 = scmp.lt.s32.totalorder %s12, 1
      %s113 = scalar_select %p112, %s12, 1
      %s114 = smul.addr %s113, 2
      %s115 = smul.addr %s114, 4
      %s116 = scalar_lea.vmem %s1, %s115
      %v118 = vld [vmem:[%s111] sm:$0xff]
      %v119 = vld [vmem:[%s111 + $0x8] sm:$0xf]
      %v120 = vld [vmem:[%s111 + $0xc] sm:$0x11]
      %v121 = vld [vmem:[%s111 + $0x14] sm:$0x1]
      %v124 = vunpack.c.l.b16 %v118
      %v125 = vunpack.c.l.b16 %v120
      %v126 = vpack.c.b16 %v125, %v124
      %v127 = vunpack.c.h.b16 %v118
      %v128 = vunpack.c.h.b16 %v120
      %v129 = vpack.c.b16 %v128, %v127
      %vm130 = vcmask 261120
      %v132 = vsel %vm130, %v126, 0
      %v135 = vsel %vm130, %v129, 0
      %137 = vmatprep.subr.bf16.mxu0 0
      %138 = vmatpush1.bf16.xpose.msra.mxu0 %v135
      %139 = vmatprep.subr.bf16.mxu0 0
      %140 = vmatpush1.bf16.xpose.msra.mxu0 0
      %141 = vmatprep.subr.bf16.mxu0 0
      %142 = vmatpush1.bf16.xpose.msra.mxu0 0
      %143 = vmatprep.subr.bf16.mxu0 0
      %144 = vmatpush1.bf16.xpose.msra.mxu0 0
      %145 = vmatprep.subr.bf16.mxu0 0
      %146 = vmatpush1.bf16.xpose.msra.mxu0 0
      %147 = vmatprep.subr.bf16.mxu0 0
      %148 = vmatpush1.bf16.xpose.msra.mxu0 0
      %149 = vmatprep.subr.bf16.mxu0 0
      %150 = vmatpush1.bf16.xpose.msra.mxu0 0
      %151 = vmatprep.subr.bf16.mxu0 0
      %152 = vmatpush1.bf16.xpose.msra.mxu0 0
      %153 = vmatprep.subr.bf16.mxu0 0
      %154 = vmatpush1.bf16.xpose.msra.mxu0 0
      %155 = vmatprep.subr.bf16.mxu0 0
      %156 = vmatpush1.bf16.xpose.msra.mxu0 0
      %157 = vmatprep.subr.bf16.mxu0 0
      %158 = vmatpush1.bf16.xpose.msra.mxu0 0
      %159 = vmatprep.subr.bf16.mxu0 0
      %160 = vmatpush1.bf16.xpose.msra.mxu0 0
      %161 = vmatprep.subr.bf16.mxu0 0
      %162 = vmatpush1.bf16.xpose.msra.mxu0 0
      %163 = vmatprep.subr.bf16.mxu0 0
      %164 = vmatpush1.bf16.xpose.msra.mxu0 0
      %165 = vmatprep.subr.bf16.mxu0 0
      %166 = vmatpush1.bf16.xpose.msra.mxu0 0
      %167 = vmatprep.subr.bf16.mxu0 0
      %168 = vmatpush1.bf16.xpose.msra.mxu0 0
      %169 = vmatprep.mubr.bf16.mxu0 0
      %170 = vmatmul.mubr.bf16.gmra.mrb[0].mxu0 %v132
      %v171 = vpop.f32.mrb[0].mxu0
      %v172 = vadd.f32 0.0, %v171
      %v173 = vpop.f32.mrb[0].mxu0
      %v174 = vpop.f32.mrb[0].mxu0
      %v175 = vadd.f32 0.0, %v174
      %v176 = vpop.f32.mrb[0].mxu0
      %177 = vdwg.mxu0
      %v178 = vmul.f32 %v172, 0.17677669
      %v179 = vmul.f32 %v175, 0.17677669
      %vm180 = vcmask 72704
      %v181 = vsel %vm180, %v178, -inf
      %182 = vmax.xlane.f32.xlu0 %v181
      %v183 = vpop.xlane.xlu0 %182
      %vm184 = vcmask 65536
      %v185 = vsel %vm184, %v179, -inf
      %186 = vmax.xlane.f32.xlu0 %v185
      %v187 = vpop.xlane.xlu0 %186
      %v188 = vsub.f32 %v178, %v183
      %v189 = vsub.f32 %v179, %v187
      %v190 = vmul.f32 %v188, 1.442695
      %v191 = vpow.pop %v190
      %v192 = vmul.f32 %v189, 1.442695
      %v193 = vpow.pop %v192
      %v194 = vsel %vm180, %v191, 0.0
      %195 = vadd.xlane.f32.xlu0 %v194
      %v196 = vpop.xlane.xlu0 %195
      %v197 = vsel %vm184, %v193, 0.0
      %198 = vadd.xlane.f32.xlu0 %v197
      %v199 = vpop.xlane.xlu0 %198
      %v200 = vrcp.pop %v196
      %v201 = vrcp.pop %v199
      %v202 = vmul.f32 %v191, %v200
      %v203 = vmul.f32 %v193, %v201
      %v204 = vpack.c.bf16 %v203, %v202
      %v207 = vunpack.c.l.b16 %v119
      %v208 = vunpack.c.l.b16 %v121
      %v209 = vpack.c.b16 %v208, %v207
      %v211 = vsel %vm180, %v204, 0
      %vm213 = vcmask 1043456
      %vm214 = vcmask 1044480
      %v215 = vsel %vm213, 4294967295, 65535
      %v216 = vsel %vm214, %v215, 0
      %v218 = vand.u32 %v209, %v216
      %220 = vmatprep.subr.bf16.mxu0 0
      %221 = vmatpush1.bf16.msra.mxu0 %v218
      %222 = vmatprep.subr.bf16.mxu0 0
      %223 = vmatpush1.bf16.msra.mxu0 0
      %224 = vmatprep.subr.bf16.mxu0 0
      %225 = vmatpush1.bf16.msra.mxu0 0
      %226 = vmatprep.subr.bf16.mxu0 0
      %227 = vmatpush1.bf16.msra.mxu0 0
      %228 = vmatprep.subr.bf16.mxu0 0
      %229 = vmatpush1.bf16.msra.mxu0 0
      %230 = vmatprep.subr.bf16.mxu0 0
      %231 = vmatpush1.bf16.msra.mxu0 0
      %232 = vmatprep.subr.bf16.mxu0 0
      %233 = vmatpush1.bf16.msra.mxu0 0
      %234 = vmatprep.subr.bf16.mxu0 0
      %235 = vmatpush1.bf16.msra.mxu0 0
      %236 = vmatprep.subr.bf16.mxu0 0
      %237 = vmatpush1.bf16.msra.mxu0 0
      %238 = vmatprep.subr.bf16.mxu0 0
      %239 = vmatpush1.bf16.msra.mxu0 0
      %240 = vmatprep.subr.bf16.mxu0 0
      %241 = vmatpush1.bf16.msra.mxu0 0
      %242 = vmatprep.subr.bf16.mxu0 0
      %243 = vmatpush1.bf16.msra.mxu0 0
      %244 = vmatprep.subr.bf16.mxu0 0
      %245 = vmatpush1.bf16.msra.mxu0 0
      %246 = vmatprep.subr.bf16.mxu0 0
      %247 = vmatpush1.bf16.msra.mxu0 0
      %248 = vmatprep.subr.bf16.mxu0 0
      %249 = vmatpush1.bf16.msra.mxu0 0
      %250 = vmatprep.subr.bf16.mxu0 0
      %251 = vmatpush1.bf16.msra.mxu0 0
      %252 = vmatprep.mubr.bf16.mxu0 0
      %253 = vmatmul.mubr.bf16.gmra.mrb[0].mxu0 %v211
      %v254 = vpop.f32.mrb[0].mxu0
      %v255 = vadd.f32 0.0, %v254
      %v256 = vpop.f32.mrb[0].mxu0
      %v257 = vpop.f32.mrb[0].mxu0
      %v258 = vadd.f32 0.0, %v257
      %v259 = vpop.f32.mrb[0].mxu0
      %260 = vdwg.mxu0
      %261 = vrot.lane.b32.xlu0 %v126, 96
      %v262 = vpop.permute.xlu0 %261
      %263 = vrot.lane.b32.xlu0 %v129, 96
      %v264 = vpop.permute.xlu0 %263
      %v266 = vsel %vm130, %v262, 0
      %v269 = vsel %vm130, %v264, 0
      %271 = vmatprep.subr.bf16.mxu0 0
      %272 = vmatpush1.bf16.xpose.msra.mxu0 %v269
      %273 = vmatprep.subr.bf16.mxu0 0
      %274 = vmatpush1.bf16.xpose.msra.mxu0 0
      %275 = vmatprep.subr.bf16.mxu0 0
      %276 = vmatpush1.bf16.xpose.msra.mxu0 0
      %277 = vmatprep.subr.bf16.mxu0 0
      %278 = vmatpush1.bf16.xpose.msra.mxu0 0
      %279 = vmatprep.subr.bf16.mxu0 0
      %280 = vmatpush1.bf16.xpose.msra.mxu0 0
      %281 = vmatprep.subr.bf16.mxu0 0
      %282 = vmatpush1.bf16.xpose.msra.mxu0 0
      %283 = vmatprep.subr.bf16.mxu0 0
      %284 = vmatpush1.bf16.xpose.msra.mxu0 0
      %285 = vmatprep.subr.bf16.mxu0 0
      %286 = vmatpush1.bf16.xpose.msra.mxu0 0
      %287 = vmatprep.subr.bf16.mxu0 0
      %288 = vmatpush1.bf16.xpose.msra.mxu0 0
      %289 = vmatprep.subr.bf16.mxu0 0
      %290 = vmatpush1.bf16.xpose.msra.mxu0 0
      %291 = vmatprep.subr.bf16.mxu0 0
      %292 = vmatpush1.bf16.xpose.msra.mxu0 0
      %293 = vmatprep.subr.bf16.mxu0 0
      %294 = vmatpush1.bf16.xpose.msra.mxu0 0
      %295 = vmatprep.subr.bf16.mxu0 0
      %296 = vmatpush1.bf16.xpose.msra.mxu0 0
      %297 = vmatprep.subr.bf16.mxu0 0
      %298 = vmatpush1.bf16.xpose.msra.mxu0 0
      %299 = vmatprep.subr.bf16.mxu0 0
      %300 = vmatpush1.bf16.xpose.msra.mxu0 0
      %301 = vmatprep.subr.bf16.mxu0 0
      %302 = vmatpush1.bf16.xpose.msra.mxu0 0
      %303 = vmatprep.mubr.bf16.mxu0 0
      %304 = vmatmul.mubr.bf16.gmra.mrb[0].mxu0 %v266
      %v305 = vpop.f32.mrb[0].mxu0
      %v306 = vadd.f32 0.0, %v305
      %v307 = vpop.f32.mrb[0].mxu0
      %v308 = vpop.f32.mrb[0].mxu0
      %v309 = vadd.f32 0.0, %v308
      %v310 = vpop.f32.mrb[0].mxu0
      %311 = vdwg.mxu0
      %v312 = vmul.f32 %v306, 0.17677669
      %v313 = vmul.f32 %v309, 0.17677669
      %v314 = vsel %vm180, %v312, -inf
      %315 = vmax.xlane.f32.xlu0 %v314
      %v316 = vpop.xlane.xlu0 %315
      %v317 = vsel %vm184, %v313, -inf
      %318 = vmax.xlane.f32.xlu0 %v317
      %v319 = vpop.xlane.xlu0 %318
      %v320 = vsub.f32 %v312, %v316
      %v321 = vsub.f32 %v313, %v319
      %v322 = vmul.f32 %v320, 1.442695
      %v323 = vpow.pop %v322
      %v324 = vmul.f32 %v321, 1.442695
      %v325 = vpow.pop %v324
      %v326 = vsel %vm180, %v323, 0.0
      %327 = vadd.xlane.f32.xlu0 %v326
      %v328 = vpop.xlane.xlu0 %327
      %v329 = vsel %vm184, %v325, 0.0
      %330 = vadd.xlane.f32.xlu0 %v329
      %v331 = vpop.xlane.xlu0 %330
      %v332 = vrcp.pop %v328
      %v333 = vrcp.pop %v331
      %v334 = vmul.f32 %v323, %v332
      %v335 = vmul.f32 %v325, %v333
      %v336 = vpack.c.bf16 %v335, %v334
      %337 = vrot.lane.b32.xlu0 %v209, 96
      %v338 = vpop.permute.xlu0 %337
      %v340 = vsel %vm180, %v336, 0
      %v343 = vand.u32 %v338, %v216
      %345 = vmatprep.subr.bf16.mxu0 0
      %346 = vmatpush1.bf16.msra.mxu0 %v343
      %347 = vmatprep.subr.bf16.mxu0 0
      %348 = vmatpush1.bf16.msra.mxu0 0
      %349 = vmatprep.subr.bf16.mxu0 0
      %350 = vmatpush1.bf16.msra.mxu0 0
      %351 = vmatprep.subr.bf16.mxu0 0
      %352 = vmatpush1.bf16.msra.mxu0 0
      %353 = vmatprep.subr.bf16.mxu0 0
      %354 = vmatpush1.bf16.msra.mxu0 0
      %355 = vmatprep.subr.bf16.mxu0 0
      %356 = vmatpush1.bf16.msra.mxu0 0
      %357 = vmatprep.subr.bf16.mxu0 0
      %358 = vmatpush1.bf16.msra.mxu0 0
      %359 = vmatprep.subr.bf16.mxu0 0
      %360 = vmatpush1.bf16.msra.mxu0 0
      %361 = vmatprep.subr.bf16.mxu0 0
      %362 = vmatpush1.bf16.msra.mxu0 0
      %363 = vmatprep.subr.bf16.mxu0 0
      %364 = vmatpush1.bf16.msra.mxu0 0
      %365 = vmatprep.subr.bf16.mxu0 0
      %366 = vmatpush1.bf16.msra.mxu0 0
      %367 = vmatprep.subr.bf16.mxu0 0
      %368 = vmatpush1.bf16.msra.mxu0 0
      %369 = vmatprep.subr.bf16.mxu0 0
      %370 = vmatpush1.bf16.msra.mxu0 0
      %371 = vmatprep.subr.bf16.mxu0 0
      %372 = vmatpush1.bf16.msra.mxu0 0
      %373 = vmatprep.subr.bf16.mxu0 0
      %374 = vmatpush1.bf16.msra.mxu0 0
      %375 = vmatprep.subr.bf16.mxu0 0
      %376 = vmatpush1.bf16.msra.mxu0 0
      %377 = vmatprep.mubr.bf16.mxu0 0
      %378 = vmatmul.mubr.bf16.gmra.mrb[0].mxu0 %v340
      %v379 = vpop.f32.mrb[0].mxu0
      %v380 = vadd.f32 0.0, %v379
      %v381 = vpop.f32.mrb[0].mxu0
      %v382 = vpop.f32.mrb[0].mxu0
      %v383 = vadd.f32 0.0, %v382
      %v384 = vpop.f32.mrb[0].mxu0
      %385 = vdwg.mxu0
      %386 = vrot.lane.b32.xlu0 %v126, 64
      %v387 = vpop.permute.xlu0 %386
      %388 = vrot.lane.b32.xlu0 %v129, 64
      %v389 = vpop.permute.xlu0 %388
      %v391 = vsel %vm130, %v387, 0
      %v394 = vsel %vm130, %v389, 0
      %396 = vmatprep.subr.bf16.mxu0 0
      %397 = vmatpush1.bf16.xpose.msra.mxu0 %v394
      %398 = vmatprep.subr.bf16.mxu0 0
      %399 = vmatpush1.bf16.xpose.msra.mxu0 0
      %400 = vmatprep.subr.bf16.mxu0 0
      %401 = vmatpush1.bf16.xpose.msra.mxu0 0
      %402 = vmatprep.subr.bf16.mxu0 0
      %403 = vmatpush1.bf16.xpose.msra.mxu0 0
      %404 = vmatprep.subr.bf16.mxu0 0
      %405 = vmatpush1.bf16.xpose.msra.mxu0 0
      %406 = vmatprep.subr.bf16.mxu0 0
      %407 = vmatpush1.bf16.xpose.msra.mxu0 0
      %408 = vmatprep.subr.bf16.mxu0 0
      %409 = vmatpush1.bf16.xpose.msra.mxu0 0
      %410 = vmatprep.subr.bf16.mxu0 0
      %411 = vmatpush1.bf16.xpose.msra.mxu0 0
      %412 = vmatprep.subr.bf16.mxu0 0
      %413 = vmatpush1.bf16.xpose.msra.mxu0 0
      %414 = vmatprep.subr.bf16.mxu0 0
      %415 = vmatpush1.bf16.xpose.msra.mxu0 0
      %416 = vmatprep.subr.bf16.mxu0 0
      %417 = vmatpush1.bf16.xpose.msra.mxu0 0
      %418 = vmatprep.subr.bf16.mxu0 0
      %419 = vmatpush1.bf16.xpose.msra.mxu0 0
      %420 = vmatprep.subr.bf16.mxu0 0
      %421 = vmatpush1.bf16.xpose.msra.mxu0 0
      %422 = vmatprep.subr.bf16.mxu0 0
      %423 = vmatpush1.bf16.xpose.msra.mxu0 0
      %424 = vmatprep.subr.bf16.mxu0 0
      %425 = vmatpush1.bf16.xpose.msra.mxu0 0
      %426 = vmatprep.subr.bf16.mxu0 0
      %427 = vmatpush1.bf16.xpose.msra.mxu0 0
      %428 = vmatprep.mubr.bf16.mxu0 0
      %429 = vmatmul.mubr.bf16.gmra.mrb[0].mxu0 %v391
      %v430 = vpop.f32.mrb[0].mxu0
      %v431 = vadd.f32 0.0, %v430
      %v432 = vpop.f32.mrb[0].mxu0
      %v433 = vpop.f32.mrb[0].mxu0
      %v434 = vadd.f32 0.0, %v433
      %v435 = vpop.f32.mrb[0].mxu0
      %436 = vdwg.mxu0
      %v437 = vmul.f32 %v431, 0.17677669
      %v438 = vmul.f32 %v434, 0.17677669
      %v439 = vsel %vm180, %v437, -inf
      %440 = vmax.xlane.f32.xlu0 %v439
      %v441 = vpop.xlane.xlu0 %440
      %v442 = vsel %vm184, %v438, -inf
      %443 = vmax.xlane.f32.xlu0 %v442
      %v444 = vpop.xlane.xlu0 %443
      %v445 = vsub.f32 %v437, %v441
      %v446 = vsub.f32 %v438, %v444
      %v447 = vmul.f32 %v445, 1.442695
      %v448 = vpow.pop %v447
      %v449 = vmul.f32 %v446, 1.442695
      %v450 = vpow.pop %v449
      %v451 = vsel %vm180, %v448, 0.0
      %452 = vadd.xlane.f32.xlu0 %v451
      %v453 = vpop.xlane.xlu0 %452
      %v454 = vsel %vm184, %v450, 0.0
      %455 = vadd.xlane.f32.xlu0 %v454
      %v456 = vpop.xlane.xlu0 %455
      %v457 = vrcp.pop %v453
      %v458 = vrcp.pop %v456
      %v459 = vmul.f32 %v448, %v457
      %v460 = vmul.f32 %v450, %v458
      %v461 = vpack.c.bf16 %v460, %v459
      %462 = vrot.lane.b32.xlu0 %v209, 64
      %v463 = vpop.permute.xlu0 %462
      %v465 = vsel %vm180, %v461, 0
      %v468 = vand.u32 %v463, %v216
      %470 = vmatprep.subr.bf16.mxu0 0
      %471 = vmatpush1.bf16.msra.mxu0 %v468
      %472 = vmatprep.subr.bf16.mxu0 0
      %473 = vmatpush1.bf16.msra.mxu0 0
      %474 = vmatprep.subr.bf16.mxu0 0
      %475 = vmatpush1.bf16.msra.mxu0 0
      %476 = vmatprep.subr.bf16.mxu0 0
      %477 = vmatpush1.bf16.msra.mxu0 0
      %478 = vmatprep.subr.bf16.mxu0 0
      %479 = vmatpush1.bf16.msra.mxu0 0
      %480 = vmatprep.subr.bf16.mxu0 0
      %481 = vmatpush1.bf16.msra.mxu0 0
      %482 = vmatprep.subr.bf16.mxu0 0
      %483 = vmatpush1.bf16.msra.mxu0 0
      %484 = vmatprep.subr.bf16.mxu0 0
      %485 = vmatpush1.bf16.msra.mxu0 0
      %486 = vmatprep.subr.bf16.mxu0 0
      %487 = vmatpush1.bf16.msra.mxu0 0
      %488 = vmatprep.subr.bf16.mxu0 0
      %489 = vmatpush1.bf16.msra.mxu0 0
      %490 = vmatprep.subr.bf16.mxu0 0
      %491 = vmatpush1.bf16.msra.mxu0 0
      %492 = vmatprep.subr.bf16.mxu0 0
      %493 = vmatpush1.bf16.msra.mxu0 0
      %494 = vmatprep.subr.bf16.mxu0 0
      %495 = vmatpush1.bf16.msra.mxu0 0
      %496 = vmatprep.subr.bf16.mxu0 0
      %497 = vmatpush1.bf16.msra.mxu0 0
      %498 = vmatprep.subr.bf16.mxu0 0
      %499 = vmatpush1.bf16.msra.mxu0 0
      %500 = vmatprep.subr.bf16.mxu0 0
      %501 = vmatpush1.bf16.msra.mxu0 0
      %502 = vmatprep.mubr.bf16.mxu0 0
      %503 = vmatmul.mubr.bf16.gmra.mrb[0].mxu0 %v465
      %v504 = vpop.f32.mrb[0].mxu0
      %v505 = vadd.f32 0.0, %v504
      %v506 = vpop.f32.mrb[0].mxu0
      %v507 = vpop.f32.mrb[0].mxu0
      %v508 = vadd.f32 0.0, %v507
      %v509 = vpop.f32.mrb[0].mxu0
      %510 = vdwg.mxu0
      %511 = vrot.lane.b32.xlu0 %v126, 32
      %v512 = vpop.permute.xlu0 %511
      %513 = vrot.lane.b32.xlu0 %v129, 32
      %v514 = vpop.permute.xlu0 %513
      %v516 = vsel %vm130, %v512, 0
      %v519 = vsel %vm130, %v514, 0
      %521 = vmatprep.subr.bf16.mxu0 0
      %522 = vmatpush1.bf16.xpose.msra.mxu0 %v519
      %523 = vmatprep.subr.bf16.mxu0 0
      %524 = vmatpush1.bf16.xpose.msra.mxu0 0
      %525 = vmatprep.subr.bf16.mxu0 0
      %526 = vmatpush1.bf16.xpose.msra.mxu0 0
      %527 = vmatprep.subr.bf16.mxu0 0
      %528 = vmatpush1.bf16.xpose.msra.mxu0 0
      %529 = vmatprep.subr.bf16.mxu0 0
      %530 = vmatpush1.bf16.xpose.msra.mxu0 0
      %531 = vmatprep.subr.bf16.mxu0 0
      %532 = vmatpush1.bf16.xpose.msra.mxu0 0
      %533 = vmatprep.subr.bf16.mxu0 0
      %534 = vmatpush1.bf16.xpose.msra.mxu0 0
      %535 = vmatprep.subr.bf16.mxu0 0
      %536 = vmatpush1.bf16.xpose.msra.mxu0 0
      %537 = vmatprep.subr.bf16.mxu0 0
      %538 = vmatpush1.bf16.xpose.msra.mxu0 0
      %539 = vmatprep.subr.bf16.mxu0 0
      %540 = vmatpush1.bf16.xpose.msra.mxu0 0
      %541 = vmatprep.subr.bf16.mxu0 0
      %542 = vmatpush1.bf16.xpose.msra.mxu0 0
      %543 = vmatprep.subr.bf16.mxu0 0
      %544 = vmatpush1.bf16.xpose.msra.mxu0 0
      %545 = vmatprep.subr.bf16.mxu0 0
      %546 = vmatpush1.bf16.xpose.msra.mxu0 0
      %547 = vmatprep.subr.bf16.mxu0 0
      %548 = vmatpush1.bf16.xpose.msra.mxu0 0
      %549 = vmatprep.subr.bf16.mxu0 0
      %550 = vmatpush1.bf16.xpose.msra.mxu0 0
      %551 = vmatprep.subr.bf16.mxu0 0
      %552 = vmatpush1.bf16.xpose.msra.mxu0 0
      %553 = vmatprep.mubr.bf16.mxu0 0
      %554 = vmatmul.mubr.bf16.gmra.mrb[0].mxu0 %v516
      %v555 = vpop.f32.mrb[0].mxu0
      %v556 = vadd.f32 0.0, %v555
      %v557 = vpop.f32.mrb[0].mxu0
      %v558 = vpop.f32.mrb[0].mxu0
      %v559 = vadd.f32 0.0, %v558
      %v560 = vpop.f32.mrb[0].mxu0
      %561 = vdwg.mxu0
      %v562 = vmul.f32 %v556, 0.17677669
      %v563 = vmul.f32 %v559, 0.17677669
      %v564 = vsel %vm180, %v562, -inf
      %565 = vmax.xlane.f32.xlu0 %v564
      %v566 = vpop.xlane.xlu0 %565
      %v567 = vsel %vm184, %v563, -inf
      %568 = vmax.xlane.f32.xlu0 %v567
      %v569 = vpop.xlane.xlu0 %568
      %v570 = vsub.f32 %v562, %v566
      %v571 = vsub.f32 %v563, %v569
      %v572 = vmul.f32 %v570, 1.442695
      %v573 = vpow.pop %v572
      %v574 = vmul.f32 %v571, 1.442695
      %v575 = vpow.pop %v574
      %v576 = vsel %vm180, %v573, 0.0
      %577 = vadd.xlane.f32.xlu0 %v576
      %v578 = vpop.xlane.xlu0 %577
      %v579 = vsel %vm184, %v575, 0.0
      %580 = vadd.xlane.f32.xlu0 %v579
      %v581 = vpop.xlane.xlu0 %580
      %v582 = vrcp.pop %v578
      %v583 = vrcp.pop %v581
      %v584 = vmul.f32 %v573, %v582
      %v585 = vmul.f32 %v575, %v583
      %v586 = vpack.c.bf16 %v585, %v584
      %587 = vrot.lane.b32.xlu0 %v209, 32
      %v588 = vpop.permute.xlu0 %587
      %v590 = vsel %vm180, %v586, 0
      %v593 = vand.u32 %v588, %v216
      %595 = vmatprep.subr.bf16.mxu0 0
      %596 = vmatpush1.bf16.msra.mxu0 %v593
      %597 = vmatprep.subr.bf16.mxu0 0
      %598 = vmatpush1.bf16.msra.mxu0 0
      %599 = vmatprep.subr.bf16.mxu0 0
      %600 = vmatpush1.bf16.msra.mxu0 0
      %601 = vmatprep.subr.bf16.mxu0 0
      %602 = vmatpush1.bf16.msra.mxu0 0
      %603 = vmatprep.subr.bf16.mxu0 0
      %604 = vmatpush1.bf16.msra.mxu0 0
      %605 = vmatprep.subr.bf16.mxu0 0
      %606 = vmatpush1.bf16.msra.mxu0 0
      %607 = vmatprep.subr.bf16.mxu0 0
      %608 = vmatpush1.bf16.msra.mxu0 0
      %609 = vmatprep.subr.bf16.mxu0 0
      %610 = vmatpush1.bf16.msra.mxu0 0
      %611 = vmatprep.subr.bf16.mxu0 0
      %612 = vmatpush1.bf16.msra.mxu0 0
      %613 = vmatprep.subr.bf16.mxu0 0
      %614 = vmatpush1.bf16.msra.mxu0 0
      %615 = vmatprep.subr.bf16.mxu0 0
      %616 = vmatpush1.bf16.msra.mxu0 0
      %617 = vmatprep.subr.bf16.mxu0 0
      %618 = vmatpush1.bf16.msra.mxu0 0
      %619 = vmatprep.subr.bf16.mxu0 0
      %620 = vmatpush1.bf16.msra.mxu0 0
      %621 = vmatprep.subr.bf16.mxu0 0
      %622 = vmatpush1.bf16.msra.mxu0 0
      %623 = vmatprep.subr.bf16.mxu0 0
      %624 = vmatpush1.bf16.msra.mxu0 0
      %625 = vmatprep.subr.bf16.mxu0 0
      %626 = vmatpush1.bf16.msra.mxu0 0
      %627 = vmatprep.mubr.bf16.mxu0 0
      %628 = vmatmul.mubr.bf16.gmra.mrb[0].mxu0 %v590
      %v629 = vpop.f32.mrb[0].mxu0
      %v630 = vadd.f32 0.0, %v629
      %v631 = vpop.f32.mrb[0].mxu0
      %v632 = vpop.f32.mrb[0].mxu0
      %v633 = vadd.f32 0.0, %v632
      %v634 = vpop.f32.mrb[0].mxu0
      %635 = vdwg.mxu0
      %638 = vrot.lane.b32.xlu0 %v380, 32
      %v639 = vpop.permute.xlu0 %638
      %640 = vrot.lane.b32.xlu0 %v383, 32
      %v641 = vpop.permute.xlu0 %640
      %646 = vrot.lane.b32.xlu0 %v505, 64
      %v647 = vpop.permute.xlu0 %646
      %648 = vrot.lane.b32.xlu0 %v508, 64
      %v649 = vpop.permute.xlu0 %648
      %654 = vrot.lane.b32.xlu0 %v630, 96
      %v655 = vpop.permute.xlu0 %654
      %656 = vrot.lane.b32.xlu0 %v633, 96
      %v657 = vpop.permute.xlu0 %656
      %v660 = vsel %vm130, %v255, %v639
      %v661 = vsel %vm130, %v258, %v641
      %vm662 = vcmask 523264
      %v663 = vsel %vm662, %v660, %v647
      %v664 = vsel %vm662, %v661, %v649
      %vm665 = vcmask 785408
      %v666 = vsel %vm665, %v663, %v655
      %v667 = vsel %vm665, %v664, %v657
      %v668 = vpack.c.bf16 %v667, %v666
      %v670 = vunpack.c.l.b16 %v668
      %v671 = vunpack.c.h.b16 %v668
      %v672 = vpack.c.b16 %v670, %v670
      %v673 = vpack.c.b16 %v671, %v671
      %676 = vst [vmem:[%s116] sm:$0xf] %v672
      %vm677 = vcmask 1040384
      %vm678 = vsmask.f32 256
      %vm679 = vmand %vm677, %vm678
      %v680 = vld [vmem:[%s116 + $0x4] sm:$0x1]
      %v681 = vsel %vm679, %v673, %v680
      %682 = vst [vmem:[%s116 + $0x4] sm:$0x1] %v681
      %p683 = scmp.lt.s32.totalorder %s12, 1
      %s684 = scalar_select %p683, %s12, 1
      %s685 = smul.addr %s684, 2
      %s686 = smul.addr %s685, 4
      %s687 = scalar_lea.vmem %s1, %s686
      // Predicated region
      $region25: #{vit_forward.12} parent=23 // pred_check
        %p688 = pneg %p56
      $region26: #{vit_forward.12} parent=23 // pred_check_branch
        %690 = sbr.rel (%p688) target = $region28
      $region27: #{vit_forward.12} parent=23 // pred_region
        _
      $region28: #{vit_forward.12} parent=23 // pred_fallthru
        _
    $region24: #{vit_forward.12} parent=5 // pred_fallthru
      _
    %p691 = scmp.le.s32.totalorder 2, %s7
    // Predicated region
    $region29: #{vit_forward.12} parent=5 // pred_check
      %p692 = pneg %p691
    $region30: #{vit_forward.12} parent=5 // pred_check_branch
      %694 = sbr.rel (%p692) target = $region32
    $region31: #{vit_forward.12} parent=5 // pred_region
      %s695 = ssub.s32 %s7, 2
      // Predicated region
      $region33: #{vit_forward.12} parent=31 // pred_check
        %p696 = pneg %p62
      $region34: #{vit_forward.12} parent=31 // pred_check_branch
        %698 = sbr.rel (%p696) target = $region36
      $region35: #{vit_forward.12} parent=31 // pred_region
        %p699 = scmp.lt.s32.totalorder %s13, 1
        %s700 = scalar_select %p699, %s13, 1
        %s701 = smul.addr %s700, 2
        %s702 = smul.addr %s701, 4
        %s703 = scalar_lea.vmem %s1, %s702
      $region36: #{vit_forward.12} parent=31 // pred_fallthru
        _
    $region32: #{vit_forward.12} parent=5 // pred_fallthru
      _
  $region6: #{vit_forward.12} parent=0 // loop_footer
    %s11 = sadd.s32 1, %s7
  $region7: #{vit_forward.12} parent=0 // loop_footer_branch
    %6 = sbr.rel target = $region3
  $region8: #{vit_forward.12} parent=0 // loop_exit
    _

// kernel: vit_forward.13
$region0: #{vit_forward.13}
  #allocation0 [shape = 'u32[]', space=smem, size = 0x4, offset = 0x4, fixed_abs, tag = 'smem constant byte address 0x4 - core index']
  #allocation1 [shape = 'u32[144,128]{1,0:T(1,128)}', space=vmem, size = 0x12000, scoped, tag = 'internal scratch']
  #allocation2 [shape = 'f32[24,128]{1,0:T(8,128)}', space=vmem, size = 0x3000, scoped, tag = 'scratch operand']
  %s0 = inlined_call_operand.vmem [shape: bf16[24,128], index: 0, kind: input, shape index: {}]
  %s1 = inlined_call_operand.vmem [shape: bf16[128,128], index: 1, kind: input, shape index: {}]
  %s2 = inlined_call_operand.vmem [shape: f32[1,128], index: 2, kind: input, shape index: {}]
  %s3 = inlined_call_operand.vmem [shape: bf16[24,128], index: 3, kind: input, shape index: {}]
  %s4 = inlined_call_operand.vmem [shape: bf16[24,128], index: 4, kind: output, shape index: {}]
  %s5 = sld [smem:[#allocation0]]
  $region34: #{vit_forward.13} parent=0
    _
  %s7 = ssub.s32 1, %s5
  %s8 = scalar_select 0, %s7, %s5
  // Predicated region
  $region2: #{vit_forward.13} parent=0 // pred_check
    _
  $region3: #{vit_forward.13} parent=0 // pred_check_branch
    %10 = sbr.rel (0) target = $region5
  $region4: #{vit_forward.13} parent=0 // pred_region
    _
  $region5: #{vit_forward.13} parent=0 // pred_fallthru
    _
  // Predicated region
  $region6: #{vit_forward.13} parent=0 // pred_check
    _
  $region7: #{vit_forward.13} parent=0 // pred_check_branch
    %12 = sbr.rel (0) target = $region9
  $region8: #{vit_forward.13} parent=0 // pred_region
    _
  $region9: #{vit_forward.13} parent=0 // pred_fallthru
    _
  // Predicated region
  $region10: #{vit_forward.13} parent=0 // pred_check
    _
  $region11: #{vit_forward.13} parent=0 // pred_check_branch
    %14 = sbr.rel (0) target = $region13
  $region12: #{vit_forward.13} parent=0 // pred_region
    _
  $region13: #{vit_forward.13} parent=0 // pred_fallthru
    _
  // Predicated region
  $region14: #{vit_forward.13} parent=0 // pred_check
    _
  $region15: #{vit_forward.13} parent=0 // pred_check_branch
    %16 = sbr.rel (0) target = $region17
  $region16: #{vit_forward.13} parent=0 // pred_region
    _
  $region17: #{vit_forward.13} parent=0 // pred_fallthru
    _
  %p18 = scmp.eq.s32.totalorder 0, 0
  // Predicated region
  $region18: #{vit_forward.13} parent=0 // pred_check
    %p19 = pneg %p18
  $region19: #{vit_forward.13} parent=0 // pred_check_branch
    %21 = sbr.rel (%p19) target = $region21
  $region20: #{vit_forward.13} parent=0 // pred_region
    %22 = vst [vmem:[#allocation2] sm:$0xff] 0.0
    %23 = vst [vmem:[#allocation2 + $0x8] sm:$0xff] 0.0
    %24 = vst [vmem:[#allocation2 + $0x10] sm:$0xff] 0.0
  $region21: #{vit_forward.13} parent=0 // pred_fallthru
    _
  %v25 = vld [vmem:[#allocation2] sm:$0xff]
  %v26 = vld [vmem:[#allocation2 + $0x8] sm:$0xff]
  %v27 = vld [vmem:[#allocation2 + $0x10] sm:$0xff]
  %v28 = vld [vmem:[%s0] sm:$0xf]
  %v29 = vld [vmem:[%s0 + $0x4] sm:$0xf]
  %v30 = vld [vmem:[%s0 + $0x8] sm:$0xf]
  %v31 = vld [vmem:[%s1] sm:$0xf]
  %v32 = vld [vmem:[%s1 + $0x4] sm:$0xf]
  %v33 = vld [vmem:[%s1 + $0x8] sm:$0xf]
  %v34 = vld [vmem:[%s1 + $0xc] sm:$0xf]
  %v35 = vld [vmem:[%s1 + $0x10] sm:$0xf]
  %v36 = vld [vmem:[%s1 + $0x14] sm:$0xf]
  %v37 = vld [vmem:[%s1 + $0x18] sm:$0xf]
  %v38 = vld [vmem:[%s1 + $0x1c] sm:$0xf]
  %v39 = vld [vmem:[%s1 + $0x20] sm:$0xf]
  %v40 = vld [vmem:[%s1 + $0x24] sm:$0xf]
  %v41 = vld [vmem:[%s1 + $0x28] sm:$0xf]
  %v42 = vld [vmem:[%s1 + $0x2c] sm:$0xf]
  %v43 = vld [vmem:[%s1 + $0x30] sm:$0xf]
  %v44 = vld [vmem:[%s1 + $0x34] sm:$0xf]
  %v45 = vld [vmem:[%s1 + $0x38] sm:$0xf]
  %v46 = vld [vmem:[%s1 + $0x3c] sm:$0xf]
  %v50 = vunpack.c.l.b16 %v28
  %v51 = vunpack.c.l.b16 %v29
  %v52 = vunpack.c.l.b16 %v30
  %v53 = vpack.c.b16 %v51, %v50
  %v54 = vpack.c.b16 %v52, %v52
  %v73 = vunpack.c.l.b16 %v31
  %v74 = vunpack.c.l.b16 %v32
  %v75 = vunpack.c.l.b16 %v33
  %v76 = vunpack.c.l.b16 %v34
  %v77 = vunpack.c.l.b16 %v35
  %v78 = vunpack.c.l.b16 %v36
  %v79 = vunpack.c.l.b16 %v37
  %v80 = vunpack.c.l.b16 %v38
  %v81 = vunpack.c.l.b16 %v39
  %v82 = vunpack.c.l.b16 %v40
  %v83 = vunpack.c.l.b16 %v41
  %v84 = vunpack.c.l.b16 %v42
  %v85 = vunpack.c.l.b16 %v43
  %v86 = vunpack.c.l.b16 %v44
  %v87 = vunpack.c.l.b16 %v45
  %v88 = vunpack.c.l.b16 %v46
  %v89 = vpack.c.b16 %v74, %v73
  %v90 = vpack.c.b16 %v76, %v75
  %v91 = vpack.c.b16 %v78, %v77
  %v92 = vpack.c.b16 %v80, %v79
  %v93 = vpack.c.b16 %v82, %v81
  %v94 = vpack.c.b16 %v84, %v83
  %v95 = vpack.c.b16 %v86, %v85
  %v96 = vpack.c.b16 %v88, %v87
  %105 = vmatprep.subr.bf16.mxu0 0
  %106 = vmatpush1.bf16.msra.mxu0 %v89
  %107 = vmatprep.subr.bf16.mxu0 0
  %108 = vmatpush1.bf16.msra.mxu0 %v90
  %109 = vmatprep.subr.bf16.mxu0 0
  %110 = vmatpush1.bf16.msra.mxu0 %v91
  %111 = vmatprep.subr.bf16.mxu0 0
  %112 = vmatpush1.bf16.msra.mxu0 %v92
  %113 = vmatprep.subr.bf16.mxu0 0
  %114 = vmatpush1.bf16.msra.mxu0 %v93
  %115 = vmatprep.subr.bf16.mxu0 0
  %116 = vmatpush1.bf16.msra.mxu0 %v94
  %117 = vmatprep.subr.bf16.mxu0 0
  %118 = vmatpush1.bf16.msra.mxu0 %v95
  %119 = vmatprep.subr.bf16.mxu0 0
  %120 = vmatpush1.bf16.msra.mxu0 %v96
  %121 = vmatprep.subr.bf16.mxu0 0
  %122 = vmatpush1.bf16.msra.mxu0 0
  %123 = vmatprep.subr.bf16.mxu0 0
  %124 = vmatpush1.bf16.msra.mxu0 0
  %125 = vmatprep.subr.bf16.mxu0 0
  %126 = vmatpush1.bf16.msra.mxu0 0
  %127 = vmatprep.subr.bf16.mxu0 0
  %128 = vmatpush1.bf16.msra.mxu0 0
  %129 = vmatprep.subr.bf16.mxu0 0
  %130 = vmatpush1.bf16.msra.mxu0 0
  %131 = vmatprep.subr.bf16.mxu0 0
  %132 = vmatpush1.bf16.msra.mxu0 0
  %133 = vmatprep.subr.bf16.mxu0 0
  %134 = vmatpush1.bf16.msra.mxu0 0
  %135 = vmatprep.subr.bf16.mxu0 0
  %136 = vmatpush1.bf16.msra.mxu0 0
  %137 = vmatprep.mubr.bf16.mxu0 0
  %138 = vmatmul.mubr.bf16.gmra.mrb[0].mxu0 %v53
  %v139 = vpop.f32.mrb[0].mxu0
  %v140 = vadd.f32 0.0, %v139
  %v141 = vpop.f32.mrb[0].mxu0
  %v142 = vpop.f32.mrb[0].mxu0
  %v143 = vadd.f32 0.0, %v142
  %v144 = vpop.f32.mrb[0].mxu0
  %145 = vmatprep.mubr.bf16.mxu0 0
  %146 = vmatmul.mubr.bf16.gmra.mrb[0].mxu0 %v54
  %v147 = vpop.f32.mrb[0].mxu0
  %v148 = vadd.f32 0.0, %v147
  %v149 = vpop.f32.mrb[0].mxu0
  %v150 = vpop.f32.mrb[0].mxu0
  %v151 = vpop.f32.mrb[0].mxu0
  %152 = vdwg.mxu0
  %v153 = vadd.f32 %v25, %v140
  %v154 = vadd.f32 %v26, %v143
  %v155 = vadd.f32 %v27, %v148
  %156 = vst [vmem:[#allocation2] sm:$0xff] %v153
  %157 = vst [vmem:[#allocation2 + $0x8] sm:$0xff] %v154
  %158 = vst [vmem:[#allocation2 + $0x10] sm:$0xff] %v155
  // Predicated region
  $region22: #{vit_forward.13} parent=0 // pred_check
    %p159 = pneg %p18
  $region23: #{vit_forward.13} parent=0 // pred_check_branch
    %161 = sbr.rel (%p159) target = $region25
  $region24: #{vit_forward.13} parent=0 // pred_region
    %v162 = vld [vmem:[#allocation2] sm:$0xff]
    %v163 = vld [vmem:[#allocation2 + $0x8] sm:$0xff]
    %v164 = vld [vmem:[#allocation2 + $0x10] sm:$0xff]
    %v165 = vld [vmem:[%s2] sm:$0x1]
    %v167 = vlaneseq
    %v168 = vshrl.u32 %v167, 7
    %v169 = vsub.s32 0, %v168
    %v170 = vrot.slane %v165, %v169
    %v172 = vadd.f32 %v162, %v170
    %v173 = vadd.f32 %v163, %v170
    %v174 = vadd.f32 %v164, %v170
    %v175 = vld [vmem:[%s3] sm:$0xf]
    %v176 = vld [vmem:[%s3 + $0x4] sm:$0xf]
    %v177 = vld [vmem:[%s3 + $0x8] sm:$0xf]
    %v178 = vunpack.c.l.bf16 %v175
    %v179 = vunpack.c.l.bf16 %v176
    %v180 = vunpack.c.l.bf16 %v177
    %v181 = vadd.f32 %v172, %v178
    %v182 = vadd.f32 %v173, %v179
    %v183 = vadd.f32 %v174, %v180
    %v184 = vpack.c.bf16 %v182, %v181
    %v185 = vpack.c.bf16 %v183, %v183
    %v188 = vunpack.c.l.b16 %v184
    %v189 = vunpack.c.h.b16 %v184
    %v190 = vunpack.c.l.b16 %v185
    %v191 = vpack.c.b16 %v188, %v188
    %v192 = vpack.c.b16 %v189, %v189
    %v193 = vpack.c.b16 %v190, %v190
    %197 = vst [vmem:[%s4] sm:$0xf] %v191
    %198 = vst [vmem:[%s4 + $0x4] sm:$0xf] %v192
    %199 = vst [vmem:[%s4 + $0x8] sm:$0xf] %v193
  $region25: #{vit_forward.13} parent=0 // pred_fallthru
    _
  // Predicated region
  $region26: #{vit_forward.13} parent=0 // pred_check
    _
  $region27: #{vit_forward.13} parent=0 // pred_check_branch
    %201 = sbr.rel (0) target = $region29
  $region28: #{vit_forward.13} parent=0 // pred_region
    _
  $region29: #{vit_forward.13} parent=0 // pred_fallthru
    _
  // Predicated region
  $region30: #{vit_forward.13} parent=0 // pred_check
    _
  $region31: #{vit_forward.13} parent=0 // pred_check_branch
    %203 = sbr.rel (0) target = $region33
  $region32: #{vit_forward.13} parent=0 // pred_region
    _
  $region33: #{vit_forward.13} parent=0 // pred_fallthru
    _

// kernel: vit_forward.19
$region0: #{vit_forward.19}
  #allocation0 [shape = 'u32[]', space=smem, size = 0x4, offset = 0x4, fixed_abs, tag = 'smem constant byte address 0x4 - core index']
  #allocation1 [shape = 'u32[144,128]{1,0:T(1,128)}', space=vmem, size = 0x12000, scoped, tag = 'internal scratch']
  %s0 = inlined_call_operand.vmem [shape: bf16[8,128], index: 0, kind: input, shape index: {}]
  %s1 = inlined_call_operand.vmem [shape: f32[1,128], index: 1, kind: input, shape index: {}]
  %s2 = inlined_call_operand.vmem [shape: f32[1,128], index: 2, kind: input, shape index: {}]
  %s3 = inlined_call_operand.vmem [shape: bf16[128,128], index: 3, kind: input, shape index: {}]
  %s4 = inlined_call_operand.vmem [shape: f32[1,128], index: 4, kind: input, shape index: {}]
  %s5 = inlined_call_operand.vmem [shape: f32[8,128], index: 5, kind: output, shape index: {}]
  %s6 = sld [smem:[#allocation0]]
  $region30: #{vit_forward.19} parent=0
    _
  %s8 = ssub.s32 1, %s6
  %s9 = scalar_select 0, %s8, %s6
  // Predicated region
  $region2: #{vit_forward.19} parent=0 // pred_check
    _
  $region3: #{vit_forward.19} parent=0 // pred_check_branch
    %11 = sbr.rel (0) target = $region5
  $region4: #{vit_forward.19} parent=0 // pred_region
    _
  $region5: #{vit_forward.19} parent=0 // pred_fallthru
    _
  // Predicated region
  $region6: #{vit_forward.19} parent=0 // pred_check
    _
  $region7: #{vit_forward.19} parent=0 // pred_check_branch
    %13 = sbr.rel (0) target = $region9
  $region8: #{vit_forward.19} parent=0 // pred_region
    _
  $region9: #{vit_forward.19} parent=0 // pred_fallthru
    _
  // Predicated region
  $region10: #{vit_forward.19} parent=0 // pred_check
    _
  $region11: #{vit_forward.19} parent=0 // pred_check_branch
    %15 = sbr.rel (0) target = $region13
  $region12: #{vit_forward.19} parent=0 // pred_region
    _
  $region13: #{vit_forward.19} parent=0 // pred_fallthru
    _
  // Predicated region
  $region14: #{vit_forward.19} parent=0 // pred_check
    _
  $region15: #{vit_forward.19} parent=0 // pred_check_branch
    %17 = sbr.rel (0) target = $region17
  $region16: #{vit_forward.19} parent=0 // pred_region
    _
  $region17: #{vit_forward.19} parent=0 // pred_fallthru
    _
  // Predicated region
  $region18: #{vit_forward.19} parent=0 // pred_check
    _
  $region19: #{vit_forward.19} parent=0 // pred_check_branch
    %19 = sbr.rel (0) target = $region21
  $region20: #{vit_forward.19} parent=0 // pred_region
    _
  $region21: #{vit_forward.19} parent=0 // pred_fallthru
    _
  %v21 = vld [vmem:[%s0] sm:$0xf]
  %v22 = vunpack.c.l.bf16 %v21
  %23 = vadd.xlane.f32.xlu0 %v22
  %v24 = vpop.xlane.xlu0 %23
  %v25 = vrcp.pop 128.0
  %v26 = vmul.f32 %v24, %v25
  %v27 = vsub.f32 %v22, %v26
  %v28 = vmul.f32 %v27, %v27
  %29 = vadd.xlane.f32.xlu0 %v28
  %v30 = vpop.xlane.xlu0 %29
  %v31 = vmul.f32 %v30, %v25
  %v32 = vadd.f32 %v31, 1e-05
  %v33 = vrsqrt.pop %v32
  %v34 = vmul.f32 %v27, %v33
  %v35 = vld [vmem:[%s1] sm:$0x1]
  %v37 = vlaneseq
  %v38 = vshrl.u32 %v37, 7
  %v39 = vsub.s32 0, %v38
  %v40 = vrot.slane %v35, %v39
  %v42 = vmul.f32 %v34, %v40
  %v43 = vld [vmem:[%s2] sm:$0x1]
  %v45 = vlaneseq
  %v46 = vshrl.u32 %v45, 7
  %v47 = vsub.s32 0, %v46
  %v48 = vrot.slane %v43, %v47
  %v50 = vadd.f32 %v42, %v48
  %v51 = vpack.c.bf16 %v50, %v50
  %v52 = vld [vmem:[%s3] sm:$0xf]
  %v53 = vld [vmem:[%s3 + $0x4] sm:$0xf]
  %v54 = vld [vmem:[%s3 + $0x8] sm:$0xf]
  %v55 = vld [vmem:[%s3 + $0xc] sm:$0xf]
  %v56 = vld [vmem:[%s3 + $0x10] sm:$0xf]
  %v57 = vld [vmem:[%s3 + $0x14] sm:$0xf]
  %v58 = vld [vmem:[%s3 + $0x18] sm:$0xf]
  %v59 = vld [vmem:[%s3 + $0x1c] sm:$0xf]
  %v60 = vld [vmem:[%s3 + $0x20] sm:$0xf]
  %v61 = vld [vmem:[%s3 + $0x24] sm:$0xf]
  %v62 = vld [vmem:[%s3 + $0x28] sm:$0xf]
  %v63 = vld [vmem:[%s3 + $0x2c] sm:$0xf]
  %v64 = vld [vmem:[%s3 + $0x30] sm:$0xf]
  %v65 = vld [vmem:[%s3 + $0x34] sm:$0xf]
  %v66 = vld [vmem:[%s3 + $0x38] sm:$0xf]
  %v67 = vld [vmem:[%s3 + $0x3c] sm:$0xf]
  %v68 = vld [vmem:[%s4] sm:$0x1]
  %v70 = vlaneseq
  %v71 = vshrl.u32 %v70, 7
  %v72 = vsub.s32 0, %v71
  %v73 = vrot.slane %v68, %v72
  %v91 = vunpack.c.l.b16 %v52
  %v92 = vunpack.c.l.b16 %v53
  %v93 = vunpack.c.l.b16 %v54
  %v94 = vunpack.c.l.b16 %v55
  %v95 = vunpack.c.l.b16 %v56
  %v96 = vunpack.c.l.b16 %v57
  %v97 = vunpack.c.l.b16 %v58
  %v98 = vunpack.c.l.b16 %v59
  %v99 = vunpack.c.l.b16 %v60
  %v100 = vunpack.c.l.b16 %v61
  %v101 = vunpack.c.l.b16 %v62
  %v102 = vunpack.c.l.b16 %v63
  %v103 = vunpack.c.l.b16 %v64
  %v104 = vunpack.c.l.b16 %v65
  %v105 = vunpack.c.l.b16 %v66
  %v106 = vunpack.c.l.b16 %v67
  %v107 = vpack.c.b16 %v92, %v91
  %v108 = vpack.c.b16 %v94, %v93
  %v109 = vpack.c.b16 %v96, %v95
  %v110 = vpack.c.b16 %v98, %v97
  %v111 = vpack.c.b16 %v100, %v99
  %v112 = vpack.c.b16 %v102, %v101
  %v113 = vpack.c.b16 %v104, %v103
  %v114 = vpack.c.b16 %v106, %v105
  %123 = vmatprep.subr.bf16.mxu0 0
  %124 = vmatpush1.bf16.msra.mxu0 %v107
  %125 = vmatprep.subr.bf16.mxu0 0
  %126 = vmatpush1.bf16.msra.mxu0 %v108
  %127 = vmatprep.subr.bf16.mxu0 0
  %128 = vmatpush1.bf16.msra.mxu0 %v109
  %129 = vmatprep.subr.bf16.mxu0 0
  %130 = vmatpush1.bf16.msra.mxu0 %v110
  %131 = vmatprep.subr.bf16.mxu0 0
  %132 = vmatpush1.bf16.msra.mxu0 %v111
  %133 = vmatprep.subr.bf16.mxu0 0
  %134 = vmatpush1.bf16.msra.mxu0 %v112
  %135 = vmatprep.subr.bf16.mxu0 0
  %136 = vmatpush1.bf16.msra.mxu0 %v113
  %137 = vmatprep.subr.bf16.mxu0 0
  %138 = vmatpush1.bf16.msra.mxu0 %v114
  %139 = vmatprep.subr.bf16.mxu0 0
  %140 = vmatpush1.bf16.msra.mxu0 0
  %141 = vmatprep.subr.bf16.mxu0 0
  %142 = vmatpush1.bf16.msra.mxu0 0
  %143 = vmatprep.subr.bf16.mxu0 0
  %144 = vmatpush1.bf16.msra.mxu0 0
  %145 = vmatprep.subr.bf16.mxu0 0
  %146 = vmatpush1.bf16.msra.mxu0 0
  %147 = vmatprep.subr.bf16.mxu0 0
  %148 = vmatpush1.bf16.msra.mxu0 0
  %149 = vmatprep.subr.bf16.mxu0 0
  %150 = vmatpush1.bf16.msra.mxu0 0
  %151 = vmatprep.subr.bf16.mxu0 0
  %152 = vmatpush1.bf16.msra.mxu0 0
  %153 = vmatprep.subr.bf16.mxu0 0
  %154 = vmatpush1.bf16.msra.mxu0 0
  %155 = vmatprep.mubr.bf16.mxu0 0
  %156 = vmatmul.mubr.bf16.gmra.mrb[0].mxu0 %v51
  %v157 = vpop.f32.mrb[0].mxu0
  %v158 = vadd.f32 %v73, %v157
  %v159 = vpop.f32.mrb[0].mxu0
  %v160 = vpop.f32.mrb[0].mxu0
  %v161 = vpop.f32.mrb[0].mxu0
  %162 = vdwg.mxu0
  %163 = vst [vmem:[%s5] sm:$0xff] %v158
  // Predicated region
  $region22: #{vit_forward.19} parent=0 // pred_check
    _
  $region23: #{vit_forward.19} parent=0 // pred_check_branch
    %165 = sbr.rel (0) target = $region25
  $region24: #{vit_forward.19} parent=0 // pred_region
    _
  $region25: #{vit_forward.19} parent=0 // pred_fallthru
    _
  // Predicated region
  $region26: #{vit_forward.19} parent=0 // pred_check
    _
  $region27: #{vit_forward.19} parent=0 // pred_check_branch
    %167 = sbr.rel (0) target = $region29
  $region28: #{vit_forward.19} parent=0 // pred_region
    _
  $region29: #{vit_forward.19} parent=0 // pred_fallthru
    _

// kernel: vit_forward.14
$region0: #{vit_forward.14}
  #allocation0 [shape = 'u32[]', space=smem, size = 0x4, offset = 0x4, fixed_abs, tag = 'smem constant byte address 0x4 - core index']
  #allocation1 [shape = 'u32[144,128]{1,0:T(1,128)}', space=vmem, size = 0x12000, scoped, tag = 'internal scratch']
  #allocation2 [shape = 'f32[24,128]{1,0:T(8,128)}', space=vmem, size = 0x3000, scoped, tag = 'scratch operand']
  #allocation3 [shape = 'bf16[24,128]{1,0:T(8,128)(2,1)}', space=vmem, size = 0x1800, scoped, tag = 'scratch operand']
  %s0 = inlined_call_operand.vmem [shape: bf16[24,128], index: 0, kind: input, shape index: {}]
  %s1 = inlined_call_operand.vmem [shape: f32[1,128], index: 1, kind: input, shape index: {}]
  %s2 = inlined_call_operand.vmem [shape: f32[1,128], index: 2, kind: input, shape index: {}]
  %s3 = inlined_call_operand.vmem [shape: bf16[128,512], index: 3, kind: input, shape index: {}]
  %s4 = inlined_call_operand.vmem [shape: f32[1,512], index: 4, kind: input, shape index: {}]
  %s5 = inlined_call_operand.vmem [shape: bf16[512,128], index: 5, kind: input, shape index: {}]
  %s6 = inlined_call_operand.vmem [shape: f32[1,128], index: 6, kind: input, shape index: {}]
  %s7 = inlined_call_operand.vmem [shape: bf16[24,128], index: 7, kind: output, shape index: {}]
  %s8 = sld [smem:[#allocation0]]
  $region46: #{vit_forward.14} parent=0
    _
  %s10 = ssub.s32 1, %s8
  %s11 = scalar_select 0, %s10, %s8
  // Predicated region
  $region2: #{vit_forward.14} parent=0 // pred_check
    _
  $region3: #{vit_forward.14} parent=0 // pred_check_branch
    %13 = sbr.rel (0) target = $region5
  $region4: #{vit_forward.14} parent=0 // pred_region
    _
  $region5: #{vit_forward.14} parent=0 // pred_fallthru
    _
  // Predicated region
  $region6: #{vit_forward.14} parent=0 // pred_check
    _
  $region7: #{vit_forward.14} parent=0 // pred_check_branch
    %15 = sbr.rel (0) target = $region9
  $region8: #{vit_forward.14} parent=0 // pred_region
    _
  $region9: #{vit_forward.14} parent=0 // pred_fallthru
    _
  // Predicated region
  $region10: #{vit_forward.14} parent=0 // pred_check
    _
  $region11: #{vit_forward.14} parent=0 // pred_check_branch
    %17 = sbr.rel (0) target = $region13
  $region12: #{vit_forward.14} parent=0 // pred_region
    _
  $region13: #{vit_forward.14} parent=0 // pred_fallthru
    _
  // Predicated region
  $region14: #{vit_forward.14} parent=0 // pred_check
    _
  $region15: #{vit_forward.14} parent=0 // pred_check_branch
    %19 = sbr.rel (0) target = $region17
  $region16: #{vit_forward.14} parent=0 // pred_region
    _
  $region17: #{vit_forward.14} parent=0 // pred_fallthru
    _
  // Predicated region
  $region18: #{vit_forward.14} parent=0 // pred_check
    _
  $region19: #{vit_forward.14} parent=0 // pred_check_branch
    %21 = sbr.rel (0) target = $region21
  $region20: #{vit_forward.14} parent=0 // pred_region
    _
  $region21: #{vit_forward.14} parent=0 // pred_fallthru
    _
  // Predicated region
  $region22: #{vit_forward.14} parent=0 // pred_check
    _
  $region23: #{vit_forward.14} parent=0 // pred_check_branch
    %23 = sbr.rel (0) target = $region25
  $region24: #{vit_forward.14} parent=0 // pred_region
    _
  $region25: #{vit_forward.14} parent=0 // pred_fallthru
    _
  // Predicated region
  $region26: #{vit_forward.14} parent=0 // pred_check
    _
  $region27: #{vit_forward.14} parent=0 // pred_check_branch
    %25 = sbr.rel (0) target = $region29
  $region28: #{vit_forward.14} parent=0 // pred_region
    _
  $region29: #{vit_forward.14} parent=0 // pred_fallthru
    _
  %p27 = scmp.eq.s32.totalorder 0, 0
  // Predicated region
  $region30: #{vit_forward.14} parent=0 // pred_check
    %p28 = pneg %p27
  $region31: #{vit_forward.14} parent=0 // pred_check_branch
    %30 = sbr.rel (%p28) target = $region33
  $region32: #{vit_forward.14} parent=0 // pred_region
    %v31 = vld [vmem:[%s0] sm:$0xf]
    %v32 = vld [vmem:[%s0 + $0x4] sm:$0xf]
    %v33 = vld [vmem:[%s0 + $0x8] sm:$0xf]
    %v34 = vunpack.c.l.bf16 %v31
    %v35 = vunpack.c.l.bf16 %v32
    %v36 = vunpack.c.l.bf16 %v33
    %37 = vadd.xlane.f32.xlu0 %v34
    %v38 = vpop.xlane.xlu0 %37
    %39 = vadd.xlane.f32.xlu0 %v35
    %v40 = vpop.xlane.xlu0 %39
    %41 = vadd.xlane.f32.xlu0 %v36
    %v42 = vpop.xlane.xlu0 %41
    %v43 = vrcp.pop 128.0
    %v44 = vmul.f32 %v38, %v43
    %v45 = vmul.f32 %v40, %v43
    %v46 = vmul.f32 %v42, %v43
    %v47 = vsub.f32 %v34, %v44
    %v48 = vsub.f32 %v35, %v45
    %v49 = vsub.f32 %v36, %v46
    %v50 = vmul.f32 %v47, %v47
    %v51 = vmul.f32 %v48, %v48
    %v52 = vmul.f32 %v49, %v49
    %53 = vadd.xlane.f32.xlu0 %v50
    %v54 = vpop.xlane.xlu0 %53
    %55 = vadd.xlane.f32.xlu0 %v51
    %v56 = vpop.xlane.xlu0 %55
    %57 = vadd.xlane.f32.xlu0 %v52
    %v58 = vpop.xlane.xlu0 %57
    %v59 = vmul.f32 %v54, %v43
    %v60 = vmul.f32 %v56, %v43
    %v61 = vmul.f32 %v58, %v43
    %v62 = vadd.f32 %v59, 1e-05
    %v63 = vadd.f32 %v60, 1e-05
    %v64 = vadd.f32 %v61, 1e-05
    %v65 = vrsqrt.pop %v62
    %v66 = vrsqrt.pop %v63
    %v67 = vrsqrt.pop %v64
    %v68 = vmul.f32 %v47, %v65
    %v69 = vmul.f32 %v48, %v66
    %v70 = vmul.f32 %v49, %v67
    %v71 = vld [vmem:[%s1] sm:$0x1]
    %v73 = vlaneseq
    %v74 = vshrl.u32 %v73, 7
    %v75 = vsub.s32 0, %v74
    %v76 = vrot.slane %v71, %v75
    %v78 = vmul.f32 %v68, %v76
    %v79 = vmul.f32 %v69, %v76
    %v80 = vmul.f32 %v70, %v76
    %v81 = vld [vmem:[%s2] sm:$0x1]
    %v83 = vlaneseq
    %v84 = vshrl.u32 %v83, 7
    %v85 = vsub.s32 0, %v84
    %v86 = vrot.slane %v81, %v85
    %v88 = vadd.f32 %v78, %v86
    %v89 = vadd.f32 %v79, %v86
    %v90 = vadd.f32 %v80, %v86
    %v91 = vpack.c.bf16 %v89, %v88
    %v92 = vpack.c.bf16 %v90, %v90
    %v95 = vunpack.c.l.b16 %v91
    %v96 = vunpack.c.h.b16 %v91
    %v97 = vunpack.c.l.b16 %v92
    %v98 = vpack.c.b16 %v95, %v95
    %v99 = vpack.c.b16 %v96, %v96
    %v100 = vpack.c.b16 %v97, %v97
    %104 = vst [vmem:[#allocation3] sm:$0xf] %v98
    %105 = vst [vmem:[#allocation3 + $0x4] sm:$0xf] %v99
    %106 = vst [vmem:[#allocation3 + $0x8] sm:$0xf] %v100
    %107 = vst [vmem:[#allocation2] sm:$0xff] 0.0
    %108 = vst [vmem:[#allocation2 + $0x8] sm:$0xff] 0.0
    %109 = vst [vmem:[#allocation2 + $0x10] sm:$0xff] 0.0
  $region33: #{vit_forward.14} parent=0 // pred_fallthru
    _
  %v110 = vld [vmem:[#allocation3] sm:$0xf]
  %v111 = vld [vmem:[#allocation3 + $0x4] sm:$0xf]
  %v112 = vld [vmem:[#allocation3 + $0x8] sm:$0xf]
  %v113 = vld [vmem:[%s3] sm:$0xff]
  %v114 = vld [vmem:[%s3 + $0x8] sm:$0xff]
  %v115 = vld [vmem:[%s3 + $0x10] sm:$0xff]
  %v116 = vld [vmem:[%s3 + $0x18] sm:$0xff]
  %v117 = vld [vmem:[%s3 + $0x20] sm:$0xff]
  %v118 = vld [vmem:[%s3 + $0x28] sm:$0xff]
  %v119 = vld [vmem:[%s3 + $0x30] sm:$0xff]
  %v120 = vld [vmem:[%s3 + $0x38] sm:$0xff]
  %v121 = vld [vmem:[%s3 + $0x40] sm:$0xff]
  %v122 = vld [vmem:[%s3 + $0x48] sm:$0xff]
  %v123 = vld [vmem:[%s3 + $0x50] sm:$0xff]
  %v124 = vld [vmem:[%s3 + $0x58] sm:$0xff]
  %v125 = vld [vmem:[%s3 + $0x60] sm:$0xff]
  %v126 = vld [vmem:[%s3 + $0x68] sm:$0xff]
  %v127 = vld [vmem:[%s3 + $0x70] sm:$0xff]
  %v128 = vld [vmem:[%s3 + $0x78] sm:$0xff]
  %v129 = vld [vmem:[%s3 + $0x80] sm:$0xff]
  %v130 = vld [vmem:[%s3 + $0x88] sm:$0xff]
  %v131 = vld [vmem:[%s3 + $0x90] sm:$0xff]
  %v132 = vld [vmem:[%s3 + $0x98] sm:$0xff]
  %v133 = vld [vmem:[%s3 + $0xa0] sm:$0xff]
  %v134 = vld [vmem:[%s3 + $0xa8] sm:$0xff]
  %v135 = vld [vmem:[%s3 + $0xb0] sm:$0xff]
  %v136 = vld [vmem:[%s3 + $0xb8] sm:$0xff]
  %v137 = vld [vmem:[%s3 + $0xc0] sm:$0xff]
  %v138 = vld [vmem:[%s3 + $0xc8] sm:$0xff]
  %v139 = vld [vmem:[%s3 + $0xd0] sm:$0xff]
  %v140 = vld [vmem:[%s3 + $0xd8] sm:$0xff]
  %v141 = vld [vmem:[%s3 + $0xe0] sm:$0xff]
  %v142 = vld [vmem:[%s3 + $0xe8] sm:$0xff]
  %v143 = vld [vmem:[%s3 + $0xf0] sm:$0xff]
  %v144 = vld [vmem:[%s3 + $0xf8] sm:$0xff]
  %v145 = vld [vmem:[%s4] sm:$0xf]
  %v147 = vlaneseq
  %v148 = vshrl.u32 %v147, 7
  %v149 = vsub.s32 0, %v148
  %v150 = vrot.slane %v145, %v149
  %v151 = vlaneseq
  %v152 = vshrl.u32 %v151, 7
  %v153 = vsub.s32 1, %v152
  %v154 = vrot.slane %v145, %v153
  %v155 = vlaneseq
  %v156 = vshrl.u32 %v155, 7
  %v157 = vsub.s32 2, %v156
  %v158 = vrot.slane %v145, %v157
  %v159 = vlaneseq
  %v160 = vshrl.u32 %v159, 7
  %v161 = vsub.s32 3, %v160
  %v162 = vrot.slane %v145, %v161
  %v170 = vunpack.c.l.b16 %v110
  %v171 = vunpack.c.l.b16 %v111
  %v172 = vunpack.c.l.b16 %v112
  %v173 = vpack.c.b16 %v171, %v170
  %v174 = vpack.c.b16 %v172, %v172
  %v209 = vunpack.c.l.b16 %v113
  %v210 = vunpack.c.h.b16 %v113
  %v211 = vunpack.c.l.b16 %v114
  %v212 = vunpack.c.h.b16 %v114
  %v213 = vunpack.c.l.b16 %v115
  %v214 = vunpack.c.h.b16 %v115
  %v215 = vunpack.c.l.b16 %v116
  %v216 = vunpack.c.h.b16 %v116
  %v217 = vunpack.c.l.b16 %v117
  %v218 = vunpack.c.h.b16 %v117
  %v219 = vunpack.c.l.b16 %v118
  %v220 = vunpack.c.h.b16 %v118
  %v221 = vunpack.c.l.b16 %v119
  %v222 = vunpack.c.h.b16 %v119
  %v223 = vunpack.c.l.b16 %v120
  %v224 = vunpack.c.h.b16 %v120
  %v225 = vunpack.c.l.b16 %v121
  %v226 = vunpack.c.h.b16 %v121
  %v227 = vunpack.c.l.b16 %v122
  %v228 = vunpack.c.h.b16 %v122
  %v229 = vunpack.c.l.b16 %v123
  %v230 = vunpack.c.h.b16 %v123
  %v231 = vunpack.c.l.b16 %v124
  %v232 = vunpack.c.h.b16 %v124
  %v233 = vunpack.c.l.b16 %v125
  %v234 = vunpack.c.h.b16 %v125
  %v235 = vunpack.c.l.b16 %v126
  %v236 = vunpack.c.h.b16 %v126
  %v237 = vunpack.c.l.b16 %v127
  %v238 = vunpack.c.h.b16 %v127
  %v239 = vunpack.c.l.b16 %v128
  %v240 = vunpack.c.h.b16 %v128
  %v241 = vunpack.c.l.b16 %v129
  %v242 = vunpack.c.h.b16 %v129
  %v243 = vunpack.c.l.b16 %v130
  %v244 = vunpack.c.h.b16 %v130
  %v245 = vunpack.c.l.b16 %v131
  %v246 = vunpack.c.h.b16 %v131
  %v247 = vunpack.c.l.b16 %v132
  %v248 = vunpack.c.h.b16 %v132
  %v249 = vunpack.c.l.b16 %v133
  %v250 = vunpack.c.h.b16 %v133
  %v251 = vunpack.c.l.b16 %v134
  %v252 = vunpack.c.h.b16 %v134
  %v253 = vunpack.c.l.b16 %v135
  %v254 = vunpack.c.h.b16 %v135
  %v255 = vunpack.c.l.b16 %v136
  %v256 = vunpack.c.h.b16 %v136
  %v257 = vunpack.c.l.b16 %v137
  %v258 = vunpack.c.h.b16 %v137
  %v259 = vunpack.c.l.b16 %v138
  %v260 = vunpack.c.h.b16 %v138
  %v261 = vunpack.c.l.b16 %v139
  %v262 = vunpack.c.h.b16 %v139
  %v263 = vunpack.c.l.b16 %v140
  %v264 = vunpack.c.h.b16 %v140
  %v265 = vunpack.c.l.b16 %v141
  %v266 = vunpack.c.h.b16 %v141
  %v267 = vunpack.c.l.b16 %v142
  %v268 = vunpack.c.h.b16 %v142
  %v269 = vunpack.c.l.b16 %v143
  %v270 = vunpack.c.h.b16 %v143
  %v271 = vunpack.c.l.b16 %v144
  %v272 = vunpack.c.h.b16 %v144
  %v273 = vpack.c.b16 %v213, %v209
  %v274 = vpack.c.b16 %v214, %v210
  %v275 = vpack.c.b16 %v215, %v211
  %v276 = vpack.c.b16 %v216, %v212
  %v277 = vpack.c.b16 %v221, %v217
  %v278 = vpack.c.b16 %v222, %v218
  %v279 = vpack.c.b16 %v223, %v219
  %v280 = vpack.c.b16 %v224, %v220
  %v281 = vpack.c.b16 %v229, %v225
  %v282 = vpack.c.b16 %v230, %v226
  %v283 = vpack.c.b16 %v231, %v227
  %v284 = vpack.c.b16 %v232, %v228
  %v285 = vpack.c.b16 %v237, %v233
  %v286 = vpack.c.b16 %v238, %v234
  %v287 = vpack.c.b16 %v239, %v235
  %v288 = vpack.c.b16 %v240, %v236
  %v289 = vpack.c.b16 %v245, %v241
  %v290 = vpack.c.b16 %v246, %v242
  %v291 = vpack.c.b16 %v247, %v243
  %v292 = vpack.c.b16 %v248, %v244
  %v293 = vpack.c.b16 %v253, %v249
  %v294 = vpack.c.b16 %v254, %v250
  %v295 = vpack.c.b16 %v255, %v251
  %v296 = vpack.c.b16 %v256, %v252
  %v297 = vpack.c.b16 %v261, %v257
  %v298 = vpack.c.b16 %v262, %v258
  %v299 = vpack.c.b16 %v263, %v259
  %v300 = vpack.c.b16 %v264, %v260
  %v301 = vpack.c.b16 %v269, %v265
  %v302 = vpack.c.b16 %v270, %v266
  %v303 = vpack.c.b16 %v271, %v267
  %v304 = vpack.c.b16 %v272, %v268
  %337 = vmatprep.subr.bf16.mxu0 %v274
  %338 = vmatpush1.bf16.msra.mxu0 %v273
  %339 = vmatprep.subr.bf16.mxu0 %v278
  %340 = vmatpush1.bf16.msra.mxu0 %v277
  %341 = vmatprep.subr.bf16.mxu0 %v282
  %342 = vmatpush1.bf16.msra.mxu0 %v281
  %343 = vmatprep.subr.bf16.mxu0 %v286
  %344 = vmatpush1.bf16.msra.mxu0 %v285
  %345 = vmatprep.subr.bf16.mxu0 %v290
  %346 = vmatpush1.bf16.msra.mxu0 %v289
  %347 = vmatprep.subr.bf16.mxu0 %v294
  %348 = vmatpush1.bf16.msra.mxu0 %v293
  %349 = vmatprep.subr.bf16.mxu0 %v298
  %350 = vmatpush1.bf16.msra.mxu0 %v297
  %351 = vmatprep.subr.bf16.mxu0 %v302
  %352 = vmatpush1.bf16.msra.mxu0 %v301
  %353 = vmatprep.subr.bf16.mxu0 0
  %354 = vmatpush1.bf16.msra.mxu0 0
  %355 = vmatprep.subr.bf16.mxu0 0
  %356 = vmatpush1.bf16.msra.mxu0 0
  %357 = vmatprep.subr.bf16.mxu0 0
  %358 = vmatpush1.bf16.msra.mxu0 0
  %359 = vmatprep.subr.bf16.mxu0 0
  %360 = vmatpush1.bf16.msra.mxu0 0
  %361 = vmatprep.subr.bf16.mxu0 0
  %362 = vmatpush1.bf16.msra.mxu0 0
  %363 = vmatprep.subr.bf16.mxu0 0
  %364 = vmatpush1.bf16.msra.mxu0 0
  %365 = vmatprep.subr.bf16.mxu0 0
  %366 = vmatpush1.bf16.msra.mxu0 0
  %367 = vmatprep.subr.bf16.mxu0 0
  %368 = vmatpush1.bf16.msra.mxu0 0
  %369 = vmatprep.mubr.bf16.mxu0 0
  %370 = vmatmul.mubr.bf16.gmra.mrb[0].mxu0 %v173
  %v371 = vpop.f32.mrb[0].mxu0
  %v372 = vadd.f32 %v150, %v371
  %v373 = vpop.f32.mrb[0].mxu0
  %v374 = vadd.f32 %v154, %v373
  %v375 = vpop.f32.mrb[0].mxu0
  %v376 = vadd.f32 %v150, %v375
  %v377 = vpop.f32.mrb[0].mxu0
  %v378 = vadd.f32 %v154, %v377
  %379 = vmatprep.mubr.bf16.mxu0 0
  %380 = vmatmul.mubr.bf16.gmra.mrb[0].mxu0 %v174
  %v381 = vpop.f32.mrb[0].mxu0
  %v382 = vadd.f32 %v150, %v381
  %v383 = vpop.f32.mrb[0].mxu0
  %v384 = vadd.f32 %v154, %v383
  %v385 = vpop.f32.mrb[0].mxu0
  %v386 = vpop.f32.mrb[0].mxu0
  %387 = vdwg.mxu0
  %388 = vmatprep.subr.bf16.mxu0 %v276
  %389 = vmatpush1.bf16.msra.mxu0 %v275
  %390 = vmatprep.subr.bf16.mxu0 %v280
  %391 = vmatpush1.bf16.msra.mxu0 %v279
  %392 = vmatprep.subr.bf16.mxu0 %v284
  %393 = vmatpush1.bf16.msra.mxu0 %v283
  %394 = vmatprep.subr.bf16.mxu0 %v288
  %395 = vmatpush1.bf16.msra.mxu0 %v287
  %396 = vmatprep.subr.bf16.mxu0 %v292
  %397 = vmatpush1.bf16.msra.mxu0 %v291
  %398 = vmatprep.subr.bf16.mxu0 %v296
  %399 = vmatpush1.bf16.msra.mxu0 %v295
  %400 = vmatprep.subr.bf16.mxu0 %v300
  %401 = vmatpush1.bf16.msra.mxu0 %v299
  %402 = vmatprep.subr.bf16.mxu0 %v304
  %403 = vmatpush1.bf16.msra.mxu0 %v303
  %404 = vmatprep.subr.bf16.mxu0 0
  %405 = vmatpush1.bf16.msra.mxu0 0
  %406 = vmatprep.subr.bf16.mxu0 0
  %407 = vmatpush1.bf16.msra.mxu0 0
  %408 = vmatprep.subr.bf16.mxu0 0
  %409 = vmatpush1.bf16.msra.mxu0 0
  %410 = vmatprep.subr.bf16.mxu0 0
  %411 = vmatpush1.bf16.msra.mxu0 0
  %412 = vmatprep.subr.bf16.mxu0 0
  %413 = vmatpush1.bf16.msra.mxu0 0
  %414 = vmatprep.subr.bf16.mxu0 0
  %415 = vmatpush1.bf16.msra.mxu0 0
  %416 = vmatprep.subr.bf16.mxu0 0
  %417 = vmatpush1.bf16.msra.mxu0 0
  %418 = vmatprep.subr.bf16.mxu0 0
  %419 = vmatpush1.bf16.msra.mxu0 0
  %420 = vmatprep.mubr.bf16.mxu0 0
  %421 = vmatmul.mubr.bf16.gmra.mrb[0].mxu0 %v173
  %v422 = vpop.f32.mrb[0].mxu0
  %v423 = vadd.f32 %v158, %v422
  %v424 = vpop.f32.mrb[0].mxu0
  %v425 = vadd.f32 %v162, %v424
  %v426 = vpop.f32.mrb[0].mxu0
  %v427 = vadd.f32 %v158, %v426
  %v428 = vpop.f32.mrb[0].mxu0
  %v429 = vadd.f32 %v162, %v428
  %430 = vmatprep.mubr.bf16.mxu0 0
  %431 = vmatmul.mubr.bf16.gmra.mrb[0].mxu0 %v174
  %v432 = vpop.f32.mrb[0].mxu0
  %v433 = vadd.f32 %v158, %v432
  %v434 = vpop.f32.mrb[0].mxu0
  %v435 = vadd.f32 %v162, %v434
  %v436 = vpop.f32.mrb[0].mxu0
  %v437 = vpop.f32.mrb[0].mxu0
  %438 = vdwg.mxu0
  %v439 = vmul.f32 %v372, %v372
  %v440 = vmul.f32 %v374, %v374
  %v441 = vmul.f32 %v423, %v423
  %v442 = vmul.f32 %v425, %v425
  %v443 = vmul.f32 %v376, %v376
  %v444 = vmul.f32 %v378, %v378
  %v445 = vmul.f32 %v427, %v427
  %v446 = vmul.f32 %v429, %v429
  %v447 = vmul.f32 %v382, %v382
  %v448 = vmul.f32 %v384, %v384
  %v449 = vmul.f32 %v433, %v433
  %v450 = vmul.f32 %v435, %v435
  %v451 = vmul.f32 %v372, %v439
  %v452 = vmul.f32 %v374, %v440
  %v453 = vmul.f32 %v423, %v441
  %v454 = vmul.f32 %v425, %v442
  %v455 = vmul.f32 %v376, %v443
  %v456 = vmul.f32 %v378, %v444
  %v457 = vmul.f32 %v427, %v445
  %v458 = vmul.f32 %v429, %v446
  %v459 = vmul.f32 %v382, %v447
  %v460 = vmul.f32 %v384, %v448
  %v461 = vmul.f32 %v433, %v449
  %v462 = vmul.f32 %v435, %v450
  %v463 = vmul.f32 %v451, 0.044715
  %v464 = vmul.f32 %v452, 0.044715
  %v465 = vmul.f32 %v453, 0.044715
  %v466 = vmul.f32 %v454, 0.044715
  %v467 = vmul.f32 %v455, 0.044715
  %v468 = vmul.f32 %v456, 0.044715
  %v469 = vmul.f32 %v457, 0.044715
  %v470 = vmul.f32 %v458, 0.044715
  %v471 = vmul.f32 %v459, 0.044715
  %v472 = vmul.f32 %v460, 0.044715
  %v473 = vmul.f32 %v461, 0.044715
  %v474 = vmul.f32 %v462, 0.044715
  %v475 = vadd.f32 %v372, %v463
  %v476 = vadd.f32 %v374, %v464
  %v477 = vadd.f32 %v423, %v465
  %v478 = vadd.f32 %v425, %v466
  %v479 = vadd.f32 %v376, %v467
  %v480 = vadd.f32 %v378, %v468
  %v481 = vadd.f32 %v427, %v469
  %v482 = vadd.f32 %v429, %v470
  %v483 = vadd.f32 %v382, %v471
  %v484 = vadd.f32 %v384, %v472
  %v485 = vadd.f32 %v433, %v473
  %v486 = vadd.f32 %v435, %v474
  %v487 = vmul.f32 %v475, 0.7978846
  %v488 = vmul.f32 %v476, 0.7978846
  %v489 = vmul.f32 %v477, 0.7978846
  %v490 = vmul.f32 %v478, 0.7978846
  %v491 = vmul.f32 %v479, 0.7978846
  %v492 = vmul.f32 %v480, 0.7978846
  %v493 = vmul.f32 %v481, 0.7978846
  %v494 = vmul.f32 %v482, 0.7978846
  %v495 = vmul.f32 %v483, 0.7978846
  %v496 = vmul.f32 %v484, 0.7978846
  %v497 = vmul.f32 %v485, 0.7978846
  %v498 = vmul.f32 %v486, 0.7978846
  %v499 = vtanh.pop %v487
  %v500 = vtanh.pop %v488
  %v501 = vtanh.pop %v489
  %v502 = vtanh.pop %v490
  %v503 = vtanh.pop %v491
  %v504 = vtanh.pop %v492
  %v505 = vtanh.pop %v493
  %v506 = vtanh.pop %v494
  %v507 = vtanh.pop %v495
  %v508 = vtanh.pop %v496
  %v509 = vtanh.pop %v497
  %v510 = vtanh.pop %v498
  %v511 = vadd.f32 %v499, 1.0
  %v512 = vadd.f32 %v500, 1.0
  %v513 = vadd.f32 %v501, 1.0
  %v514 = vadd.f32 %v502, 1.0
  %v515 = vadd.f32 %v503, 1.0
  %v516 = vadd.f32 %v504, 1.0
  %v517 = vadd.f32 %v505, 1.0
  %v518 = vadd.f32 %v506, 1.0
  %v519 = vadd.f32 %v507, 1.0
  %v520 = vadd.f32 %v508, 1.0
  %v521 = vadd.f32 %v509, 1.0
  %v522 = vadd.f32 %v510, 1.0
  %v523 = vmul.f32 %v511, 0.5
  %v524 = vmul.f32 %v512, 0.5
  %v525 = vmul.f32 %v513, 0.5
  %v526 = vmul.f32 %v514, 0.5
  %v527 = vmul.f32 %v515, 0.5
  %v528 = vmul.f32 %v516, 0.5
  %v529 = vmul.f32 %v517, 0.5
  %v530 = vmul.f32 %v518, 0.5
  %v531 = vmul.f32 %v519, 0.5
  %v532 = vmul.f32 %v520, 0.5
  %v533 = vmul.f32 %v521, 0.5
  %v534 = vmul.f32 %v522, 0.5
  %v535 = vmul.f32 %v372, %v523
  %v536 = vmul.f32 %v374, %v524
  %v537 = vmul.f32 %v423, %v525
  %v538 = vmul.f32 %v425, %v526
  %v539 = vmul.f32 %v376, %v527
  %v540 = vmul.f32 %v378, %v528
  %v541 = vmul.f32 %v427, %v529
  %v542 = vmul.f32 %v429, %v530
  %v543 = vmul.f32 %v382, %v531
  %v544 = vmul.f32 %v384, %v532
  %v545 = vmul.f32 %v433, %v533
  %v546 = vmul.f32 %v435, %v534
  %v547 = vld [vmem:[#allocation2] sm:$0xff]
  %v548 = vld [vmem:[#allocation2 + $0x8] sm:$0xff]
  %v549 = vld [vmem:[#allocation2 + $0x10] sm:$0xff]
  %v550 = vpack.c.bf16 %v539, %v535
  %v551 = vpack.c.bf16 %v540, %v536
  %v552 = vpack.c.bf16 %v541, %v537
  %v553 = vpack.c.bf16 %v542, %v538
  %v554 = vpack.c.bf16 %v543, %v543
  %v555 = vpack.c.bf16 %v544, %v544
  %v556 = vpack.c.bf16 %v545, %v545
  %v557 = vpack.c.bf16 %v546, %v546
  %v558 = vld [vmem:[%s5] sm:$0xf]
  %v559 = vld [vmem:[%s5 + $0x4] sm:$0xf]
  %v560 = vld [vmem:[%s5 + $0x8] sm:$0xf]
  %v561 = vld [vmem:[%s5 + $0xc] sm:$0xf]
  %v562 = vld [vmem:[%s5 + $0x10] sm:$0xf]
  %v563 = vld [vmem:[%s5 + $0x14] sm:$0xf]
  %v564 = vld [vmem:[%s5 + $0x18] sm:$0xf]
  %v565 = vld [vmem:[%s5 + $0x1c] sm:$0xf]
  %v566 = vld [vmem:[%s5 + $0x20] sm:$0xf]
  %v567 = vld [vmem:[%s5 + $0x24] sm:$0xf]
  %v568 = vld [vmem:[%s5 + $0x28] sm:$0xf]
  %v569 = vld [vmem:[%s5 + $0x2c] sm:$0xf]
  %v570 = vld [vmem:[%s5 + $0x30] sm:$0xf]
  %v571 = vld [vmem:[%s5 + $0x34] sm:$0xf]
  %v572 = vld [vmem:[%s5 + $0x38] sm:$0xf]
  %v573 = vld [vmem:[%s5 + $0x3c] sm:$0xf]
  %v574 = vld [vmem:[%s5 + $0x40] sm:$0xf]
  %v575 = vld [vmem:[%s5 + $0x44] sm:$0xf]
  %v576 = vld [vmem:[%s5 + $0x48] sm:$0xf]
  %v577 = vld [vmem:[%s5 + $0x4c] sm:$0xf]
  %v578 = vld [vmem:[%s5 + $0x50] sm:$0xf]
  %v579 = vld [vmem:[%s5 + $0x54] sm:$0xf]
  %v580 = vld [vmem:[%s5 + $0x58] sm:$0xf]
  %v581 = vld [vmem:[%s5 + $0x5c] sm:$0xf]
  %v582 = vld [vmem:[%s5 + $0x60] sm:$0xf]
  %v583 = vld [vmem:[%s5 + $0x64] sm:$0xf]
  %v584 = vld [vmem:[%s5 + $0x68] sm:$0xf]
  %v585 = vld [vmem:[%s5 + $0x6c] sm:$0xf]
  %v586 = vld [vmem:[%s5 + $0x70] sm:$0xf]
  %v587 = vld [vmem:[%s5 + $0x74] sm:$0xf]
  %v588 = vld [vmem:[%s5 + $0x78] sm:$0xf]
  %v589 = vld [vmem:[%s5 + $0x7c] sm:$0xf]
  %v590 = vld [vmem:[%s5 + $0x80] sm:$0xf]
  %v591 = vld [vmem:[%s5 + $0x84] sm:$0xf]
  %v592 = vld [vmem:[%s5 + $0x88] sm:$0xf]
  %v593 = vld [vmem:[%s5 + $0x8c] sm:$0xf]
  %v594 = vld [vmem:[%s5 + $0x90] sm:$0xf]
  %v595 = vld [vmem:[%s5 + $0x94] sm:$0xf]
  %v596 = vld [vmem:[%s5 + $0x98] sm:$0xf]
  %v597 = vld [vmem:[%s5 + $0x9c] sm:$0xf]
  %v598 = vld [vmem:[%s5 + $0xa0] sm:$0xf]
  %v599 = vld [vmem:[%s5 + $0xa4] sm:$0xf]
  %v600 = vld [vmem:[%s5 + $0xa8] sm:$0xf]
  %v601 = vld [vmem:[%s5 + $0xac] sm:$0xf]
  %v602 = vld [vmem:[%s5 + $0xb0] sm:$0xf]
  %v603 = vld [vmem:[%s5 + $0xb4] sm:$0xf]
  %v604 = vld [vmem:[%s5 + $0xb8] sm:$0xf]
  %v605 = vld [vmem:[%s5 + $0xbc] sm:$0xf]
  %v606 = vld [vmem:[%s5 + $0xc0] sm:$0xf]
  %v607 = vld [vmem:[%s5 + $0xc4] sm:$0xf]
  %v608 = vld [vmem:[%s5 + $0xc8] sm:$0xf]
  %v609 = vld [vmem:[%s5 + $0xcc] sm:$0xf]
  %v610 = vld [vmem:[%s5 + $0xd0] sm:$0xf]
  %v611 = vld [vmem:[%s5 + $0xd4] sm:$0xf]
  %v612 = vld [vmem:[%s5 + $0xd8] sm:$0xf]
  %v613 = vld [vmem:[%s5 + $0xdc] sm:$0xf]
  %v614 = vld [vmem:[%s5 + $0xe0] sm:$0xf]
  %v615 = vld [vmem:[%s5 + $0xe4] sm:$0xf]
  %v616 = vld [vmem:[%s5 + $0xe8] sm:$0xf]
  %v617 = vld [vmem:[%s5 + $0xec] sm:$0xf]
  %v618 = vld [vmem:[%s5 + $0xf0] sm:$0xf]
  %v619 = vld [vmem:[%s5 + $0xf4] sm:$0xf]
  %v620 = vld [vmem:[%s5 + $0xf8] sm:$0xf]
  %v621 = vld [vmem:[%s5 + $0xfc] sm:$0xf]
  %v686 = vunpack.c.l.b16 %v558
  %v687 = vunpack.c.l.b16 %v559
  %v688 = vunpack.c.l.b16 %v560
  %v689 = vunpack.c.l.b16 %v561
  %v690 = vunpack.c.l.b16 %v562
  %v691 = vunpack.c.l.b16 %v563
  %v692 = vunpack.c.l.b16 %v564
  %v693 = vunpack.c.l.b16 %v565
  %v694 = vunpack.c.l.b16 %v566
  %v695 = vunpack.c.l.b16 %v567
  %v696 = vunpack.c.l.b16 %v568
  %v697 = vunpack.c.l.b16 %v569
  %v698 = vunpack.c.l.b16 %v570
  %v699 = vunpack.c.l.b16 %v571
  %v700 = vunpack.c.l.b16 %v572
  %v701 = vunpack.c.l.b16 %v573
  %v702 = vunpack.c.l.b16 %v574
  %v703 = vunpack.c.l.b16 %v575
  %v704 = vunpack.c.l.b16 %v576
  %v705 = vunpack.c.l.b16 %v577
  %v706 = vunpack.c.l.b16 %v578
  %v707 = vunpack.c.l.b16 %v579
  %v708 = vunpack.c.l.b16 %v580
  %v709 = vunpack.c.l.b16 %v581
  %v710 = vunpack.c.l.b16 %v582
  %v711 = vunpack.c.l.b16 %v583
  %v712 = vunpack.c.l.b16 %v584
  %v713 = vunpack.c.l.b16 %v585
  %v714 = vunpack.c.l.b16 %v586
  %v715 = vunpack.c.l.b16 %v587
  %v716 = vunpack.c.l.b16 %v588
  %v717 = vunpack.c.l.b16 %v589
  %v718 = vunpack.c.l.b16 %v590
  %v719 = vunpack.c.l.b16 %v591
  %v720 = vunpack.c.l.b16 %v592
  %v721 = vunpack.c.l.b16 %v593
  %v722 = vunpack.c.l.b16 %v594
  %v723 = vunpack.c.l.b16 %v595
  %v724 = vunpack.c.l.b16 %v596
  %v725 = vunpack.c.l.b16 %v597
  %v726 = vunpack.c.l.b16 %v598
  %v727 = vunpack.c.l.b16 %v599
  %v728 = vunpack.c.l.b16 %v600
  %v729 = vunpack.c.l.b16 %v601
  %v730 = vunpack.c.l.b16 %v602
  %v731 = vunpack.c.l.b16 %v603
  %v732 = vunpack.c.l.b16 %v604
  %v733 = vunpack.c.l.b16 %v605
  %v734 = vunpack.c.l.b16 %v606
  %v735 = vunpack.c.l.b16 %v607
  %v736 = vunpack.c.l.b16 %v608
  %v737 = vunpack.c.l.b16 %v609
  %v738 = vunpack.c.l.b16 %v610
  %v739 = vunpack.c.l.b16 %v611
  %v740 = vunpack.c.l.b16 %v612
  %v741 = vunpack.c.l.b16 %v613
  %v742 = vunpack.c.l.b16 %v614
  %v743 = vunpack.c.l.b16 %v615
  %v744 = vunpack.c.l.b16 %v616
  %v745 = vunpack.c.l.b16 %v617
  %v746 = vunpack.c.l.b16 %v618
  %v747 = vunpack.c.l.b16 %v619
  %v748 = vunpack.c.l.b16 %v620
  %v749 = vunpack.c.l.b16 %v621
  %v750 = vpack.c.b16 %v687, %v686
  %v751 = vpack.c.b16 %v689, %v688
  %v752 = vpack.c.b16 %v691, %v690
  %v753 = vpack.c.b16 %v693, %v692
  %v754 = vpack.c.b16 %v695, %v694
  %v755 = vpack.c.b16 %v697, %v696
  %v756 = vpack.c.b16 %v699, %v698
  %v757 = vpack.c.b16 %v701, %v700
  %v758 = vpack.c.b16 %v703, %v702
  %v759 = vpack.c.b16 %v705, %v704
  %v760 = vpack.c.b16 %v707, %v706
  %v761 = vpack.c.b16 %v709, %v708
  %v762 = vpack.c.b16 %v711, %v710
  %v763 = vpack.c.b16 %v713, %v712
  %v764 = vpack.c.b16 %v715, %v714
  %v765 = vpack.c.b16 %v717, %v716
  %v766 = vpack.c.b16 %v719, %v718
  %v767 = vpack.c.b16 %v721, %v720
  %v768 = vpack.c.b16 %v723, %v722
  %v769 = vpack.c.b16 %v725, %v724
  %v770 = vpack.c.b16 %v727, %v726
  %v771 = vpack.c.b16 %v729, %v728
  %v772 = vpack.c.b16 %v731, %v730
  %v773 = vpack.c.b16 %v733, %v732
  %v774 = vpack.c.b16 %v735, %v734
  %v775 = vpack.c.b16 %v737, %v736
  %v776 = vpack.c.b16 %v739, %v738
  %v777 = vpack.c.b16 %v741, %v740
  %v778 = vpack.c.b16 %v743, %v742
  %v779 = vpack.c.b16 %v745, %v744
  %v780 = vpack.c.b16 %v747, %v746
  %v781 = vpack.c.b16 %v749, %v748
  %814 = vmatprep.subr.bf16.mxu0 0
  %815 = vmatpush1.bf16.msra.mxu0 %v750
  %816 = vmatprep.subr.bf16.mxu0 0
  %817 = vmatpush1.bf16.msra.mxu0 %v751
  %818 = vmatprep.subr.bf16.mxu0 0
  %819 = vmatpush1.bf16.msra.mxu0 %v752
  %820 = vmatprep.subr.bf16.mxu0 0
  %821 = vmatpush1.bf16.msra.mxu0 %v753
  %822 = vmatprep.subr.bf16.mxu0 0
  %823 = vmatpush1.bf16.msra.mxu0 %v754
  %824 = vmatprep.subr.bf16.mxu0 0
  %825 = vmatpush1.bf16.msra.mxu0 %v755
  %826 = vmatprep.subr.bf16.mxu0 0
  %827 = vmatpush1.bf16.msra.mxu0 %v756
  %828 = vmatprep.subr.bf16.mxu0 0
  %829 = vmatpush1.bf16.msra.mxu0 %v757
  %830 = vmatprep.subr.bf16.mxu0 0
  %831 = vmatpush1.bf16.msra.mxu0 %v758
  %832 = vmatprep.subr.bf16.mxu0 0
  %833 = vmatpush1.bf16.msra.mxu0 %v759
  %834 = vmatprep.subr.bf16.mxu0 0
  %835 = vmatpush1.bf16.msra.mxu0 %v760
  %836 = vmatprep.subr.bf16.mxu0 0
  %837 = vmatpush1.bf16.msra.mxu0 %v761
  %838 = vmatprep.subr.bf16.mxu0 0
  %839 = vmatpush1.bf16.msra.mxu0 %v762
  %840 = vmatprep.subr.bf16.mxu0 0
  %841 = vmatpush1.bf16.msra.mxu0 %v763
  %842 = vmatprep.subr.bf16.mxu0 0
  %843 = vmatpush1.bf16.msra.mxu0 %v764
  %844 = vmatprep.subr.bf16.mxu0 0
  %845 = vmatpush1.bf16.msra.mxu0 %v765
  %846 = vmatprep.mubr.bf16.mxu0 %v551
  %847 = vmatmul.mubr.bf16.gmra.mrb[0].mxu0 %v550
  %v848 = vpop.f32.mrb[0].mxu0
  %v849 = vadd.f32 0.0, %v848
  %v850 = vpop.f32.mrb[0].mxu0
  %v851 = vpop.f32.mrb[0].mxu0
  %v852 = vadd.f32 0.0, %v851
  %v853 = vpop.f32.mrb[0].mxu0
  %854 = vmatprep.mubr.bf16.mxu0 %v555
  %855 = vmatmul.mubr.bf16.gmra.mrb[0].mxu0 %v554
  %v856 = vpop.f32.mrb[0].mxu0
  %v857 = vadd.f32 0.0, %v856
  %v858 = vpop.f32.mrb[0].mxu0
  %v859 = vpop.f32.mrb[0].mxu0
  %v860 = vpop.f32.mrb[0].mxu0
  %861 = vdwg.mxu0
  %862 = vmatprep.subr.bf16.mxu0 0
  %863 = vmatpush1.bf16.msra.mxu0 %v766
  %864 = vmatprep.subr.bf16.mxu0 0
  %865 = vmatpush1.bf16.msra.mxu0 %v767
  %866 = vmatprep.subr.bf16.mxu0 0
  %867 = vmatpush1.bf16.msra.mxu0 %v768
  %868 = vmatprep.subr.bf16.mxu0 0
  %869 = vmatpush1.bf16.msra.mxu0 %v769
  %870 = vmatprep.subr.bf16.mxu0 0
  %871 = vmatpush1.bf16.msra.mxu0 %v770
  %872 = vmatprep.subr.bf16.mxu0 0
  %873 = vmatpush1.bf16.msra.mxu0 %v771
  %874 = vmatprep.subr.bf16.mxu0 0
  %875 = vmatpush1.bf16.msra.mxu0 %v772
  %876 = vmatprep.subr.bf16.mxu0 0
  %877 = vmatpush1.bf16.msra.mxu0 %v773
  %878 = vmatprep.subr.bf16.mxu0 0
  %879 = vmatpush1.bf16.msra.mxu0 %v774
  %880 = vmatprep.subr.bf16.mxu0 0
  %881 = vmatpush1.bf16.msra.mxu0 %v775
  %882 = vmatprep.subr.bf16.mxu0 0
  %883 = vmatpush1.bf16.msra.mxu0 %v776
  %884 = vmatprep.subr.bf16.mxu0 0
  %885 = vmatpush1.bf16.msra.mxu0 %v777
  %886 = vmatprep.subr.bf16.mxu0 0
  %887 = vmatpush1.bf16.msra.mxu0 %v778
  %888 = vmatprep.subr.bf16.mxu0 0
  %889 = vmatpush1.bf16.msra.mxu0 %v779
  %890 = vmatprep.subr.bf16.mxu0 0
  %891 = vmatpush1.bf16.msra.mxu0 %v780
  %892 = vmatprep.subr.bf16.mxu0 0
  %893 = vmatpush1.bf16.msra.mxu0 %v781
  %894 = vmatprep.mubr.bf16.mxu0 %v553
  %895 = vmatmul.mubr.bf16.gmra.mrb[0].mxu0 %v552
  %v896 = vpop.f32.mrb[0].mxu0
  %v897 = vadd.f32 %v849, %v896
  %v898 = vpop.f32.mrb[0].mxu0
  %v899 = vpop.f32.mrb[0].mxu0
  %v900 = vadd.f32 %v852, %v899
  %v901 = vpop.f32.mrb[0].mxu0
  %902 = vmatprep.mubr.bf16.mxu0 %v557
  %903 = vmatmul.mubr.bf16.gmra.mrb[0].mxu0 %v556
  %v904 = vpop.f32.mrb[0].mxu0
  %v905 = vadd.f32 %v857, %v904
  %v906 = vpop.f32.mrb[0].mxu0
  %v907 = vpop.f32.mrb[0].mxu0
  %v908 = vpop.f32.mrb[0].mxu0
  %909 = vdwg.mxu0
  %v910 = vadd.f32 %v547, %v897
  %v911 = vadd.f32 %v548, %v900
  %v912 = vadd.f32 %v549, %v905
  %913 = vst [vmem:[#allocation2] sm:$0xff] %v910
  %914 = vst [vmem:[#allocation2 + $0x8] sm:$0xff] %v911
  %915 = vst [vmem:[#allocation2 + $0x10] sm:$0xff] %v912
  // Predicated region
  $region34: #{vit_forward.14} parent=0 // pred_check
    %p916 = pneg %p27
  $region35: #{vit_forward.14} parent=0 // pred_check_branch
    %918 = sbr.rel (%p916) target = $region37
  $region36: #{vit_forward.14} parent=0 // pred_region
    %v919 = vld [vmem:[#allocation2] sm:$0xff]
    %v920 = vld [vmem:[#allocation2 + $0x8] sm:$0xff]
    %v921 = vld [vmem:[#allocation2 + $0x10] sm:$0xff]
    %v922 = vld [vmem:[%s6] sm:$0x1]
    %v924 = vlaneseq
    %v925 = vshrl.u32 %v924, 7
    %v926 = vsub.s32 0, %v925
    %v927 = vrot.slane %v922, %v926
    %v929 = vadd.f32 %v919, %v927
    %v930 = vadd.f32 %v920, %v927
    %v931 = vadd.f32 %v921, %v927
    %v932 = vld [vmem:[%s0] sm:$0xf]
    %v933 = vld [vmem:[%s0 + $0x4] sm:$0xf]
    %v934 = vld [vmem:[%s0 + $0x8] sm:$0xf]
    %v935 = vunpack.c.l.bf16 %v932
    %v936 = vunpack.c.l.bf16 %v933
    %v937 = vunpack.c.l.bf16 %v934
    %v938 = vadd.f32 %v929, %v935
    %v939 = vadd.f32 %v930, %v936
    %v940 = vadd.f32 %v931, %v937
    %v941 = vpack.c.bf16 %v939, %v938
    %v942 = vpack.c.bf16 %v940, %v940
    %v945 = vunpack.c.l.b16 %v941
    %v946 = vunpack.c.h.b16 %v941
    %v947 = vunpack.c.l.b16 %v942
    %v948 = vpack.c.b16 %v945, %v945
    %v949 = vpack.c.b16 %v946, %v946
    %v950 = vpack.c.b16 %v947, %v947
    %954 = vst [vmem:[%s7] sm:$0xf] %v948
    %955 = vst [vmem:[%s7 + $0x4] sm:$0xf] %v949
    %956 = vst [vmem:[%s7 + $0x8] sm:$0xf] %v950
  $region37: #{vit_forward.14} parent=0 // pred_fallthru
    _
  // Predicated region
  $region38: #{vit_forward.14} parent=0 // pred_check
    _
  $region39: #{vit_forward.14} parent=0 // pred_check_branch
    %958 = sbr.rel (0) target = $region41
  $region40: #{vit_forward.14} parent=0 // pred_region
    _
  $region41: #{vit_forward.14} parent=0 // pred_fallthru
    _
  // Predicated region
  $region42: #{vit_forward.14} parent=0 // pred_check
    _
  $region43: #{vit_forward.14} parent=0 // pred_check_branch
    %960 = sbr.rel (0) target = $region45
  $region44: #{vit_forward.14} parent=0 // pred_region
    _
  $region45: #{vit_forward.14} parent=0 // pred_fallthru
    _

</llo_original>
